<compile_context>
chip_gen: v5e
topology: v5e:2x2
jax: 0.10.0
libtpu: 0.0.40
codegen_flags: <defaults>
</compile_context>

<pallas_src>
import math
from types import SimpleNamespace

import jax
import jax.numpy as jnp
from jax import lax
from jax.experimental import pallas as pl
from jax.experimental.pallas import tpu as pltpu

VMEM_SPEC = pl.BlockSpec(memory_space=pltpu.MemorySpace.VMEM)


def make_actor_kernel(d):
    S, F, Cin, Cout = d.S, d.F, d.Cin, d.Cout
    K, st, Kp = d.K, d.stride, d.Kp
    Ho, Wo, Hp, Wp = d.Ho, d.Wo, d.Hp, d.Wp
    H, wd, I = d.H, d.wd, d.I
    L = S + 1
    NSTEPS = d.n_steps
    EPS = d.eps
    f32 = jnp.float32

    def gru_cell(gi, h, wh, bh):
        # PyTorch GRU cell, gate order r | z | n; gi already holds W_ih x + b_ih.
        gh = jnp.dot(h, wh, preferred_element_type=f32) + bh
        r = jax.nn.sigmoid(gi[:, 0:H] + gh[:, 0:H])
        z = jax.nn.sigmoid(gi[:, H:2 * H] + gh[:, H:2 * H])
        n = jnp.tanh(gi[:, 2 * H:3 * H] + r * gh[:, 2 * H:3 * H])
        return (1.0 - z) * n + z * h

    def kernel(x_ref, cw_ref, cb_ref, aw_ref, ab_ref,
               ewi_ref, ewh_ref, ebi_ref, ebh_ref,
               dwi_ref, dwh_ref, dbi_ref, dbh_ref,
               wkT_ref, wqT_ref, v_ref,
               sel_ref, logp_ref,
               patch_ref, encall_ref, flat_ref):
        # ------------------- conv: im2col + single MXU matmul ---------------
        rows = [x_ref[r] for r in range(S)]                       # each (Cin, F)
        for oh in range(Ho):
            for kh in range(K):
                row = rows[oh * st + kh]
                for kw in range(K):
                    sl = row[:, kw:kw + (Wo - 1) * st + 1:st]     # (Cin, Wo)
                    r0 = (kh * K + kw) * Cin
                    patch_ref[r0:r0 + Cin, oh * Wo:(oh + 1) * Wo] = sl
        conv = jnp.dot(cw_ref[...], patch_ref[...],
                       preferred_element_type=f32) + cb_ref[...]  # (Cout, Ho*Wo)

        # ------------------- maxpool (Kp x Kp, stride st) --------------------
        for ph in range(Hp):
            m = None
            for dh in range(Kp):
                r = ph * st + dh
                blk = conv[:, r * Wo:(r + 1) * Wo]                # (Cout, Wo)
                for dw in range(Kp):
                    v = blk[:, dw:dw + (Wp - 1) * st + 1:st]      # (Cout, Wp)
                    m = v if m is None else jnp.maximum(m, v)
            flat_ref[:, ph * Wp:(ph + 1) * Wp] = m
        flat = flat_ref[...]                                       # (Cout, Hp*Wp)

        # ------------------- affine + relu ----------------------------------
        enc_lin = jnp.maximum(
            jnp.dot(flat, aw_ref[...], preferred_element_type=f32) + ab_ref[...],
            0.0)                                                   # (S, I)

        # ------------------- encoder GRU (input gates hoisted) ---------------
        gi_all = jnp.dot(enc_lin, ewi_ref[...],
                         preferred_element_type=f32) + ebi_ref[...]   # (S, 3H)
        ewh, ebh = ewh_ref[...], ebh_ref[...]
        encall_ref[0:1, :] = jnp.zeros((1, H), f32)                # h0 row
        h = jnp.zeros((1, H), f32)
        for t in range(S):                                         # unrolled (S small)
            h = gru_cell(gi_all[t:t + 1, :], h, ewh, ebh)
            encall_ref[t + 1:t + 2, :] = h
        keyT = jnp.dot(encall_ref[...], wkT_ref[...],
                       preferred_element_type=f32)                 # (L, wd) = Key^T

        # ------------------- pointer decoder, fully on-device ----------------
        dwi, dwh, dbi, dbh = dwi_ref[...], dwh_ref[...], dbi_ref[...], dbh_ref[...]
        wqT, v_row = wqT_ref[...], v_ref[...]
        idx_i = lax.broadcasted_iota(jnp.int32, (L, 1), 0)
        idx_f = idx_i.astype(f32)
        row_i = lax.broadcasted_iota(jnp.int32, (S, 1), 0)

        x = jnp.mean(enc_lin, axis=0, keepdims=True)               # (1, I)
        mask = jnp.ones((L, 1), f32)
        done = jnp.zeros((1, 1), jnp.bool_)
        logp_sum = jnp.zeros((1, 1), f32)

        for t in range(NSTEPS):                                    # unrolled (4 steps)
            gi = jnp.dot(x, dwi, preferred_element_type=f32) + dbi
            h_new = gru_cell(gi, h, dwh, dbh)
            q = jnp.dot(h_new, wqT, preferred_element_type=f32)    # (1, wd) = Query^T
            sim = jnp.tanh(keyT + q)                               # (L, wd)
            w = jnp.maximum(jnp.sum(sim * v_row, axis=1, keepdims=True), 0.0)
            masked = w * mask                                      # (L, 1)
            mmax = jnp.max(masked, axis=0, keepdims=True)
            e = jnp.exp(masked - mmax)
            prob = e / jnp.sum(e, axis=0, keepdims=True)           # (L, 1)

            if t == NSTEPS - 1:
                # Forced stop on the last antenna slot (eps guard on the log,
                # exactly as in the reference).
                sel = jnp.zeros((1, 1), jnp.int32)
                logp = jnp.log(EPS + prob[0:1, :])
            else:
                pmax = jnp.max(prob, axis=0, keepdims=True)
                sel_f = jnp.min(jnp.where(prob == pmax, idx_f, float(L)),
                                axis=0, keepdims=True)             # first argmax
                sel = sel_f.astype(jnp.int32)                      # (1, 1)
                p_sel = jnp.sum(jnp.where(idx_i == sel, prob, 0.0),
                                axis=0, keepdims=True)
                logp = jnp.log(p_sel)

            active = jnp.logical_not(done)
            sel_ref[:, t:t + 1] = jnp.where(active, sel, -1)       # -1 = unused slot
            logp_sum = logp_sum + jnp.where(active, logp, 0.0)
            mask = jnp.where(jnp.logical_and(active, idx_i == sel), EPS, mask)

            # Next decoder input = enc_lin[sel - 1] (vectorized gather; value is
            # unused and harmless when sel == 0 or the step is inactive).
            x_next = jnp.sum(jnp.where(row_i == (sel - 1), enc_lin, 0.0),
                             axis=0, keepdims=True)                # (1, I)
            x = jnp.where(jnp.logical_and(active, sel > 0), x_next, x)
            h = jnp.where(active, h_new, h)
            done = jnp.logical_or(done, sel == 0)

        logp_ref[...] = logp_sum

    return kernel


class ActorPallas:
    def __init__(self, args, key):
        self.args = args
        self.eps = 1e-12
        S, F = args.obs_dim1, args.obs_dim2
        Cin, Cout = args.total_obs_matrix_number, args.obs_dim1
        K, st, Kp = args.actor_kernel_size, args.actor_stride, args.actor_maxpool_kernel_size
        H, wd, I = args.rnn_hidden, args.weight_dim, args.rnn_input_dim
        Ho = (S - K) // st + 1
        Wo = (F - K) // st + 1
        Hp = (Ho - Kp) // st + 1
        Wp = (Wo - Kp) // st + 1
        assert Hp * Wp == args.flatten_dim, (Hp, Wp, args.flatten_dim)
        n_steps = args.max_stream + 1
        self.S, self.F = S, F
        self.n_steps = n_steps

        dims = SimpleNamespace(S=S, F=F, Cin=Cin, Cout=Cout, K=K, stride=st, Kp=Kp,
                               Ho=Ho, Wo=Wo, Hp=Hp, Wp=Wp, H=H, wd=wd, I=I,
                               n_steps=n_steps, eps=self.eps)

        f32 = jnp.float32
        ks = jax.random.split(key, 15)

        def nrm(k, shape, scale):
            return (jax.random.normal(k, shape, f32) * scale).astype(f32)

        # Conv2d(Cin, Cout, K, stride) — flattened for im2col; column order
        # (kh, kw, cin) matches the patch-matrix row order built in the kernel.
        cs = 1.0 / math.sqrt(Cin * K * K)
        conv_w = nrm(ks[0], (Cout, Cin, K, K), cs)
        self.conv_w = jnp.transpose(conv_w, (0, 2, 3, 1)).reshape(Cout, K * K * Cin)
        self.conv_b = nrm(ks[1], (Cout,), cs).reshape(Cout, 1)

        # Linear(flatten_dim, rnn_input_dim), stored pre-transposed (flatten, I).
        ls = 1.0 / math.sqrt(args.flatten_dim)
        self.aff_w = nrm(ks[2], (args.flatten_dim, I), ls)
        self.aff_b = nrm(ks[3], (1, I), ls)

        # Encoder / Decoder GRU params (gate order r|z|n), pre-transposed.
        gs = 1.0 / math.sqrt(H)
        self.enc_wi = nrm(ks[4], (I, 3 * H), gs)
        self.enc_wh = nrm(ks[5], (H, 3 * H), gs)
        self.enc_bi = nrm(ks[6], (1, 3 * H), gs)
        self.enc_bh = nrm(ks[7], (1, 3 * H), gs)
        self.dec_wi = nrm(ks[8], (I, 3 * H), gs)
        self.dec_wh = nrm(ks[9], (H, 3 * H), gs)
        self.dec_bi = nrm(ks[10], (1, 3 * H), gs)
        self.dec_bh = nrm(ks[11], (1, 3 * H), gs)

        # Attention params (torch.randn -> std 1), pre-transposed.
        self.WkT = jnp.transpose(nrm(ks[12], (wd, H), 1.0))    # (H, wd)
        self.WqT = jnp.transpose(nrm(ks[13], (wd, H), 1.0))    # (H, wd)
        self.v_row = jnp.transpose(nrm(ks[14], (wd, 1), 1.0))  # (1, wd)

        kernel = make_actor_kernel(dims)
        params = (self.conv_w, self.conv_b, self.aff_w, self.aff_b,
                  self.enc_wi, self.enc_wh, self.enc_bi, self.enc_bh,
                  self.dec_wi, self.dec_wh, self.dec_bi, self.dec_bh,
                  self.WkT, self.WqT, self.v_row)

        call = pl.pallas_call(
            kernel,
            out_shape=(jax.ShapeDtypeStruct((1, n_steps), jnp.int32),
                       jax.ShapeDtypeStruct((1, 1), jnp.float32)),
            in_specs=[VMEM_SPEC] * (1 + len(params)),
            out_specs=(VMEM_SPEC, VMEM_SPEC),
            scratch_shapes=[
                pltpu.VMEM((Cin * K * K, Ho * Wo), jnp.float32),   # im2col patches
                pltpu.VMEM((S + 1, H), jnp.float32),               # [h0; encoder states]
                pltpu.VMEM((Cout, Hp * Wp), jnp.float32),          # pooled / flattened
            ],
        )

        def _fwd(channel_matrix, user_instant_reward):
            # Wrapper glue (1e6 scale, reward channel, layout) fused by XLA under
            # the single jit wrapping the lone pallas_call.
            aug = jnp.broadcast_to(
                user_instant_reward.reshape(1, 1, S, 1).astype(f32), (1, 1, S, F))
            pre = jnp.concatenate(
                [1e6 * channel_matrix.astype(f32), aug], axis=1)[0]   # (Cin, S, F)
            x = jnp.transpose(pre, (1, 0, 2))                          # (S, Cin, F)
            return call(x, *params)

        self._fwd = jax.jit(_fwd)

    def forward(self, channel_matrix, user_instant_reward):
        # drop_out = 0.0 -> both nn.Dropout layers are identities here.
        # TODO(synk): dropout with p>0, the epsilon-greedy torch.rand exploration
        # branch, and the priority_vector / Action / Training=False paths are not
        # exercised by this config (epsilon=0, Training=True, priority_vector=None,
        # Action=None -> deterministic argmax) and are not implemented.
        sel, logp = self._fwd(channel_matrix, user_instant_reward)
        sel_host = jax.device_get(sel)[0]          # single host sync per forward
        schedule = []
        for s in sel_host:
            if int(s) <= 0:                        # 0 = stop token, -1 = unused slot
                break
            schedule.append(int(s) - 1)
        return schedule, logp[0, 0]


if __name__ == "__main__":
    args = SimpleNamespace(
        obs_dim1=8,                   # users == conv output channels == GRU seq len
        obs_dim2=16,                  # feature number (conv input width)
        total_obs_matrix_number=4,    # conv input channels (3 obs + 1 reward)
        actor_kernel_size=3,
        actor_stride=1,
        actor_maxpool_kernel_size=2,
        rnn_hidden=32,
        weight_dim=16,
        rnn_input_dim=32,
        flatten_dim=65,               # ((8-3+1)-2+1) * ((16-3+1)-2+1) = 5*13
        drop_out=0.0,
        max_stream=3,
        epsilon=0.0,
        Training=True,
        cuda=False,
    )

    key = jax.random.PRNGKey(0)
    k_params, k_cm, k_rw = jax.random.split(key, 3)
    actor = ActorPallas(args, k_params)

    channel_matrix = jax.random.uniform(
        k_cm, (1, args.total_obs_matrix_number - 1, args.obs_dim1, args.obs_dim2),
        jnp.float32) * 1e-6
    user_instant_reward = jax.random.uniform(k_rw, (args.obs_dim1,), jnp.float32)

    schedule, total_logprob = actor.forward(channel_matrix, user_instant_reward)
    jax.block_until_ready(total_logprob)
    print("KERNEL_OK")
</pallas_src>

<mosaic_0001>
module attributes {stable_mosaic.version = 11 : i64} {
  func.func @kernel(%arg0: memref<8x4x16xf32, #tpu.memory_space<vmem>>, %arg1: memref<8x36xf32, #tpu.memory_space<vmem>>, %arg2: memref<8x1xf32, #tpu.memory_space<vmem>>, %arg3: memref<65x32xf32, #tpu.memory_space<vmem>>, %arg4: memref<1x32xf32, #tpu.memory_space<vmem>>, %arg5: memref<32x96xf32, #tpu.memory_space<vmem>>, %arg6: memref<32x96xf32, #tpu.memory_space<vmem>>, %arg7: memref<1x96xf32, #tpu.memory_space<vmem>>, %arg8: memref<1x96xf32, #tpu.memory_space<vmem>>, %arg9: memref<32x96xf32, #tpu.memory_space<vmem>>, %arg10: memref<32x96xf32, #tpu.memory_space<vmem>>, %arg11: memref<1x96xf32, #tpu.memory_space<vmem>>, %arg12: memref<1x96xf32, #tpu.memory_space<vmem>>, %arg13: memref<32x16xf32, #tpu.memory_space<vmem>>, %arg14: memref<32x16xf32, #tpu.memory_space<vmem>>, %arg15: memref<1x16xf32, #tpu.memory_space<vmem>>, %arg16: memref<1x4xi32, #tpu.memory_space<vmem>>, %arg17: memref<1x1xf32, #tpu.memory_space<vmem>>, %arg18: memref<36x84xf32, #tpu.memory_space<vmem>>, %arg19: memref<9x32xf32, #tpu.memory_space<vmem>>, %arg20: memref<8x65xf32, #tpu.memory_space<vmem>>) attributes {dimension_semantics = [], scalar_prefetch = 0 : i64, scratch_operands = 3 : i64, tpu.core_type = #tpu.core_type<tc>} {
    %c0 = arith.constant 0 : index
    %c0_0 = arith.constant 0 : index
    %c0_1 = arith.constant 0 : index
    %0 = vector.load %arg0[%c0, %c0_0, %c0_1] : memref<8x4x16xf32, #tpu.memory_space<vmem>>, vector<1x4x16xf32>
    %1 = vector.shape_cast %0 : vector<1x4x16xf32> to vector<4x16xf32>
    %c1 = arith.constant 1 : index
    %c0_2 = arith.constant 0 : index
    %c0_3 = arith.constant 0 : index
    %2 = vector.load %arg0[%c1, %c0_2, %c0_3] : memref<8x4x16xf32, #tpu.memory_space<vmem>>, vector<1x4x16xf32>
    %3 = vector.shape_cast %2 : vector<1x4x16xf32> to vector<4x16xf32>
    %c2 = arith.constant 2 : index
    %c0_4 = arith.constant 0 : index
    %c0_5 = arith.constant 0 : index
    %4 = vector.load %arg0[%c2, %c0_4, %c0_5] : memref<8x4x16xf32, #tpu.memory_space<vmem>>, vector<1x4x16xf32>
    %5 = vector.shape_cast %4 : vector<1x4x16xf32> to vector<4x16xf32>
    %c3 = arith.constant 3 : index
    %c0_6 = arith.constant 0 : index
    %c0_7 = arith.constant 0 : index
    %6 = vector.load %arg0[%c3, %c0_6, %c0_7] : memref<8x4x16xf32, #tpu.memory_space<vmem>>, vector<1x4x16xf32>
    %7 = vector.shape_cast %6 : vector<1x4x16xf32> to vector<4x16xf32>
    %c4 = arith.constant 4 : index
    %c0_8 = arith.constant 0 : index
    %c0_9 = arith.constant 0 : index
    %8 = vector.load %arg0[%c4, %c0_8, %c0_9] : memref<8x4x16xf32, #tpu.memory_space<vmem>>, vector<1x4x16xf32>
    %9 = vector.shape_cast %8 : vector<1x4x16xf32> to vector<4x16xf32>
    %c5 = arith.constant 5 : index
    %c0_10 = arith.constant 0 : index
    %c0_11 = arith.constant 0 : index
    %10 = vector.load %arg0[%c5, %c0_10, %c0_11] : memref<8x4x16xf32, #tpu.memory_space<vmem>>, vector<1x4x16xf32>
    %11 = vector.shape_cast %10 : vector<1x4x16xf32> to vector<4x16xf32>
    %c6 = arith.constant 6 : index
    %c0_12 = arith.constant 0 : index
    %c0_13 = arith.constant 0 : index
    %12 = vector.load %arg0[%c6, %c0_12, %c0_13] : memref<8x4x16xf32, #tpu.memory_space<vmem>>, vector<1x4x16xf32>
    %13 = vector.shape_cast %12 : vector<1x4x16xf32> to vector<4x16xf32>
    %c7 = arith.constant 7 : index
    %c0_14 = arith.constant 0 : index
    %c0_15 = arith.constant 0 : index
    %14 = vector.load %arg0[%c7, %c0_14, %c0_15] : memref<8x4x16xf32, #tpu.memory_space<vmem>>, vector<1x4x16xf32>
    %15 = vector.shape_cast %14 : vector<1x4x16xf32> to vector<4x16xf32>
    %16 = vector.extract_strided_slice %1 {offsets = [0, 0], sizes = [4, 14], strides = [1, 1]} : vector<4x16xf32> to vector<4x14xf32>
    %c0_16 = arith.constant 0 : index
    %c0_17 = arith.constant 0 : index
    %17 = vector.load %arg18[%c0_16, %c0_17] : memref<36x84xf32, #tpu.memory_space<vmem>>, vector<4x14xf32>
    tpu.vector_store %arg18[%c0_16, %c0_17], %16 {strides = array<i32>} : memref<36x84xf32, #tpu.memory_space<vmem>>, vector<4x14xf32>,
    %18 = vector.extract_strided_slice %1 {offsets = [0, 1], sizes = [4, 14], strides = [1, 1]} : vector<4x16xf32> to vector<4x14xf32>
    %c4_18 = arith.constant 4 : index
    %c0_19 = arith.constant 0 : index
    %19 = vector.load %arg18[%c4_18, %c0_19] : memref<36x84xf32, #tpu.memory_space<vmem>>, vector<4x14xf32>
    tpu.vector_store %arg18[%c4_18, %c0_19], %18 {strides = array<i32>} : memref<36x84xf32, #tpu.memory_space<vmem>>, vector<4x14xf32>,
    %20 = vector.extract_strided_slice %1 {offsets = [0, 2], sizes = [4, 14], strides = [1, 1]} : vector<4x16xf32> to vector<4x14xf32>
    %c8 = arith.constant 8 : index
    %c0_20 = arith.constant 0 : index
    %21 = vector.load %arg18[%c8, %c0_20] : memref<36x84xf32, #tpu.memory_space<vmem>>, vector<4x14xf32>
    tpu.vector_store %arg18[%c8, %c0_20], %20 {strides = array<i32>} : memref<36x84xf32, #tpu.memory_space<vmem>>, vector<4x14xf32>,
    %22 = vector.extract_strided_slice %3 {offsets = [0, 0], sizes = [4, 14], strides = [1, 1]} : vector<4x16xf32> to vector<4x14xf32>
    %c12 = arith.constant 12 : index
    %c0_21 = arith.constant 0 : index
    %23 = vector.load %arg18[%c12, %c0_21] : memref<36x84xf32, #tpu.memory_space<vmem>>, vector<4x14xf32>
    tpu.vector_store %arg18[%c12, %c0_21], %22 {strides = array<i32>} : memref<36x84xf32, #tpu.memory_space<vmem>>, vector<4x14xf32>,
    %24 = vector.extract_strided_slice %3 {offsets = [0, 1], sizes = [4, 14], strides = [1, 1]} : vector<4x16xf32> to vector<4x14xf32>
    %c16 = arith.constant 16 : index
    %c0_22 = arith.constant 0 : index
    %25 = vector.load %arg18[%c16, %c0_22] : memref<36x84xf32, #tpu.memory_space<vmem>>, vector<4x14xf32>
    tpu.vector_store %arg18[%c16, %c0_22], %24 {strides = array<i32>} : memref<36x84xf32, #tpu.memory_space<vmem>>, vector<4x14xf32>,
    %26 = vector.extract_strided_slice %3 {offsets = [0, 2], sizes = [4, 14], strides = [1, 1]} : vector<4x16xf32> to vector<4x14xf32>
    %c20 = arith.constant 20 : index
    %c0_23 = arith.constant 0 : index
    %27 = vector.load %arg18[%c20, %c0_23] : memref<36x84xf32, #tpu.memory_space<vmem>>, vector<4x14xf32>
    tpu.vector_store %arg18[%c20, %c0_23], %26 {strides = array<i32>} : memref<36x84xf32, #tpu.memory_space<vmem>>, vector<4x14xf32>,
    %28 = vector.extract_strided_slice %5 {offsets = [0, 0], sizes = [4, 14], strides = [1, 1]} : vector<4x16xf32> to vector<4x14xf32>
    %c24 = arith.constant 24 : index
    %c0_24 = arith.constant 0 : index
    %29 = vector.load %arg18[%c24, %c0_24] : memref<36x84xf32, #tpu.memory_space<vmem>>, vector<4x14xf32>
    tpu.vector_store %arg18[%c24, %c0_24], %28 {strides = array<i32>} : memref<36x84xf32, #tpu.memory_space<vmem>>, vector<4x14xf32>,
    %30 = vector.extract_strided_slice %5 {offsets = [0, 1], sizes = [4, 14], strides = [1, 1]} : vector<4x16xf32> to vector<4x14xf32>
    %c28 = arith.constant 28 : index
    %c0_25 = arith.constant 0 : index
    %31 = vector.load %arg18[%c28, %c0_25] : memref<36x84xf32, #tpu.memory_space<vmem>>, vector<4x14xf32>
    tpu.vector_store %arg18[%c28, %c0_25], %30 {strides = array<i32>} : memref<36x84xf32, #tpu.memory_space<vmem>>, vector<4x14xf32>,
    %32 = vector.extract_strided_slice %5 {offsets = [0, 2], sizes = [4, 14], strides = [1, 1]} : vector<4x16xf32> to vector<4x14xf32>
    %c32 = arith.constant 32 : index
    %c0_26 = arith.constant 0 : index
    %33 = vector.load %arg18[%c32, %c0_26] : memref<36x84xf32, #tpu.memory_space<vmem>>, vector<4x14xf32>
    tpu.vector_store %arg18[%c32, %c0_26], %32 {strides = array<i32>} : memref<36x84xf32, #tpu.memory_space<vmem>>, vector<4x14xf32>,
    %34 = vector.extract_strided_slice %3 {offsets = [0, 0], sizes = [4, 14], strides = [1, 1]} : vector<4x16xf32> to vector<4x14xf32>
    %c0_27 = arith.constant 0 : index
    %c14 = arith.constant 14 : index
    %35 = vector.load %arg18[%c0_27, %c14] : memref<36x84xf32, #tpu.memory_space<vmem>>, vector<4x14xf32>
    tpu.vector_store %arg18[%c0_27, %c14], %34 {strides = array<i32>} : memref<36x84xf32, #tpu.memory_space<vmem>>, vector<4x14xf32>,
    %36 = vector.extract_strided_slice %3 {offsets = [0, 1], sizes = [4, 14], strides = [1, 1]} : vector<4x16xf32> to vector<4x14xf32>
    %c4_28 = arith.constant 4 : index
    %c14_29 = arith.constant 14 : index
    %37 = vector.load %arg18[%c4_28, %c14_29] : memref<36x84xf32, #tpu.memory_space<vmem>>, vector<4x14xf32>
    tpu.vector_store %arg18[%c4_28, %c14_29], %36 {strides = array<i32>} : memref<36x84xf32, #tpu.memory_space<vmem>>, vector<4x14xf32>,
    %38 = vector.extract_strided_slice %3 {offsets = [0, 2], sizes = [4, 14], strides = [1, 1]} : vector<4x16xf32> to vector<4x14xf32>
    %c8_30 = arith.constant 8 : index
    %c14_31 = arith.constant 14 : index
    %39 = vector.load %arg18[%c8_30, %c14_31] : memref<36x84xf32, #tpu.memory_space<vmem>>, vector<4x14xf32>
    tpu.vector_store %arg18[%c8_30, %c14_31], %38 {strides = array<i32>} : memref<36x84xf32, #tpu.memory_space<vmem>>, vector<4x14xf32>,
    %40 = vector.extract_strided_slice %5 {offsets = [0, 0], sizes = [4, 14], strides = [1, 1]} : vector<4x16xf32> to vector<4x14xf32>
    %c12_32 = arith.constant 12 : index
    %c14_33 = arith.constant 14 : index
    %41 = vector.load %arg18[%c12_32, %c14_33] : memref<36x84xf32, #tpu.memory_space<vmem>>, vector<4x14xf32>
    tpu.vector_store %arg18[%c12_32, %c14_33], %40 {strides = array<i32>} : memref<36x84xf32, #tpu.memory_space<vmem>>, vector<4x14xf32>,
    %42 = vector.extract_strided_slice %5 {offsets = [0, 1], sizes = [4, 14], strides = [1, 1]} : vector<4x16xf32> to vector<4x14xf32>
    %c16_34 = arith.constant 16 : index
    %c14_35 = arith.constant 14 : index
    %43 = vector.load %arg18[%c16_34, %c14_35] : memref<36x84xf32, #tpu.memory_space<vmem>>, vector<4x14xf32>
    tpu.vector_store %arg18[%c16_34, %c14_35], %42 {strides = array<i32>} : memref<36x84xf32, #tpu.memory_space<vmem>>, vector<4x14xf32>,
    %44 = vector.extract_strided_slice %5 {offsets = [0, 2], sizes = [4, 14], strides = [1, 1]} : vector<4x16xf32> to vector<4x14xf32>
    %c20_36 = arith.constant 20 : index
    %c14_37 = arith.constant 14 : index
    %45 = vector.load %arg18[%c20_36, %c14_37] : memref<36x84xf32, #tpu.memory_space<vmem>>, vector<4x14xf32>
    tpu.vector_store %arg18[%c20_36, %c14_37], %44 {strides = array<i32>} : memref<36x84xf32, #tpu.memory_space<vmem>>, vector<4x14xf32>,
    %46 = vector.extract_strided_slice %7 {offsets = [0, 0], sizes = [4, 14], strides = [1, 1]} : vector<4x16xf32> to vector<4x14xf32>
    %c24_38 = arith.constant 24 : index
    %c14_39 = arith.constant 14 : index
    %47 = vector.load %arg18[%c24_38, %c14_39] : memref<36x84xf32, #tpu.memory_space<vmem>>, vector<4x14xf32>
    tpu.vector_store %arg18[%c24_38, %c14_39], %46 {strides = array<i32>} : memref<36x84xf32, #tpu.memory_space<vmem>>, vector<4x14xf32>,
    %48 = vector.extract_strided_slice %7 {offsets = [0, 1], sizes = [4, 14], strides = [1, 1]} : vector<4x16xf32> to vector<4x14xf32>
    %c28_40 = arith.constant 28 : index
    %c14_41 = arith.constant 14 : index
    %49 = vector.load %arg18[%c28_40, %c14_41] : memref<36x84xf32, #tpu.memory_space<vmem>>, vector<4x14xf32>
    tpu.vector_store %arg18[%c28_40, %c14_41], %48 {strides = array<i32>} : memref<36x84xf32, #tpu.memory_space<vmem>>, vector<4x14xf32>,
    %50 = vector.extract_strided_slice %7 {offsets = [0, 2], sizes = [4, 14], strides = [1, 1]} : vector<4x16xf32> to vector<4x14xf32>
    %c32_42 = arith.constant 32 : index
    %c14_43 = arith.constant 14 : index
    %51 = vector.load %arg18[%c32_42, %c14_43] : memref<36x84xf32, #tpu.memory_space<vmem>>, vector<4x14xf32>
    tpu.vector_store %arg18[%c32_42, %c14_43], %50 {strides = array<i32>} : memref<36x84xf32, #tpu.memory_space<vmem>>, vector<4x14xf32>,
    %52 = vector.extract_strided_slice %5 {offsets = [0, 0], sizes = [4, 14], strides = [1, 1]} : vector<4x16xf32> to vector<4x14xf32>
    %c0_44 = arith.constant 0 : index
    %c28_45 = arith.constant 28 : index
    %53 = vector.load %arg18[%c0_44, %c28_45] : memref<36x84xf32, #tpu.memory_space<vmem>>, vector<4x14xf32>
    tpu.vector_store %arg18[%c0_44, %c28_45], %52 {strides = array<i32>} : memref<36x84xf32, #tpu.memory_space<vmem>>, vector<4x14xf32>,
    %54 = vector.extract_strided_slice %5 {offsets = [0, 1], sizes = [4, 14], strides = [1, 1]} : vector<4x16xf32> to vector<4x14xf32>
    %c4_46 = arith.constant 4 : index
    %c28_47 = arith.constant 28 : index
    %55 = vector.load %arg18[%c4_46, %c28_47] : memref<36x84xf32, #tpu.memory_space<vmem>>, vector<4x14xf32>
    tpu.vector_store %arg18[%c4_46, %c28_47], %54 {strides = array<i32>} : memref<36x84xf32, #tpu.memory_space<vmem>>, vector<4x14xf32>,
    %56 = vector.extract_strided_slice %5 {offsets = [0, 2], sizes = [4, 14], strides = [1, 1]} : vector<4x16xf32> to vector<4x14xf32>
    %c8_48 = arith.constant 8 : index
    %c28_49 = arith.constant 28 : index
    %57 = vector.load %arg18[%c8_48, %c28_49] : memref<36x84xf32, #tpu.memory_space<vmem>>, vector<4x14xf32>
    tpu.vector_store %arg18[%c8_48, %c28_49], %56 {strides = array<i32>} : memref<36x84xf32, #tpu.memory_space<vmem>>, vector<4x14xf32>,
    %58 = vector.extract_strided_slice %7 {offsets = [0, 0], sizes = [4, 14], strides = [1, 1]} : vector<4x16xf32> to vector<4x14xf32>
    %c12_50 = arith.constant 12 : index
    %c28_51 = arith.constant 28 : index
    %59 = vector.load %arg18[%c12_50, %c28_51] : memref<36x84xf32, #tpu.memory_space<vmem>>, vector<4x14xf32>
    tpu.vector_store %arg18[%c12_50, %c28_51], %58 {strides = array<i32>} : memref<36x84xf32, #tpu.memory_space<vmem>>, vector<4x14xf32>,
    %60 = vector.extract_strided_slice %7 {offsets = [0, 1], sizes = [4, 14], strides = [1, 1]} : vector<4x16xf32> to vector<4x14xf32>
    %c16_52 = arith.constant 16 : index
    %c28_53 = arith.constant 28 : index
    %61 = vector.load %arg18[%c16_52, %c28_53] : memref<36x84xf32, #tpu.memory_space<vmem>>, vector<4x14xf32>
    tpu.vector_store %arg18[%c16_52, %c28_53], %60 {strides = array<i32>} : memref<36x84xf32, #tpu.memory_space<vmem>>, vector<4x14xf32>,
    %62 = vector.extract_strided_slice %7 {offsets = [0, 2], sizes = [4, 14], strides = [1, 1]} : vector<4x16xf32> to vector<4x14xf32>
    %c20_54 = arith.constant 20 : index
    %c28_55 = arith.constant 28 : index
    %63 = vector.load %arg18[%c20_54, %c28_55] : memref<36x84xf32, #tpu.memory_space<vmem>>, vector<4x14xf32>
    tpu.vector_store %arg18[%c20_54, %c28_55], %62 {strides = array<i32>} : memref<36x84xf32, #tpu.memory_space<vmem>>, vector<4x14xf32>,
    %64 = vector.extract_strided_slice %9 {offsets = [0, 0], sizes = [4, 14], strides = [1, 1]} : vector<4x16xf32> to vector<4x14xf32>
    %c24_56 = arith.constant 24 : index
    %c28_57 = arith.constant 28 : index
    %65 = vector.load %arg18[%c24_56, %c28_57] : memref<36x84xf32, #tpu.memory_space<vmem>>, vector<4x14xf32>
    tpu.vector_store %arg18[%c24_56, %c28_57], %64 {strides = array<i32>} : memref<36x84xf32, #tpu.memory_space<vmem>>, vector<4x14xf32>,
    %66 = vector.extract_strided_slice %9 {offsets = [0, 1], sizes = [4, 14], strides = [1, 1]} : vector<4x16xf32> to vector<4x14xf32>
    %c28_58 = arith.constant 28 : index
    %c28_59 = arith.constant 28 : index
    %67 = vector.load %arg18[%c28_58, %c28_59] : memref<36x84xf32, #tpu.memory_space<vmem>>, vector<4x14xf32>
    tpu.vector_store %arg18[%c28_58, %c28_59], %66 {strides = array<i32>} : memref<36x84xf32, #tpu.memory_space<vmem>>, vector<4x14xf32>,
    %68 = vector.extract_strided_slice %9 {offsets = [0, 2], sizes = [4, 14], strides = [1, 1]} : vector<4x16xf32> to vector<4x14xf32>
    %c32_60 = arith.constant 32 : index
    %c28_61 = arith.constant 28 : index
    %69 = vector.load %arg18[%c32_60, %c28_61] : memref<36x84xf32, #tpu.memory_space<vmem>>, vector<4x14xf32>
    tpu.vector_store %arg18[%c32_60, %c28_61], %68 {strides = array<i32>} : memref<36x84xf32, #tpu.memory_space<vmem>>, vector<4x14xf32>,
    %70 = vector.extract_strided_slice %7 {offsets = [0, 0], sizes = [4, 14], strides = [1, 1]} : vector<4x16xf32> to vector<4x14xf32>
    %c0_62 = arith.constant 0 : index
    %c42 = arith.constant 42 : index
    %71 = vector.load %arg18[%c0_62, %c42] : memref<36x84xf32, #tpu.memory_space<vmem>>, vector<4x14xf32>
    tpu.vector_store %arg18[%c0_62, %c42], %70 {strides = array<i32>} : memref<36x84xf32, #tpu.memory_space<vmem>>, vector<4x14xf32>,
    %72 = vector.extract_strided_slice %7 {offsets = [0, 1], sizes = [4, 14], strides = [1, 1]} : vector<4x16xf32> to vector<4x14xf32>
    %c4_63 = arith.constant 4 : index
    %c42_64 = arith.constant 42 : index
    %73 = vector.load %arg18[%c4_63, %c42_64] : memref<36x84xf32, #tpu.memory_space<vmem>>, vector<4x14xf32>
    tpu.vector_store %arg18[%c4_63, %c42_64], %72 {strides = array<i32>} : memref<36x84xf32, #tpu.memory_space<vmem>>, vector<4x14xf32>,
    %74 = vector.extract_strided_slice %7 {offsets = [0, 2], sizes = [4, 14], strides = [1, 1]} : vector<4x16xf32> to vector<4x14xf32>
    %c8_65 = arith.constant 8 : index
    %c42_66 = arith.constant 42 : index
    %75 = vector.load %arg18[%c8_65, %c42_66] : memref<36x84xf32, #tpu.memory_space<vmem>>, vector<4x14xf32>
    tpu.vector_store %arg18[%c8_65, %c42_66], %74 {strides = array<i32>} : memref<36x84xf32, #tpu.memory_space<vmem>>, vector<4x14xf32>,
    %76 = vector.extract_strided_slice %9 {offsets = [0, 0], sizes = [4, 14], strides = [1, 1]} : vector<4x16xf32> to vector<4x14xf32>
    %c12_67 = arith.constant 12 : index
    %c42_68 = arith.constant 42 : index
    %77 = vector.load %arg18[%c12_67, %c42_68] : memref<36x84xf32, #tpu.memory_space<vmem>>, vector<4x14xf32>
    tpu.vector_store %arg18[%c12_67, %c42_68], %76 {strides = array<i32>} : memref<36x84xf32, #tpu.memory_space<vmem>>, vector<4x14xf32>,
    %78 = vector.extract_strided_slice %9 {offsets = [0, 1], sizes = [4, 14], strides = [1, 1]} : vector<4x16xf32> to vector<4x14xf32>
    %c16_69 = arith.constant 16 : index
    %c42_70 = arith.constant 42 : index
    %79 = vector.load %arg18[%c16_69, %c42_70] : memref<36x84xf32, #tpu.memory_space<vmem>>, vector<4x14xf32>
    tpu.vector_store %arg18[%c16_69, %c42_70], %78 {strides = array<i32>} : memref<36x84xf32, #tpu.memory_space<vmem>>, vector<4x14xf32>,
    %80 = vector.extract_strided_slice %9 {offsets = [0, 2], sizes = [4, 14], strides = [1, 1]} : vector<4x16xf32> to vector<4x14xf32>
    %c20_71 = arith.constant 20 : index
    %c42_72 = arith.constant 42 : index
    %81 = vector.load %arg18[%c20_71, %c42_72] : memref<36x84xf32, #tpu.memory_space<vmem>>, vector<4x14xf32>
    tpu.vector_store %arg18[%c20_71, %c42_72], %80 {strides = array<i32>} : memref<36x84xf32, #tpu.memory_space<vmem>>, vector<4x14xf32>,
    %82 = vector.extract_strided_slice %11 {offsets = [0, 0], sizes = [4, 14], strides = [1, 1]} : vector<4x16xf32> to vector<4x14xf32>
    %c24_73 = arith.constant 24 : index
    %c42_74 = arith.constant 42 : index
    %83 = vector.load %arg18[%c24_73, %c42_74] : memref<36x84xf32, #tpu.memory_space<vmem>>, vector<4x14xf32>
    tpu.vector_store %arg18[%c24_73, %c42_74], %82 {strides = array<i32>} : memref<36x84xf32, #tpu.memory_space<vmem>>, vector<4x14xf32>,
    %84 = vector.extract_strided_slice %11 {offsets = [0, 1], sizes = [4, 14], strides = [1, 1]} : vector<4x16xf32> to vector<4x14xf32>
    %c28_75 = arith.constant 28 : index
    %c42_76 = arith.constant 42 : index
    %85 = vector.load %arg18[%c28_75, %c42_76] : memref<36x84xf32, #tpu.memory_space<vmem>>, vector<4x14xf32>
    tpu.vector_store %arg18[%c28_75, %c42_76], %84 {strides = array<i32>} : memref<36x84xf32, #tpu.memory_space<vmem>>, vector<4x14xf32>,
    %86 = vector.extract_strided_slice %11 {offsets = [0, 2], sizes = [4, 14], strides = [1, 1]} : vector<4x16xf32> to vector<4x14xf32>
    %c32_77 = arith.constant 32 : index
    %c42_78 = arith.constant 42 : index
    %87 = vector.load %arg18[%c32_77, %c42_78] : memref<36x84xf32, #tpu.memory_space<vmem>>, vector<4x14xf32>
    tpu.vector_store %arg18[%c32_77, %c42_78], %86 {strides = array<i32>} : memref<36x84xf32, #tpu.memory_space<vmem>>, vector<4x14xf32>,
    %88 = vector.extract_strided_slice %9 {offsets = [0, 0], sizes = [4, 14], strides = [1, 1]} : vector<4x16xf32> to vector<4x14xf32>
    %c0_79 = arith.constant 0 : index
    %c56 = arith.constant 56 : index
    %89 = vector.load %arg18[%c0_79, %c56] : memref<36x84xf32, #tpu.memory_space<vmem>>, vector<4x14xf32>
    tpu.vector_store %arg18[%c0_79, %c56], %88 {strides = array<i32>} : memref<36x84xf32, #tpu.memory_space<vmem>>, vector<4x14xf32>,
    %90 = vector.extract_strided_slice %9 {offsets = [0, 1], sizes = [4, 14], strides = [1, 1]} : vector<4x16xf32> to vector<4x14xf32>
    %c4_80 = arith.constant 4 : index
    %c56_81 = arith.constant 56 : index
    %91 = vector.load %arg18[%c4_80, %c56_81] : memref<36x84xf32, #tpu.memory_space<vmem>>, vector<4x14xf32>
    tpu.vector_store %arg18[%c4_80, %c56_81], %90 {strides = array<i32>} : memref<36x84xf32, #tpu.memory_space<vmem>>, vector<4x14xf32>,
    %92 = vector.extract_strided_slice %9 {offsets = [0, 2], sizes = [4, 14], strides = [1, 1]} : vector<4x16xf32> to vector<4x14xf32>
    %c8_82 = arith.constant 8 : index
    %c56_83 = arith.constant 56 : index
    %93 = vector.load %arg18[%c8_82, %c56_83] : memref<36x84xf32, #tpu.memory_space<vmem>>, vector<4x14xf32>
    tpu.vector_store %arg18[%c8_82, %c56_83], %92 {strides = array<i32>} : memref<36x84xf32, #tpu.memory_space<vmem>>, vector<4x14xf32>,
    %94 = vector.extract_strided_slice %11 {offsets = [0, 0], sizes = [4, 14], strides = [1, 1]} : vector<4x16xf32> to vector<4x14xf32>
    %c12_84 = arith.constant 12 : index
    %c56_85 = arith.constant 56 : index
    %95 = vector.load %arg18[%c12_84, %c56_85] : memref<36x84xf32, #tpu.memory_space<vmem>>, vector<4x14xf32>
    tpu.vector_store %arg18[%c12_84, %c56_85], %94 {strides = array<i32>} : memref<36x84xf32, #tpu.memory_space<vmem>>, vector<4x14xf32>,
    %96 = vector.extract_strided_slice %11 {offsets = [0, 1], sizes = [4, 14], strides = [1, 1]} : vector<4x16xf32> to vector<4x14xf32>
    %c16_86 = arith.constant 16 : index
    %c56_87 = arith.constant 56 : index
    %97 = vector.load %arg18[%c16_86, %c56_87] : memref<36x84xf32, #tpu.memory_space<vmem>>, vector<4x14xf32>
    tpu.vector_store %arg18[%c16_86, %c56_87], %96 {strides = array<i32>} : memref<36x84xf32, #tpu.memory_space<vmem>>, vector<4x14xf32>,
    %98 = vector.extract_strided_slice %11 {offsets = [0, 2], sizes = [4, 14], strides = [1, 1]} : vector<4x16xf32> to vector<4x14xf32>
    %c20_88 = arith.constant 20 : index
    %c56_89 = arith.constant 56 : index
    %99 = vector.load %arg18[%c20_88, %c56_89] : memref<36x84xf32, #tpu.memory_space<vmem>>, vector<4x14xf32>
    tpu.vector_store %arg18[%c20_88, %c56_89], %98 {strides = array<i32>} : memref<36x84xf32, #tpu.memory_space<vmem>>, vector<4x14xf32>,
    %100 = vector.extract_strided_slice %13 {offsets = [0, 0], sizes = [4, 14], strides = [1, 1]} : vector<4x16xf32> to vector<4x14xf32>
    %c24_90 = arith.constant 24 : index
    %c56_91 = arith.constant 56 : index
    %101 = vector.load %arg18[%c24_90, %c56_91] : memref<36x84xf32, #tpu.memory_space<vmem>>, vector<4x14xf32>
    tpu.vector_store %arg18[%c24_90, %c56_91], %100 {strides = array<i32>} : memref<36x84xf32, #tpu.memory_space<vmem>>, vector<4x14xf32>,
    %102 = vector.extract_strided_slice %13 {offsets = [0, 1], sizes = [4, 14], strides = [1, 1]} : vector<4x16xf32> to vector<4x14xf32>
    %c28_92 = arith.constant 28 : index
    %c56_93 = arith.constant 56 : index
    %103 = vector.load %arg18[%c28_92, %c56_93] : memref<36x84xf32, #tpu.memory_space<vmem>>, vector<4x14xf32>
    tpu.vector_store %arg18[%c28_92, %c56_93], %102 {strides = array<i32>} : memref<36x84xf32, #tpu.memory_space<vmem>>, vector<4x14xf32>,
    %104 = vector.extract_strided_slice %13 {offsets = [0, 2], sizes = [4, 14], strides = [1, 1]} : vector<4x16xf32> to vector<4x14xf32>
    %c32_94 = arith.constant 32 : index
    %c56_95 = arith.constant 56 : index
    %105 = vector.load %arg18[%c32_94, %c56_95] : memref<36x84xf32, #tpu.memory_space<vmem>>, vector<4x14xf32>
    tpu.vector_store %arg18[%c32_94, %c56_95], %104 {strides = array<i32>} : memref<36x84xf32, #tpu.memory_space<vmem>>, vector<4x14xf32>,
    %106 = vector.extract_strided_slice %11 {offsets = [0, 0], sizes = [4, 14], strides = [1, 1]} : vector<4x16xf32> to vector<4x14xf32>
    %c0_96 = arith.constant 0 : index
    %c70 = arith.constant 70 : index
    %107 = vector.load %arg18[%c0_96, %c70] : memref<36x84xf32, #tpu.memory_space<vmem>>, vector<4x14xf32>
    tpu.vector_store %arg18[%c0_96, %c70], %106 {strides = array<i32>} : memref<36x84xf32, #tpu.memory_space<vmem>>, vector<4x14xf32>,
    %108 = vector.extract_strided_slice %11 {offsets = [0, 1], sizes = [4, 14], strides = [1, 1]} : vector<4x16xf32> to vector<4x14xf32>
    %c4_97 = arith.constant 4 : index
    %c70_98 = arith.constant 70 : index
    %109 = vector.load %arg18[%c4_97, %c70_98] : memref<36x84xf32, #tpu.memory_space<vmem>>, vector<4x14xf32>
    tpu.vector_store %arg18[%c4_97, %c70_98], %108 {strides = array<i32>} : memref<36x84xf32, #tpu.memory_space<vmem>>, vector<4x14xf32>,
    %110 = vector.extract_strided_slice %11 {offsets = [0, 2], sizes = [4, 14], strides = [1, 1]} : vector<4x16xf32> to vector<4x14xf32>
    %c8_99 = arith.constant 8 : index
    %c70_100 = arith.constant 70 : index
    %111 = vector.load %arg18[%c8_99, %c70_100] : memref<36x84xf32, #tpu.memory_space<vmem>>, vector<4x14xf32>
    tpu.vector_store %arg18[%c8_99, %c70_100], %110 {strides = array<i32>} : memref<36x84xf32, #tpu.memory_space<vmem>>, vector<4x14xf32>,
    %112 = vector.extract_strided_slice %13 {offsets = [0, 0], sizes = [4, 14], strides = [1, 1]} : vector<4x16xf32> to vector<4x14xf32>
    %c12_101 = arith.constant 12 : index
    %c70_102 = arith.constant 70 : index
    %113 = vector.load %arg18[%c12_101, %c70_102] : memref<36x84xf32, #tpu.memory_space<vmem>>, vector<4x14xf32>
    tpu.vector_store %arg18[%c12_101, %c70_102], %112 {strides = array<i32>} : memref<36x84xf32, #tpu.memory_space<vmem>>, vector<4x14xf32>,
    %114 = vector.extract_strided_slice %13 {offsets = [0, 1], sizes = [4, 14], strides = [1, 1]} : vector<4x16xf32> to vector<4x14xf32>
    %c16_103 = arith.constant 16 : index
    %c70_104 = arith.constant 70 : index
    %115 = vector.load %arg18[%c16_103, %c70_104] : memref<36x84xf32, #tpu.memory_space<vmem>>, vector<4x14xf32>
    tpu.vector_store %arg18[%c16_103, %c70_104], %114 {strides = array<i32>} : memref<36x84xf32, #tpu.memory_space<vmem>>, vector<4x14xf32>,
    %116 = vector.extract_strided_slice %13 {offsets = [0, 2], sizes = [4, 14], strides = [1, 1]} : vector<4x16xf32> to vector<4x14xf32>
    %c20_105 = arith.constant 20 : index
    %c70_106 = arith.constant 70 : index
    %117 = vector.load %arg18[%c20_105, %c70_106] : memref<36x84xf32, #tpu.memory_space<vmem>>, vector<4x14xf32>
    tpu.vector_store %arg18[%c20_105, %c70_106], %116 {strides = array<i32>} : memref<36x84xf32, #tpu.memory_space<vmem>>, vector<4x14xf32>,
    %118 = vector.extract_strided_slice %15 {offsets = [0, 0], sizes = [4, 14], strides = [1, 1]} : vector<4x16xf32> to vector<4x14xf32>
    %c24_107 = arith.constant 24 : index
    %c70_108 = arith.constant 70 : index
    %119 = vector.load %arg18[%c24_107, %c70_108] : memref<36x84xf32, #tpu.memory_space<vmem>>, vector<4x14xf32>
    tpu.vector_store %arg18[%c24_107, %c70_108], %118 {strides = array<i32>} : memref<36x84xf32, #tpu.memory_space<vmem>>, vector<4x14xf32>,
    %120 = vector.extract_strided_slice %15 {offsets = [0, 1], sizes = [4, 14], strides = [1, 1]} : vector<4x16xf32> to vector<4x14xf32>
    %c28_109 = arith.constant 28 : index
    %c70_110 = arith.constant 70 : index
    %121 = vector.load %arg18[%c28_109, %c70_110] : memref<36x84xf32, #tpu.memory_space<vmem>>, vector<4x14xf32>
    tpu.vector_store %arg18[%c28_109, %c70_110], %120 {strides = array<i32>} : memref<36x84xf32, #tpu.memory_space<vmem>>, vector<4x14xf32>,
    %122 = vector.extract_strided_slice %15 {offsets = [0, 2], sizes = [4, 14], strides = [1, 1]} : vector<4x16xf32> to vector<4x14xf32>
    %c32_111 = arith.constant 32 : index
    %c70_112 = arith.constant 70 : index
    %123 = vector.load %arg18[%c32_111, %c70_112] : memref<36x84xf32, #tpu.memory_space<vmem>>, vector<4x14xf32>
    tpu.vector_store %arg18[%c32_111, %c70_112], %122 {strides = array<i32>} : memref<36x84xf32, #tpu.memory_space<vmem>>, vector<4x14xf32>,
    %c0_113 = arith.constant 0 : index
    %c0_114 = arith.constant 0 : index
    %124 = vector.load %arg1[%c0_113, %c0_114] : memref<8x36xf32, #tpu.memory_space<vmem>>, vector<8x36xf32>
    %c0_115 = arith.constant 0 : index
    %c0_116 = arith.constant 0 : index
    %125 = vector.load %arg18[%c0_115, %c0_116] : memref<36x84xf32, #tpu.memory_space<vmem>>, vector<36x84xf32>
    %cst = arith.constant dense<0.000000e+00> : vector<8x84xf32>
    %126 = tpu.matmul %124, %125, %cst {dimension_numbers = #tpu.dot_dimension_numbers<[1], [0], [0], [1], [0, 0, 1, 1], [], []>} : vector<8x36xf32>, vector<36x84xf32>, vector<8x84xf32> -> vector<8x84xf32>
    %c0_117 = arith.constant 0 : index
    %c0_118 = arith.constant 0 : index
    %127 = vector.load %arg2[%c0_117, %c0_118] : memref<8x1xf32, #tpu.memory_space<vmem>>, vector<8x1xf32>
    %128 = vector.broadcast %127 : vector<8x1xf32> to vector<8x84xf32>
    %129 = arith.addf %126, %128 : vector<8x84xf32>
    %130 = vector.extract_strided_slice %129 {offsets = [0, 0], sizes = [8, 14], strides = [1, 1]} : vector<8x84xf32> to vector<8x14xf32>
    %131 = vector.extract_strided_slice %130 {offsets = [0, 0], sizes = [8, 13], strides = [1, 1]} : vector<8x14xf32> to vector<8x13xf32>
    %132 = vector.extract_strided_slice %130 {offsets = [0, 1], sizes = [8, 13], strides = [1, 1]} : vector<8x14xf32> to vector<8x13xf32>
    %133 = arith.maximumf %131, %132 : vector<8x13xf32>
    %134 = vector.extract_strided_slice %129 {offsets = [0, 14], sizes = [8, 14], strides = [1, 1]} : vector<8x84xf32> to vector<8x14xf32>
    %135 = vector.extract_strided_slice %134 {offsets = [0, 0], sizes = [8, 13], strides = [1, 1]} : vector<8x14xf32> to vector<8x13xf32>
    %136 = arith.maximumf %133, %135 : vector<8x13xf32>
    %137 = vector.extract_strided_slice %134 {offsets = [0, 1], sizes = [8, 13], strides = [1, 1]} : vector<8x14xf32> to vector<8x13xf32>
    %138 = arith.maximumf %136, %137 : vector<8x13xf32>
    %c0_119 = arith.constant 0 : index
    %c0_120 = arith.constant 0 : index
    %139 = vector.load %arg20[%c0_119, %c0_120] : memref<8x65xf32, #tpu.memory_space<vmem>>, vector<8x13xf32>
    tpu.vector_store %arg20[%c0_119, %c0_120], %138 {strides = array<i32>} : memref<8x65xf32, #tpu.memory_space<vmem>>, vector<8x13xf32>,
    %140 = vector.extract_strided_slice %129 {offsets = [0, 14], sizes = [8, 14], strides = [1, 1]} : vector<8x84xf32> to vector<8x14xf32>
    %141 = vector.extract_strided_slice %140 {offsets = [0, 0], sizes = [8, 13], strides = [1, 1]} : vector<8x14xf32> to vector<8x13xf32>
    %142 = vector.extract_strided_slice %140 {offsets = [0, 1], sizes = [8, 13], strides = [1, 1]} : vector<8x14xf32> to vector<8x13xf32>
    %143 = arith.maximumf %141, %142 : vector<8x13xf32>
    %144 = vector.extract_strided_slice %129 {offsets = [0, 28], sizes = [8, 14], strides = [1, 1]} : vector<8x84xf32> to vector<8x14xf32>
    %145 = vector.extract_strided_slice %144 {offsets = [0, 0], sizes = [8, 13], strides = [1, 1]} : vector<8x14xf32> to vector<8x13xf32>
    %146 = arith.maximumf %143, %145 : vector<8x13xf32>
    %147 = vector.extract_strided_slice %144 {offsets = [0, 1], sizes = [8, 13], strides = [1, 1]} : vector<8x14xf32> to vector<8x13xf32>
    %148 = arith.maximumf %146, %147 : vector<8x13xf32>
    %c0_121 = arith.constant 0 : index
    %c13 = arith.constant 13 : index
    %149 = vector.load %arg20[%c0_121, %c13] : memref<8x65xf32, #tpu.memory_space<vmem>>, vector<8x13xf32>
    tpu.vector_store %arg20[%c0_121, %c13], %148 {strides = array<i32>} : memref<8x65xf32, #tpu.memory_space<vmem>>, vector<8x13xf32>,
    %150 = vector.extract_strided_slice %129 {offsets = [0, 28], sizes = [8, 14], strides = [1, 1]} : vector<8x84xf32> to vector<8x14xf32>
    %151 = vector.extract_strided_slice %150 {offsets = [0, 0], sizes = [8, 13], strides = [1, 1]} : vector<8x14xf32> to vector<8x13xf32>
    %152 = vector.extract_strided_slice %150 {offsets = [0, 1], sizes = [8, 13], strides = [1, 1]} : vector<8x14xf32> to vector<8x13xf32>
    %153 = arith.maximumf %151, %152 : vector<8x13xf32>
    %154 = vector.extract_strided_slice %129 {offsets = [0, 42], sizes = [8, 14], strides = [1, 1]} : vector<8x84xf32> to vector<8x14xf32>
    %155 = vector.extract_strided_slice %154 {offsets = [0, 0], sizes = [8, 13], strides = [1, 1]} : vector<8x14xf32> to vector<8x13xf32>
    %156 = arith.maximumf %153, %155 : vector<8x13xf32>
    %157 = vector.extract_strided_slice %154 {offsets = [0, 1], sizes = [8, 13], strides = [1, 1]} : vector<8x14xf32> to vector<8x13xf32>
    %158 = arith.maximumf %156, %157 : vector<8x13xf32>
    %c0_122 = arith.constant 0 : index
    %c26 = arith.constant 26 : index
    %159 = vector.load %arg20[%c0_122, %c26] : memref<8x65xf32, #tpu.memory_space<vmem>>, vector<8x13xf32>
    tpu.vector_store %arg20[%c0_122, %c26], %158 {strides = array<i32>} : memref<8x65xf32, #tpu.memory_space<vmem>>, vector<8x13xf32>,
    %160 = vector.extract_strided_slice %129 {offsets = [0, 42], sizes = [8, 14], strides = [1, 1]} : vector<8x84xf32> to vector<8x14xf32>
    %161 = vector.extract_strided_slice %160 {offsets = [0, 0], sizes = [8, 13], strides = [1, 1]} : vector<8x14xf32> to vector<8x13xf32>
    %162 = vector.extract_strided_slice %160 {offsets = [0, 1], sizes = [8, 13], strides = [1, 1]} : vector<8x14xf32> to vector<8x13xf32>
    %163 = arith.maximumf %161, %162 : vector<8x13xf32>
    %164 = vector.extract_strided_slice %129 {offsets = [0, 56], sizes = [8, 14], strides = [1, 1]} : vector<8x84xf32> to vector<8x14xf32>
    %165 = vector.extract_strided_slice %164 {offsets = [0, 0], sizes = [8, 13], strides = [1, 1]} : vector<8x14xf32> to vector<8x13xf32>
    %166 = arith.maximumf %163, %165 : vector<8x13xf32>
    %167 = vector.extract_strided_slice %164 {offsets = [0, 1], sizes = [8, 13], strides = [1, 1]} : vector<8x14xf32> to vector<8x13xf32>
    %168 = arith.maximumf %166, %167 : vector<8x13xf32>
    %c0_123 = arith.constant 0 : index
    %c39 = arith.constant 39 : index
    %169 = vector.load %arg20[%c0_123, %c39] : memref<8x65xf32, #tpu.memory_space<vmem>>, vector<8x13xf32>
    tpu.vector_store %arg20[%c0_123, %c39], %168 {strides = array<i32>} : memref<8x65xf32, #tpu.memory_space<vmem>>, vector<8x13xf32>,
    %170 = vector.extract_strided_slice %129 {offsets = [0, 56], sizes = [8, 14], strides = [1, 1]} : vector<8x84xf32> to vector<8x14xf32>
    %171 = vector.extract_strided_slice %170 {offsets = [0, 0], sizes = [8, 13], strides = [1, 1]} : vector<8x14xf32> to vector<8x13xf32>
    %172 = vector.extract_strided_slice %170 {offsets = [0, 1], sizes = [8, 13], strides = [1, 1]} : vector<8x14xf32> to vector<8x13xf32>
    %173 = arith.maximumf %171, %172 : vector<8x13xf32>
    %174 = vector.extract_strided_slice %129 {offsets = [0, 70], sizes = [8, 14], strides = [1, 1]} : vector<8x84xf32> to vector<8x14xf32>
    %175 = vector.extract_strided_slice %174 {offsets = [0, 0], sizes = [8, 13], strides = [1, 1]} : vector<8x14xf32> to vector<8x13xf32>
    %176 = arith.maximumf %173, %175 : vector<8x13xf32>
    %177 = vector.extract_strided_slice %174 {offsets = [0, 1], sizes = [8, 13], strides = [1, 1]} : vector<8x14xf32> to vector<8x13xf32>
    %178 = arith.maximumf %176, %177 : vector<8x13xf32>
    %c0_124 = arith.constant 0 : index
    %c52 = arith.constant 52 : index
    %179 = vector.load %arg20[%c0_124, %c52] : memref<8x65xf32, #tpu.memory_space<vmem>>, vector<8x13xf32>
    tpu.vector_store %arg20[%c0_124, %c52], %178 {strides = array<i32>} : memref<8x65xf32, #tpu.memory_space<vmem>>, vector<8x13xf32>,
    %c0_125 = arith.constant 0 : index
    %c0_126 = arith.constant 0 : index
    %180 = vector.load %arg20[%c0_125, %c0_126] : memref<8x65xf32, #tpu.memory_space<vmem>>, vector<8x65xf32>
    %c0_127 = arith.constant 0 : index
    %c0_128 = arith.constant 0 : index
    %181 = vector.load %arg3[%c0_127, %c0_128] : memref<65x32xf32, #tpu.memory_space<vmem>>, vector<65x32xf32>
    %cst_129 = arith.constant dense<0.000000e+00> : vector<8x32xf32>
    %182 = tpu.matmul %180, %181, %cst_129 {dimension_numbers = #tpu.dot_dimension_numbers<[1], [0], [0], [1], [0, 0, 1, 1], [], []>} : vector<8x65xf32>, vector<65x32xf32>, vector<8x32xf32> -> vector<8x32xf32>
    %c0_130 = arith.constant 0 : index
    %c0_131 = arith.constant 0 : index
    %183 = vector.load %arg4[%c0_130, %c0_131] : memref<1x32xf32, #tpu.memory_space<vmem>>, vector<1x32xf32>
    %184 = vector.broadcast %183 : vector<1x32xf32> to vector<8x32xf32>
    %185 = arith.addf %182, %184 : vector<8x32xf32>
    %cst_132 = arith.constant 0.000000e+00 : f32
    %186 = vector.broadcast %cst_132 : f32 to vector<8x32xf32>
    %187 = arith.maximumf %185, %186 : vector<8x32xf32>
    %c0_133 = arith.constant 0 : index
    %c0_134 = arith.constant 0 : index
    %188 = vector.load %arg5[%c0_133, %c0_134] : memref<32x96xf32, #tpu.memory_space<vmem>>, vector<32x96xf32>
    %cst_135 = arith.constant dense<0.000000e+00> : vector<8x96xf32>
    %189 = tpu.matmul %187, %188, %cst_135 {dimension_numbers = #tpu.dot_dimension_numbers<[1], [0], [0], [1], [0, 0, 1, 1], [], []>} : vector<8x32xf32>, vector<32x96xf32>, vector<8x96xf32> -> vector<8x96xf32>
    %c0_136 = arith.constant 0 : index
    %c0_137 = arith.constant 0 : index
    %190 = vector.load %arg7[%c0_136, %c0_137] : memref<1x96xf32, #tpu.memory_space<vmem>>, vector<1x96xf32>
    %191 = vector.broadcast %190 : vector<1x96xf32> to vector<8x96xf32>
    %192 = arith.addf %189, %191 : vector<8x96xf32>
    %c0_138 = arith.constant 0 : index
    %c0_139 = arith.constant 0 : index
    %193 = vector.load %arg6[%c0_138, %c0_139] : memref<32x96xf32, #tpu.memory_space<vmem>>, vector<32x96xf32>
    %c0_140 = arith.constant 0 : index
    %c0_141 = arith.constant 0 : index
    %194 = vector.load %arg8[%c0_140, %c0_141] : memref<1x96xf32, #tpu.memory_space<vmem>>, vector<1x96xf32>
    %cst_142 = arith.constant 0.000000e+00 : f32
    %195 = vector.broadcast %cst_142 : f32 to vector<1x32xf32>
    %c0_143 = arith.constant 0 : index
    %c0_144 = arith.constant 0 : index
    %196 = vector.load %arg19[%c0_143, %c0_144] : memref<9x32xf32, #tpu.memory_space<vmem>>, vector<1x32xf32>
    tpu.vector_store %arg19[%c0_143, %c0_144], %195 {strides = array<i32>} : memref<9x32xf32, #tpu.memory_space<vmem>>, vector<1x32xf32>,
    %cst_145 = arith.constant 0.000000e+00 : f32
    %197 = vector.broadcast %cst_145 : f32 to vector<1x32xf32>
    %198 = vector.extract_strided_slice %192 {offsets = [0, 0], sizes = [1, 96], strides = [1, 1]} : vector<8x96xf32> to vector<1x96xf32>
    %cst_146 = arith.constant dense<0.000000e+00> : vector<1x96xf32>
    %199 = tpu.matmul %197, %193, %cst_146 {dimension_numbers = #tpu.dot_dimension_numbers<[1], [0], [0], [1], [0, 0, 1, 1], [], []>} : vector<1x32xf32>, vector<32x96xf32>, vector<1x96xf32> -> vector<1x96xf32>
    %200 = arith.addf %199, %194 : vector<1x96xf32>
    %201 = vector.extract_strided_slice %198 {offsets = [0, 0], sizes = [1, 32], strides = [1, 1]} : vector<1x96xf32> to vector<1x32xf32>
    %202 = vector.extract_strided_slice %200 {offsets = [0, 0], sizes = [1, 32], strides = [1, 1]} : vector<1x96xf32> to vector<1x32xf32>
    %203 = arith.addf %201, %202 : vector<1x32xf32>
    %204 = arith.negf %203 : vector<1x32xf32>
    %205 = math.exp %204 : vector<1x32xf32>
    %cst_147 = arith.constant 1.000000e+00 : f32
    %206 = vector.broadcast %cst_147 : f32 to vector<1x32xf32>
    %207 = arith.addf %206, %205 : vector<1x32xf32>
    %208 = arith.divf %206, %207 : vector<1x32xf32>
    %209 = vector.extract_strided_slice %198 {offsets = [0, 32], sizes = [1, 32], strides = [1, 1]} : vector<1x96xf32> to vector<1x32xf32>
    %210 = vector.extract_strided_slice %200 {offsets = [0, 32], sizes = [1, 32], strides = [1, 1]} : vector<1x96xf32> to vector<1x32xf32>
    %211 = arith.addf %209, %210 : vector<1x32xf32>
    %212 = arith.negf %211 : vector<1x32xf32>
    %213 = math.exp %212 : vector<1x32xf32>
    %cst_148 = arith.constant 1.000000e+00 : f32
    %214 = vector.broadcast %cst_148 : f32 to vector<1x32xf32>
    %215 = arith.addf %214, %213 : vector<1x32xf32>
    %216 = arith.divf %214, %215 : vector<1x32xf32>
    %217 = vector.extract_strided_slice %198 {offsets = [0, 64], sizes = [1, 32], strides = [1, 1]} : vector<1x96xf32> to vector<1x32xf32>
    %218 = vector.extract_strided_slice %200 {offsets = [0, 64], sizes = [1, 32], strides = [1, 1]} : vector<1x96xf32> to vector<1x32xf32>
    %219 = arith.mulf %208, %218 : vector<1x32xf32>
    %220 = arith.addf %217, %219 : vector<1x32xf32>
    %221 = math.tanh %220 : vector<1x32xf32>
    %cst_149 = arith.constant 1.000000e+00 : f32
    %222 = vector.broadcast %cst_149 : f32 to vector<1x32xf32>
    %223 = arith.subf %222, %216 : vector<1x32xf32>
    %224 = arith.mulf %223, %221 : vector<1x32xf32>
    %225 = arith.mulf %216, %197 : vector<1x32xf32>
    %226 = arith.addf %224, %225 : vector<1x32xf32>
    %c1_150 = arith.constant 1 : index
    %c0_151 = arith.constant 0 : index
    %227 = vector.load %arg19[%c1_150, %c0_151] : memref<9x32xf32, #tpu.memory_space<vmem>>, vector<1x32xf32>
    tpu.vector_store %arg19[%c1_150, %c0_151], %226 {strides = array<i32>} : memref<9x32xf32, #tpu.memory_space<vmem>>, vector<1x32xf32>,
    %228 = vector.extract_strided_slice %192 {offsets = [1, 0], sizes = [1, 96], strides = [1, 1]} : vector<8x96xf32> to vector<1x96xf32>
    %cst_152 = arith.constant dense<0.000000e+00> : vector<1x96xf32>
    %229 = tpu.matmul %226, %193, %cst_152 {dimension_numbers = #tpu.dot_dimension_numbers<[1], [0], [0], [1], [0, 0, 1, 1], [], []>} : vector<1x32xf32>, vector<32x96xf32>, vector<1x96xf32> -> vector<1x96xf32>
    %230 = arith.addf %229, %194 : vector<1x96xf32>
    %231 = vector.extract_strided_slice %228 {offsets = [0, 0], sizes = [1, 32], strides = [1, 1]} : vector<1x96xf32> to vector<1x32xf32>
    %232 = vector.extract_strided_slice %230 {offsets = [0, 0], sizes = [1, 32], strides = [1, 1]} : vector<1x96xf32> to vector<1x32xf32>
    %233 = arith.addf %231, %232 : vector<1x32xf32>
    %234 = arith.negf %233 : vector<1x32xf32>
    %235 = math.exp %234 : vector<1x32xf32>
    %cst_153 = arith.constant 1.000000e+00 : f32
    %236 = vector.broadcast %cst_153 : f32 to vector<1x32xf32>
    %237 = arith.addf %236, %235 : vector<1x32xf32>
    %238 = arith.divf %236, %237 : vector<1x32xf32>
    %239 = vector.extract_strided_slice %228 {offsets = [0, 32], sizes = [1, 32], strides = [1, 1]} : vector<1x96xf32> to vector<1x32xf32>
    %240 = vector.extract_strided_slice %230 {offsets = [0, 32], sizes = [1, 32], strides = [1, 1]} : vector<1x96xf32> to vector<1x32xf32>
    %241 = arith.addf %239, %240 : vector<1x32xf32>
    %242 = arith.negf %241 : vector<1x32xf32>
    %243 = math.exp %242 : vector<1x32xf32>
    %cst_154 = arith.constant 1.000000e+00 : f32
    %244 = vector.broadcast %cst_154 : f32 to vector<1x32xf32>
    %245 = arith.addf %244, %243 : vector<1x32xf32>
    %246 = arith.divf %244, %245 : vector<1x32xf32>
    %247 = vector.extract_strided_slice %228 {offsets = [0, 64], sizes = [1, 32], strides = [1, 1]} : vector<1x96xf32> to vector<1x32xf32>
    %248 = vector.extract_strided_slice %230 {offsets = [0, 64], sizes = [1, 32], strides = [1, 1]} : vector<1x96xf32> to vector<1x32xf32>
    %249 = arith.mulf %238, %248 : vector<1x32xf32>
    %250 = arith.addf %247, %249 : vector<1x32xf32>
    %251 = math.tanh %250 : vector<1x32xf32>
    %cst_155 = arith.constant 1.000000e+00 : f32
    %252 = vector.broadcast %cst_155 : f32 to vector<1x32xf32>
    %253 = arith.subf %252, %246 : vector<1x32xf32>
    %254 = arith.mulf %253, %251 : vector<1x32xf32>
    %255 = arith.mulf %246, %226 : vector<1x32xf32>
    %256 = arith.addf %254, %255 : vector<1x32xf32>
    %c2_156 = arith.constant 2 : index
    %c0_157 = arith.constant 0 : index
    %257 = vector.load %arg19[%c2_156, %c0_157] : memref<9x32xf32, #tpu.memory_space<vmem>>, vector<1x32xf32>
    tpu.vector_store %arg19[%c2_156, %c0_157], %256 {strides = array<i32>} : memref<9x32xf32, #tpu.memory_space<vmem>>, vector<1x32xf32>,
    %258 = vector.extract_strided_slice %192 {offsets = [2, 0], sizes = [1, 96], strides = [1, 1]} : vector<8x96xf32> to vector<1x96xf32>
    %cst_158 = arith.constant dense<0.000000e+00> : vector<1x96xf32>
    %259 = tpu.matmul %256, %193, %cst_158 {dimension_numbers = #tpu.dot_dimension_numbers<[1], [0], [0], [1], [0, 0, 1, 1], [], []>} : vector<1x32xf32>, vector<32x96xf32>, vector<1x96xf32> -> vector<1x96xf32>
    %260 = arith.addf %259, %194 : vector<1x96xf32>
    %261 = vector.extract_strided_slice %258 {offsets = [0, 0], sizes = [1, 32], strides = [1, 1]} : vector<1x96xf32> to vector<1x32xf32>
    %262 = vector.extract_strided_slice %260 {offsets = [0, 0], sizes = [1, 32], strides = [1, 1]} : vector<1x96xf32> to vector<1x32xf32>
    %263 = arith.addf %261, %262 : vector<1x32xf32>
    %264 = arith.negf %263 : vector<1x32xf32>
    %265 = math.exp %264 : vector<1x32xf32>
    %cst_159 = arith.constant 1.000000e+00 : f32
    %266 = vector.broadcast %cst_159 : f32 to vector<1x32xf32>
    %267 = arith.addf %266, %265 : vector<1x32xf32>
    %268 = arith.divf %266, %267 : vector<1x32xf32>
    %269 = vector.extract_strided_slice %258 {offsets = [0, 32], sizes = [1, 32], strides = [1, 1]} : vector<1x96xf32> to vector<1x32xf32>
    %270 = vector.extract_strided_slice %260 {offsets = [0, 32], sizes = [1, 32], strides = [1, 1]} : vector<1x96xf32> to vector<1x32xf32>
    %271 = arith.addf %269, %270 : vector<1x32xf32>
    %272 = arith.negf %271 : vector<1x32xf32>
    %273 = math.exp %272 : vector<1x32xf32>
    %cst_160 = arith.constant 1.000000e+00 : f32
    %274 = vector.broadcast %cst_160 : f32 to vector<1x32xf32>
    %275 = arith.addf %274, %273 : vector<1x32xf32>
    %276 = arith.divf %274, %275 : vector<1x32xf32>
    %277 = vector.extract_strided_slice %258 {offsets = [0, 64], sizes = [1, 32], strides = [1, 1]} : vector<1x96xf32> to vector<1x32xf32>
    %278 = vector.extract_strided_slice %260 {offsets = [0, 64], sizes = [1, 32], strides = [1, 1]} : vector<1x96xf32> to vector<1x32xf32>
    %279 = arith.mulf %268, %278 : vector<1x32xf32>
    %280 = arith.addf %277, %279 : vector<1x32xf32>
    %281 = math.tanh %280 : vector<1x32xf32>
    %cst_161 = arith.constant 1.000000e+00 : f32
    %282 = vector.broadcast %cst_161 : f32 to vector<1x32xf32>
    %283 = arith.subf %282, %276 : vector<1x32xf32>
    %284 = arith.mulf %283, %281 : vector<1x32xf32>
    %285 = arith.mulf %276, %256 : vector<1x32xf32>
    %286 = arith.addf %284, %285 : vector<1x32xf32>
    %c3_162 = arith.constant 3 : index
    %c0_163 = arith.constant 0 : index
    %287 = vector.load %arg19[%c3_162, %c0_163] : memref<9x32xf32, #tpu.memory_space<vmem>>, vector<1x32xf32>
    tpu.vector_store %arg19[%c3_162, %c0_163], %286 {strides = array<i32>} : memref<9x32xf32, #tpu.memory_space<vmem>>, vector<1x32xf32>,
    %288 = vector.extract_strided_slice %192 {offsets = [3, 0], sizes = [1, 96], strides = [1, 1]} : vector<8x96xf32> to vector<1x96xf32>
    %cst_164 = arith.constant dense<0.000000e+00> : vector<1x96xf32>
    %289 = tpu.matmul %286, %193, %cst_164 {dimension_numbers = #tpu.dot_dimension_numbers<[1], [0], [0], [1], [0, 0, 1, 1], [], []>} : vector<1x32xf32>, vector<32x96xf32>, vector<1x96xf32> -> vector<1x96xf32>
    %290 = arith.addf %289, %194 : vector<1x96xf32>
    %291 = vector.extract_strided_slice %288 {offsets = [0, 0], sizes = [1, 32], strides = [1, 1]} : vector<1x96xf32> to vector<1x32xf32>
    %292 = vector.extract_strided_slice %290 {offsets = [0, 0], sizes = [1, 32], strides = [1, 1]} : vector<1x96xf32> to vector<1x32xf32>
    %293 = arith.addf %291, %292 : vector<1x32xf32>
    %294 = arith.negf %293 : vector<1x32xf32>
    %295 = math.exp %294 : vector<1x32xf32>
    %cst_165 = arith.constant 1.000000e+00 : f32
    %296 = vector.broadcast %cst_165 : f32 to vector<1x32xf32>
    %297 = arith.addf %296, %295 : vector<1x32xf32>
    %298 = arith.divf %296, %297 : vector<1x32xf32>
    %299 = vector.extract_strided_slice %288 {offsets = [0, 32], sizes = [1, 32], strides = [1, 1]} : vector<1x96xf32> to vector<1x32xf32>
    %300 = vector.extract_strided_slice %290 {offsets = [0, 32], sizes = [1, 32], strides = [1, 1]} : vector<1x96xf32> to vector<1x32xf32>
    %301 = arith.addf %299, %300 : vector<1x32xf32>
    %302 = arith.negf %301 : vector<1x32xf32>
    %303 = math.exp %302 : vector<1x32xf32>
    %cst_166 = arith.constant 1.000000e+00 : f32
    %304 = vector.broadcast %cst_166 : f32 to vector<1x32xf32>
    %305 = arith.addf %304, %303 : vector<1x32xf32>
    %306 = arith.divf %304, %305 : vector<1x32xf32>
    %307 = vector.extract_strided_slice %288 {offsets = [0, 64], sizes = [1, 32], strides = [1, 1]} : vector<1x96xf32> to vector<1x32xf32>
    %308 = vector.extract_strided_slice %290 {offsets = [0, 64], sizes = [1, 32], strides = [1, 1]} : vector<1x96xf32> to vector<1x32xf32>
    %309 = arith.mulf %298, %308 : vector<1x32xf32>
    %310 = arith.addf %307, %309 : vector<1x32xf32>
    %311 = math.tanh %310 : vector<1x32xf32>
    %cst_167 = arith.constant 1.000000e+00 : f32
    %312 = vector.broadcast %cst_167 : f32 to vector<1x32xf32>
    %313 = arith.subf %312, %306 : vector<1x32xf32>
    %314 = arith.mulf %313, %311 : vector<1x32xf32>
    %315 = arith.mulf %306, %286 : vector<1x32xf32>
    %316 = arith.addf %314, %315 : vector<1x32xf32>
    %c4_168 = arith.constant 4 : index
    %c0_169 = arith.constant 0 : index
    %317 = vector.load %arg19[%c4_168, %c0_169] : memref<9x32xf32, #tpu.memory_space<vmem>>, vector<1x32xf32>
    tpu.vector_store %arg19[%c4_168, %c0_169], %316 {strides = array<i32>} : memref<9x32xf32, #tpu.memory_space<vmem>>, vector<1x32xf32>,
    %318 = vector.extract_strided_slice %192 {offsets = [4, 0], sizes = [1, 96], strides = [1, 1]} : vector<8x96xf32> to vector<1x96xf32>
    %cst_170 = arith.constant dense<0.000000e+00> : vector<1x96xf32>
    %319 = tpu.matmul %316, %193, %cst_170 {dimension_numbers = #tpu.dot_dimension_numbers<[1], [0], [0], [1], [0, 0, 1, 1], [], []>} : vector<1x32xf32>, vector<32x96xf32>, vector<1x96xf32> -> vector<1x96xf32>
    %320 = arith.addf %319, %194 : vector<1x96xf32>
    %321 = vector.extract_strided_slice %318 {offsets = [0, 0], sizes = [1, 32], strides = [1, 1]} : vector<1x96xf32> to vector<1x32xf32>
    %322 = vector.extract_strided_slice %320 {offsets = [0, 0], sizes = [1, 32], strides = [1, 1]} : vector<1x96xf32> to vector<1x32xf32>
    %323 = arith.addf %321, %322 : vector<1x32xf32>
    %324 = arith.negf %323 : vector<1x32xf32>
    %325 = math.exp %324 : vector<1x32xf32>
    %cst_171 = arith.constant 1.000000e+00 : f32
    %326 = vector.broadcast %cst_171 : f32 to vector<1x32xf32>
    %327 = arith.addf %326, %325 : vector<1x32xf32>
    %328 = arith.divf %326, %327 : vector<1x32xf32>
    %329 = vector.extract_strided_slice %318 {offsets = [0, 32], sizes = [1, 32], strides = [1, 1]} : vector<1x96xf32> to vector<1x32xf32>
    %330 = vector.extract_strided_slice %320 {offsets = [0, 32], sizes = [1, 32], strides = [1, 1]} : vector<1x96xf32> to vector<1x32xf32>
    %331 = arith.addf %329, %330 : vector<1x32xf32>
    %332 = arith.negf %331 : vector<1x32xf32>
    %333 = math.exp %332 : vector<1x32xf32>
    %cst_172 = arith.constant 1.000000e+00 : f32
    %334 = vector.broadcast %cst_172 : f32 to vector<1x32xf32>
    %335 = arith.addf %334, %333 : vector<1x32xf32>
    %336 = arith.divf %334, %335 : vector<1x32xf32>
    %337 = vector.extract_strided_slice %318 {offsets = [0, 64], sizes = [1, 32], strides = [1, 1]} : vector<1x96xf32> to vector<1x32xf32>
    %338 = vector.extract_strided_slice %320 {offsets = [0, 64], sizes = [1, 32], strides = [1, 1]} : vector<1x96xf32> to vector<1x32xf32>
    %339 = arith.mulf %328, %338 : vector<1x32xf32>
    %340 = arith.addf %337, %339 : vector<1x32xf32>
    %341 = math.tanh %340 : vector<1x32xf32>
    %cst_173 = arith.constant 1.000000e+00 : f32
    %342 = vector.broadcast %cst_173 : f32 to vector<1x32xf32>
    %343 = arith.subf %342, %336 : vector<1x32xf32>
    %344 = arith.mulf %343, %341 : vector<1x32xf32>
    %345 = arith.mulf %336, %316 : vector<1x32xf32>
    %346 = arith.addf %344, %345 : vector<1x32xf32>
    %c5_174 = arith.constant 5 : index
    %c0_175 = arith.constant 0 : index
    %347 = vector.load %arg19[%c5_174, %c0_175] : memref<9x32xf32, #tpu.memory_space<vmem>>, vector<1x32xf32>
    tpu.vector_store %arg19[%c5_174, %c0_175], %346 {strides = array<i32>} : memref<9x32xf32, #tpu.memory_space<vmem>>, vector<1x32xf32>,
    %348 = vector.extract_strided_slice %192 {offsets = [5, 0], sizes = [1, 96], strides = [1, 1]} : vector<8x96xf32> to vector<1x96xf32>
    %cst_176 = arith.constant dense<0.000000e+00> : vector<1x96xf32>
    %349 = tpu.matmul %346, %193, %cst_176 {dimension_numbers = #tpu.dot_dimension_numbers<[1], [0], [0], [1], [0, 0, 1, 1], [], []>} : vector<1x32xf32>, vector<32x96xf32>, vector<1x96xf32> -> vector<1x96xf32>
    %350 = arith.addf %349, %194 : vector<1x96xf32>
    %351 = vector.extract_strided_slice %348 {offsets = [0, 0], sizes = [1, 32], strides = [1, 1]} : vector<1x96xf32> to vector<1x32xf32>
    %352 = vector.extract_strided_slice %350 {offsets = [0, 0], sizes = [1, 32], strides = [1, 1]} : vector<1x96xf32> to vector<1x32xf32>
    %353 = arith.addf %351, %352 : vector<1x32xf32>
    %354 = arith.negf %353 : vector<1x32xf32>
    %355 = math.exp %354 : vector<1x32xf32>
    %cst_177 = arith.constant 1.000000e+00 : f32
    %356 = vector.broadcast %cst_177 : f32 to vector<1x32xf32>
    %357 = arith.addf %356, %355 : vector<1x32xf32>
    %358 = arith.divf %356, %357 : vector<1x32xf32>
    %359 = vector.extract_strided_slice %348 {offsets = [0, 32], sizes = [1, 32], strides = [1, 1]} : vector<1x96xf32> to vector<1x32xf32>
    %360 = vector.extract_strided_slice %350 {offsets = [0, 32], sizes = [1, 32], strides = [1, 1]} : vector<1x96xf32> to vector<1x32xf32>
    %361 = arith.addf %359, %360 : vector<1x32xf32>
    %362 = arith.negf %361 : vector<1x32xf32>
    %363 = math.exp %362 : vector<1x32xf32>
    %cst_178 = arith.constant 1.000000e+00 : f32
    %364 = vector.broadcast %cst_178 : f32 to vector<1x32xf32>
    %365 = arith.addf %364, %363 : vector<1x32xf32>
    %366 = arith.divf %364, %365 : vector<1x32xf32>
    %367 = vector.extract_strided_slice %348 {offsets = [0, 64], sizes = [1, 32], strides = [1, 1]} : vector<1x96xf32> to vector<1x32xf32>
    %368 = vector.extract_strided_slice %350 {offsets = [0, 64], sizes = [1, 32], strides = [1, 1]} : vector<1x96xf32> to vector<1x32xf32>
    %369 = arith.mulf %358, %368 : vector<1x32xf32>
    %370 = arith.addf %367, %369 : vector<1x32xf32>
    %371 = math.tanh %370 : vector<1x32xf32>
    %cst_179 = arith.constant 1.000000e+00 : f32
    %372 = vector.broadcast %cst_179 : f32 to vector<1x32xf32>
    %373 = arith.subf %372, %366 : vector<1x32xf32>
    %374 = arith.mulf %373, %371 : vector<1x32xf32>
    %375 = arith.mulf %366, %346 : vector<1x32xf32>
    %376 = arith.addf %374, %375 : vector<1x32xf32>
    %c6_180 = arith.constant 6 : index
    %c0_181 = arith.constant 0 : index
    %377 = vector.load %arg19[%c6_180, %c0_181] : memref<9x32xf32, #tpu.memory_space<vmem>>, vector<1x32xf32>
    tpu.vector_store %arg19[%c6_180, %c0_181], %376 {strides = array<i32>} : memref<9x32xf32, #tpu.memory_space<vmem>>, vector<1x32xf32>,
    %378 = vector.extract_strided_slice %192 {offsets = [6, 0], sizes = [1, 96], strides = [1, 1]} : vector<8x96xf32> to vector<1x96xf32>
    %cst_182 = arith.constant dense<0.000000e+00> : vector<1x96xf32>
    %379 = tpu.matmul %376, %193, %cst_182 {dimension_numbers = #tpu.dot_dimension_numbers<[1], [0], [0], [1], [0, 0, 1, 1], [], []>} : vector<1x32xf32>, vector<32x96xf32>, vector<1x96xf32> -> vector<1x96xf32>
    %380 = arith.addf %379, %194 : vector<1x96xf32>
    %381 = vector.extract_strided_slice %378 {offsets = [0, 0], sizes = [1, 32], strides = [1, 1]} : vector<1x96xf32> to vector<1x32xf32>
    %382 = vector.extract_strided_slice %380 {offsets = [0, 0], sizes = [1, 32], strides = [1, 1]} : vector<1x96xf32> to vector<1x32xf32>
    %383 = arith.addf %381, %382 : vector<1x32xf32>
    %384 = arith.negf %383 : vector<1x32xf32>
    %385 = math.exp %384 : vector<1x32xf32>
    %cst_183 = arith.constant 1.000000e+00 : f32
    %386 = vector.broadcast %cst_183 : f32 to vector<1x32xf32>
    %387 = arith.addf %386, %385 : vector<1x32xf32>
    %388 = arith.divf %386, %387 : vector<1x32xf32>
    %389 = vector.extract_strided_slice %378 {offsets = [0, 32], sizes = [1, 32], strides = [1, 1]} : vector<1x96xf32> to vector<1x32xf32>
    %390 = vector.extract_strided_slice %380 {offsets = [0, 32], sizes = [1, 32], strides = [1, 1]} : vector<1x96xf32> to vector<1x32xf32>
    %391 = arith.addf %389, %390 : vector<1x32xf32>
    %392 = arith.negf %391 : vector<1x32xf32>
    %393 = math.exp %392 : vector<1x32xf32>
    %cst_184 = arith.constant 1.000000e+00 : f32
    %394 = vector.broadcast %cst_184 : f32 to vector<1x32xf32>
    %395 = arith.addf %394, %393 : vector<1x32xf32>
    %396 = arith.divf %394, %395 : vector<1x32xf32>
    %397 = vector.extract_strided_slice %378 {offsets = [0, 64], sizes = [1, 32], strides = [1, 1]} : vector<1x96xf32> to vector<1x32xf32>
    %398 = vector.extract_strided_slice %380 {offsets = [0, 64], sizes = [1, 32], strides = [1, 1]} : vector<1x96xf32> to vector<1x32xf32>
    %399 = arith.mulf %388, %398 : vector<1x32xf32>
    %400 = arith.addf %397, %399 : vector<1x32xf32>
    %401 = math.tanh %400 : vector<1x32xf32>
    %cst_185 = arith.constant 1.000000e+00 : f32
    %402 = vector.broadcast %cst_185 : f32 to vector<1x32xf32>
    %403 = arith.subf %402, %396 : vector<1x32xf32>
    %404 = arith.mulf %403, %401 : vector<1x32xf32>
    %405 = arith.mulf %396, %376 : vector<1x32xf32>
    %406 = arith.addf %404, %405 : vector<1x32xf32>
    %c7_186 = arith.constant 7 : index
    %c0_187 = arith.constant 0 : index
    %407 = vector.load %arg19[%c7_186, %c0_187] : memref<9x32xf32, #tpu.memory_space<vmem>>, vector<1x32xf32>
    tpu.vector_store %arg19[%c7_186, %c0_187], %406 {strides = array<i32>} : memref<9x32xf32, #tpu.memory_space<vmem>>, vector<1x32xf32>,
    %408 = vector.extract_strided_slice %192 {offsets = [7, 0], sizes = [1, 96], strides = [1, 1]} : vector<8x96xf32> to vector<1x96xf32>
    %cst_188 = arith.constant dense<0.000000e+00> : vector<1x96xf32>
    %409 = tpu.matmul %406, %193, %cst_188 {dimension_numbers = #tpu.dot_dimension_numbers<[1], [0], [0], [1], [0, 0, 1, 1], [], []>} : vector<1x32xf32>, vector<32x96xf32>, vector<1x96xf32> -> vector<1x96xf32>
    %410 = arith.addf %409, %194 : vector<1x96xf32>
    %411 = vector.extract_strided_slice %408 {offsets = [0, 0], sizes = [1, 32], strides = [1, 1]} : vector<1x96xf32> to vector<1x32xf32>
    %412 = vector.extract_strided_slice %410 {offsets = [0, 0], sizes = [1, 32], strides = [1, 1]} : vector<1x96xf32> to vector<1x32xf32>
    %413 = arith.addf %411, %412 : vector<1x32xf32>
    %414 = arith.negf %413 : vector<1x32xf32>
    %415 = math.exp %414 : vector<1x32xf32>
    %cst_189 = arith.constant 1.000000e+00 : f32
    %416 = vector.broadcast %cst_189 : f32 to vector<1x32xf32>
    %417 = arith.addf %416, %415 : vector<1x32xf32>
    %418 = arith.divf %416, %417 : vector<1x32xf32>
    %419 = vector.extract_strided_slice %408 {offsets = [0, 32], sizes = [1, 32], strides = [1, 1]} : vector<1x96xf32> to vector<1x32xf32>
    %420 = vector.extract_strided_slice %410 {offsets = [0, 32], sizes = [1, 32], strides = [1, 1]} : vector<1x96xf32> to vector<1x32xf32>
    %421 = arith.addf %419, %420 : vector<1x32xf32>
    %422 = arith.negf %421 : vector<1x32xf32>
    %423 = math.exp %422 : vector<1x32xf32>
    %cst_190 = arith.constant 1.000000e+00 : f32
    %424 = vector.broadcast %cst_190 : f32 to vector<1x32xf32>
    %425 = arith.addf %424, %423 : vector<1x32xf32>
    %426 = arith.divf %424, %425 : vector<1x32xf32>
    %427 = vector.extract_strided_slice %408 {offsets = [0, 64], sizes = [1, 32], strides = [1, 1]} : vector<1x96xf32> to vector<1x32xf32>
    %428 = vector.extract_strided_slice %410 {offsets = [0, 64], sizes = [1, 32], strides = [1, 1]} : vector<1x96xf32> to vector<1x32xf32>
    %429 = arith.mulf %418, %428 : vector<1x32xf32>
    %430 = arith.addf %427, %429 : vector<1x32xf32>
    %431 = math.tanh %430 : vector<1x32xf32>
    %cst_191 = arith.constant 1.000000e+00 : f32
    %432 = vector.broadcast %cst_191 : f32 to vector<1x32xf32>
    %433 = arith.subf %432, %426 : vector<1x32xf32>
    %434 = arith.mulf %433, %431 : vector<1x32xf32>
    %435 = arith.mulf %426, %406 : vector<1x32xf32>
    %436 = arith.addf %434, %435 : vector<1x32xf32>
    %c8_192 = arith.constant 8 : index
    %c0_193 = arith.constant 0 : index
    %437 = vector.load %arg19[%c8_192, %c0_193] : memref<9x32xf32, #tpu.memory_space<vmem>>, vector<1x32xf32>
    tpu.vector_store %arg19[%c8_192, %c0_193], %436 {strides = array<i32>} : memref<9x32xf32, #tpu.memory_space<vmem>>, vector<1x32xf32>,
    %c0_194 = arith.constant 0 : index
    %c0_195 = arith.constant 0 : index
    %438 = vector.load %arg19[%c0_194, %c0_195] : memref<9x32xf32, #tpu.memory_space<vmem>>, vector<9x32xf32>
    %c0_196 = arith.constant 0 : index
    %c0_197 = arith.constant 0 : index
    %439 = vector.load %arg13[%c0_196, %c0_197] : memref<32x16xf32, #tpu.memory_space<vmem>>, vector<32x16xf32>
    %cst_198 = arith.constant dense<0.000000e+00> : vector<9x16xf32>
    %440 = tpu.matmul %438, %439, %cst_198 {dimension_numbers = #tpu.dot_dimension_numbers<[1], [0], [0], [1], [0, 0, 1, 1], [], []>} : vector<9x32xf32>, vector<32x16xf32>, vector<9x16xf32> -> vector<9x16xf32>
    %c0_199 = arith.constant 0 : index
    %c0_200 = arith.constant 0 : index
    %441 = vector.load %arg9[%c0_199, %c0_200] : memref<32x96xf32, #tpu.memory_space<vmem>>, vector<32x96xf32>
    %c0_201 = arith.constant 0 : index
    %c0_202 = arith.constant 0 : index
    %442 = vector.load %arg10[%c0_201, %c0_202] : memref<32x96xf32, #tpu.memory_space<vmem>>, vector<32x96xf32>
    %c0_203 = arith.constant 0 : index
    %c0_204 = arith.constant 0 : index
    %443 = vector.load %arg11[%c0_203, %c0_204] : memref<1x96xf32, #tpu.memory_space<vmem>>, vector<1x96xf32>
    %c0_205 = arith.constant 0 : index
    %c0_206 = arith.constant 0 : index
    %444 = vector.load %arg12[%c0_205, %c0_206] : memref<1x96xf32, #tpu.memory_space<vmem>>, vector<1x96xf32>
    %c0_207 = arith.constant 0 : index
    %c0_208 = arith.constant 0 : index
    %445 = vector.load %arg14[%c0_207, %c0_208] : memref<32x16xf32, #tpu.memory_space<vmem>>, vector<32x16xf32>
    %c0_209 = arith.constant 0 : index
    %c0_210 = arith.constant 0 : index
    %446 = vector.load %arg15[%c0_209, %c0_210] : memref<1x16xf32, #tpu.memory_space<vmem>>, vector<1x16xf32>
    %447 = tpu.iota {dimensions = array<i32: 0>} : vector<9x1xi32>
    %448 = arith.sitofp %447 : vector<9x1xi32> to vector<9x1xf32>
    %449 = tpu.iota {dimensions = array<i32: 0>} : vector<8x1xi32>
    %cst_211 = arith.constant dense<0.000000e+00> : vector<32xf32>
    %450 = vector.multi_reduction <add>, %187, %cst_211 [0] : vector<8x32xf32> to vector<32xf32>
    %451 = vector.shape_cast %450 : vector<32xf32> to vector<1x32xf32>
    %cst_212 = arith.constant 8.000000e+00 : f32
    %452 = vector.broadcast %cst_212 : f32 to vector<1x32xf32>
    %453 = arith.divf %451, %452 : vector<1x32xf32>
    %cst_213 = arith.constant 1.000000e+00 : f32
    %454 = vector.broadcast %cst_213 : f32 to vector<9x1xf32>
    %false = arith.constant false
    %455 = vector.broadcast %false : i1 to vector<1x1xi1>
    %cst_214 = arith.constant 0.000000e+00 : f32
    %456 = vector.broadcast %cst_214 : f32 to vector<1x1xf32>
    %cst_215 = arith.constant dense<0.000000e+00> : vector<1x96xf32>
    %457 = tpu.matmul %453, %441, %cst_215 {dimension_numbers = #tpu.dot_dimension_numbers<[1], [0], [0], [1], [0, 0, 1, 1], [], []>} : vector<1x32xf32>, vector<32x96xf32>, vector<1x96xf32> -> vector<1x96xf32>
    %458 = arith.addf %457, %443 : vector<1x96xf32>
    %cst_216 = arith.constant dense<0.000000e+00> : vector<1x96xf32>
    %459 = tpu.matmul %436, %442, %cst_216 {dimension_numbers = #tpu.dot_dimension_numbers<[1], [0], [0], [1], [0, 0, 1, 1], [], []>} : vector<1x32xf32>, vector<32x96xf32>, vector<1x96xf32> -> vector<1x96xf32>
    %460 = arith.addf %459, %444 : vector<1x96xf32>
    %461 = vector.extract_strided_slice %458 {offsets = [0, 0], sizes = [1, 32], strides = [1, 1]} : vector<1x96xf32> to vector<1x32xf32>
    %462 = vector.extract_strided_slice %460 {offsets = [0, 0], sizes = [1, 32], strides = [1, 1]} : vector<1x96xf32> to vector<1x32xf32>
    %463 = arith.addf %461, %462 : vector<1x32xf32>
    %464 = arith.negf %463 : vector<1x32xf32>
    %465 = math.exp %464 : vector<1x32xf32>
    %cst_217 = arith.constant 1.000000e+00 : f32
    %466 = vector.broadcast %cst_217 : f32 to vector<1x32xf32>
    %467 = arith.addf %466, %465 : vector<1x32xf32>
    %468 = arith.divf %466, %467 : vector<1x32xf32>
    %469 = vector.extract_strided_slice %458 {offsets = [0, 32], sizes = [1, 32], strides = [1, 1]} : vector<1x96xf32> to vector<1x32xf32>
    %470 = vector.extract_strided_slice %460 {offsets = [0, 32], sizes = [1, 32], strides = [1, 1]} : vector<1x96xf32> to vector<1x32xf32>
    %471 = arith.addf %469, %470 : vector<1x32xf32>
    %472 = arith.negf %471 : vector<1x32xf32>
    %473 = math.exp %472 : vector<1x32xf32>
    %cst_218 = arith.constant 1.000000e+00 : f32
    %474 = vector.broadcast %cst_218 : f32 to vector<1x32xf32>
    %475 = arith.addf %474, %473 : vector<1x32xf32>
    %476 = arith.divf %474, %475 : vector<1x32xf32>
    %477 = vector.extract_strided_slice %458 {offsets = [0, 64], sizes = [1, 32], strides = [1, 1]} : vector<1x96xf32> to vector<1x32xf32>
    %478 = vector.extract_strided_slice %460 {offsets = [0, 64], sizes = [1, 32], strides = [1, 1]} : vector<1x96xf32> to vector<1x32xf32>
    %479 = arith.mulf %468, %478 : vector<1x32xf32>
    %480 = arith.addf %477, %479 : vector<1x32xf32>
    %481 = math.tanh %480 : vector<1x32xf32>
    %cst_219 = arith.constant 1.000000e+00 : f32
    %482 = vector.broadcast %cst_219 : f32 to vector<1x32xf32>
    %483 = arith.subf %482, %476 : vector<1x32xf32>
    %484 = arith.mulf %483, %481 : vector<1x32xf32>
    %485 = arith.mulf %476, %436 : vector<1x32xf32>
    %486 = arith.addf %484, %485 : vector<1x32xf32>
    %cst_220 = arith.constant dense<0.000000e+00> : vector<1x16xf32>
    %487 = tpu.matmul %486, %445, %cst_220 {dimension_numbers = #tpu.dot_dimension_numbers<[1], [0], [0], [1], [0, 0, 1, 1], [], []>} : vector<1x32xf32>, vector<32x16xf32>, vector<1x16xf32> -> vector<1x16xf32>
    %488 = vector.broadcast %487 : vector<1x16xf32> to vector<9x16xf32>
    %489 = arith.addf %440, %488 : vector<9x16xf32>
    %490 = math.tanh %489 : vector<9x16xf32>
    %491 = vector.broadcast %446 : vector<1x16xf32> to vector<9x16xf32>
    %492 = arith.mulf %490, %491 : vector<9x16xf32>
    %cst_221 = arith.constant dense<0.000000e+00> : vector<9xf32>
    %493 = vector.multi_reduction <add>, %492, %cst_221 [1] : vector<9x16xf32> to vector<9xf32>
    %494 = vector.shape_cast %493 : vector<9xf32> to vector<9x1xf32>
    %cst_222 = arith.constant 0.000000e+00 : f32
    %495 = vector.broadcast %cst_222 : f32 to vector<9x1xf32>
    %496 = arith.maximumf %494, %495 : vector<9x1xf32>
    %497 = arith.mulf %496, %454 : vector<9x1xf32>
    %cst_223 = arith.constant dense<0xFF800000> : vector<1xf32>
    %498 = vector.multi_reduction <maximumf>, %497, %cst_223 [0] : vector<9x1xf32> to vector<1xf32>
    %499 = vector.shape_cast %498 : vector<1xf32> to vector<1x1xf32>
    %500 = vector.broadcast %499 : vector<1x1xf32> to vector<9x1xf32>
    %501 = arith.subf %497, %500 : vector<9x1xf32>
    %502 = math.exp %501 : vector<9x1xf32>
    %cst_224 = arith.constant dense<0.000000e+00> : vector<1xf32>
    %503 = vector.multi_reduction <add>, %502, %cst_224 [0] : vector<9x1xf32> to vector<1xf32>
    %504 = vector.shape_cast %503 : vector<1xf32> to vector<1x1xf32>
    %505 = vector.broadcast %504 : vector<1x1xf32> to vector<9x1xf32>
    %506 = arith.divf %502, %505 : vector<9x1xf32>
    %cst_225 = arith.constant dense<0xFF800000> : vector<1xf32>
    %507 = vector.multi_reduction <maximumf>, %506, %cst_225 [0] : vector<9x1xf32> to vector<1xf32>
    %508 = vector.shape_cast %507 : vector<1xf32> to vector<1x1xf32>
    %509 = vector.broadcast %508 : vector<1x1xf32> to vector<9x1xf32>
    %510 = arith.cmpf oeq, %506, %509 : vector<9x1xf32>
    %cst_226 = arith.constant 9.000000e+00 : f32
    %511 = vector.broadcast %cst_226 : f32 to vector<9x1xf32>
    %512 = arith.select %510, %448, %511 : vector<9x1xi1>, vector<9x1xf32>
    %cst_227 = arith.constant dense<0x7F800000> : vector<1xf32>
    %513 = vector.multi_reduction <minimumf>, %512, %cst_227 [0] : vector<9x1xf32> to vector<1xf32>
    %514 = vector.shape_cast %513 : vector<1xf32> to vector<1x1xf32>
    %515 = arith.fptosi %514 : vector<1x1xf32> to vector<1x1xi32>
    %516 = vector.broadcast %515 : vector<1x1xi32> to vector<9x1xi32>
    %517 = arith.cmpi eq, %447, %516 : vector<9x1xi32>
    %cst_228 = arith.constant 0.000000e+00 : f32
    %518 = vector.broadcast %cst_228 : f32 to vector<9x1xf32>
    %519 = arith.select %517, %506, %518 : vector<9x1xi1>, vector<9x1xf32>
    %cst_229 = arith.constant dense<0.000000e+00> : vector<1xf32>
    %520 = vector.multi_reduction <add>, %519, %cst_229 [0] : vector<9x1xf32> to vector<1xf32>
    %521 = vector.shape_cast %520 : vector<1xf32> to vector<1x1xf32>
    %522 = math.log %521 : vector<1x1xf32>
    %cst_230 = arith.constant dense<true> : vector<1x1xi1>
    %523 = arith.xori %455, %cst_230 : vector<1x1xi1>
    %c-1_i32 = arith.constant -1 : i32
    %524 = vector.broadcast %c-1_i32 : i32 to vector<1x1xi32>
    %525 = arith.select %523, %515, %524 : vector<1x1xi1>, vector<1x1xi32>
    %c0_231 = arith.constant 0 : index
    %c0_232 = arith.constant 0 : index
    %526 = vector.load %arg16[%c0_231, %c0_232] : memref<1x4xi32, #tpu.memory_space<vmem>>, vector<1x1xi32>
    tpu.vector_store %arg16[%c0_231, %c0_232], %525 {strides = array<i32>} : memref<1x4xi32, #tpu.memory_space<vmem>>, vector<1x1xi32>,
    %cst_233 = arith.constant 0.000000e+00 : f32
    %527 = vector.broadcast %cst_233 : f32 to vector<1x1xf32>
    %528 = arith.select %523, %522, %527 : vector<1x1xi1>, vector<1x1xf32>
    %529 = arith.addf %456, %528 : vector<1x1xf32>
    %530 = vector.broadcast %515 : vector<1x1xi32> to vector<9x1xi32>
    %531 = arith.cmpi eq, %447, %530 : vector<9x1xi32>
    %532 = vector.broadcast %523 : vector<1x1xi1> to vector<9x1xi1>
    %533 = arith.andi %532, %531 : vector<9x1xi1>
    %cst_234 = arith.constant 9.99999996E-13 : f32
    %534 = vector.broadcast %cst_234 : f32 to vector<9x1xf32>
    %535 = arith.select %533, %534, %454 : vector<9x1xi1>, vector<9x1xf32>
    %c1_i32 = arith.constant 1 : i32
    %536 = vector.broadcast %c1_i32 : i32 to vector<1x1xi32>
    %537 = arith.subi %515, %536 : vector<1x1xi32>
    %538 = vector.broadcast %537 : vector<1x1xi32> to vector<8x1xi32>
    %539 = arith.cmpi eq, %449, %538 : vector<8x1xi32>
    %cst_235 = arith.constant 0.000000e+00 : f32
    %540 = vector.shape_cast %539 : vector<8x1xi1> to vector<8x1xi1>
    %541 = vector.broadcast %540 : vector<8x1xi1> to vector<8x32xi1>
    %542 = vector.broadcast %cst_235 : f32 to vector<8x32xf32>
    %543 = arith.select %541, %187, %542 : vector<8x32xi1>, vector<8x32xf32>
    %cst_236 = arith.constant dense<0.000000e+00> : vector<32xf32>
    %544 = vector.multi_reduction <add>, %543, %cst_236 [0] : vector<8x32xf32> to vector<32xf32>
    %545 = vector.shape_cast %544 : vector<32xf32> to vector<1x32xf32>
    %c0_i32 = arith.constant 0 : i32
    %546 = vector.broadcast %c0_i32 : i32 to vector<1x1xi32>
    %547 = arith.cmpi sgt, %515, %546 : vector<1x1xi32>
    %548 = arith.andi %523, %547 : vector<1x1xi1>
    %549 = vector.shape_cast %548 : vector<1x1xi1> to vector<1x1xi1>
    %550 = vector.broadcast %549 : vector<1x1xi1> to vector<1x32xi1>
    %551 = arith.select %550, %545, %453 : vector<1x32xi1>, vector<1x32xf32>
    %552 = vector.shape_cast %523 : vector<1x1xi1> to vector<1x1xi1>
    %553 = vector.broadcast %552 : vector<1x1xi1> to vector<1x32xi1>
    %554 = arith.select %553, %486, %436 : vector<1x32xi1>, vector<1x32xf32>
    %c0_i32_237 = arith.constant 0 : i32
    %555 = vector.broadcast %c0_i32_237 : i32 to vector<1x1xi32>
    %556 = arith.cmpi eq, %515, %555 : vector<1x1xi32>
    %557 = arith.ori %455, %556 : vector<1x1xi1>
    %cst_238 = arith.constant dense<0.000000e+00> : vector<1x96xf32>
    %558 = tpu.matmul %551, %441, %cst_238 {dimension_numbers = #tpu.dot_dimension_numbers<[1], [0], [0], [1], [0, 0, 1, 1], [], []>} : vector<1x32xf32>, vector<32x96xf32>, vector<1x96xf32> -> vector<1x96xf32>
    %559 = arith.addf %558, %443 : vector<1x96xf32>
    %cst_239 = arith.constant dense<0.000000e+00> : vector<1x96xf32>
    %560 = tpu.matmul %554, %442, %cst_239 {dimension_numbers = #tpu.dot_dimension_numbers<[1], [0], [0], [1], [0, 0, 1, 1], [], []>} : vector<1x32xf32>, vector<32x96xf32>, vector<1x96xf32> -> vector<1x96xf32>
    %561 = arith.addf %560, %444 : vector<1x96xf32>
    %562 = vector.extract_strided_slice %559 {offsets = [0, 0], sizes = [1, 32], strides = [1, 1]} : vector<1x96xf32> to vector<1x32xf32>
    %563 = vector.extract_strided_slice %561 {offsets = [0, 0], sizes = [1, 32], strides = [1, 1]} : vector<1x96xf32> to vector<1x32xf32>
    %564 = arith.addf %562, %563 : vector<1x32xf32>
    %565 = arith.negf %564 : vector<1x32xf32>
    %566 = math.exp %565 : vector<1x32xf32>
    %cst_240 = arith.constant 1.000000e+00 : f32
    %567 = vector.broadcast %cst_240 : f32 to vector<1x32xf32>
    %568 = arith.addf %567, %566 : vector<1x32xf32>
    %569 = arith.divf %567, %568 : vector<1x32xf32>
    %570 = vector.extract_strided_slice %559 {offsets = [0, 32], sizes = [1, 32], strides = [1, 1]} : vector<1x96xf32> to vector<1x32xf32>
    %571 = vector.extract_strided_slice %561 {offsets = [0, 32], sizes = [1, 32], strides = [1, 1]} : vector<1x96xf32> to vector<1x32xf32>
    %572 = arith.addf %570, %571 : vector<1x32xf32>
    %573 = arith.negf %572 : vector<1x32xf32>
    %574 = math.exp %573 : vector<1x32xf32>
    %cst_241 = arith.constant 1.000000e+00 : f32
    %575 = vector.broadcast %cst_241 : f32 to vector<1x32xf32>
    %576 = arith.addf %575, %574 : vector<1x32xf32>
    %577 = arith.divf %575, %576 : vector<1x32xf32>
    %578 = vector.extract_strided_slice %559 {offsets = [0, 64], sizes = [1, 32], strides = [1, 1]} : vector<1x96xf32> to vector<1x32xf32>
    %579 = vector.extract_strided_slice %561 {offsets = [0, 64], sizes = [1, 32], strides = [1, 1]} : vector<1x96xf32> to vector<1x32xf32>
    %580 = arith.mulf %569, %579 : vector<1x32xf32>
    %581 = arith.addf %578, %580 : vector<1x32xf32>
    %582 = math.tanh %581 : vector<1x32xf32>
    %cst_242 = arith.constant 1.000000e+00 : f32
    %583 = vector.broadcast %cst_242 : f32 to vector<1x32xf32>
    %584 = arith.subf %583, %577 : vector<1x32xf32>
    %585 = arith.mulf %584, %582 : vector<1x32xf32>
    %586 = arith.mulf %577, %554 : vector<1x32xf32>
    %587 = arith.addf %585, %586 : vector<1x32xf32>
    %cst_243 = arith.constant dense<0.000000e+00> : vector<1x16xf32>
    %588 = tpu.matmul %587, %445, %cst_243 {dimension_numbers = #tpu.dot_dimension_numbers<[1], [0], [0], [1], [0, 0, 1, 1], [], []>} : vector<1x32xf32>, vector<32x16xf32>, vector<1x16xf32> -> vector<1x16xf32>
    %589 = vector.broadcast %588 : vector<1x16xf32> to vector<9x16xf32>
    %590 = arith.addf %440, %589 : vector<9x16xf32>
    %591 = math.tanh %590 : vector<9x16xf32>
    %592 = vector.broadcast %446 : vector<1x16xf32> to vector<9x16xf32>
    %593 = arith.mulf %591, %592 : vector<9x16xf32>
    %cst_244 = arith.constant dense<0.000000e+00> : vector<9xf32>
    %594 = vector.multi_reduction <add>, %593, %cst_244 [1] : vector<9x16xf32> to vector<9xf32>
    %595 = vector.shape_cast %594 : vector<9xf32> to vector<9x1xf32>
    %cst_245 = arith.constant 0.000000e+00 : f32
    %596 = vector.broadcast %cst_245 : f32 to vector<9x1xf32>
    %597 = arith.maximumf %595, %596 : vector<9x1xf32>
    %598 = arith.mulf %597, %535 : vector<9x1xf32>
    %cst_246 = arith.constant dense<0xFF800000> : vector<1xf32>
    %599 = vector.multi_reduction <maximumf>, %598, %cst_246 [0] : vector<9x1xf32> to vector<1xf32>
    %600 = vector.shape_cast %599 : vector<1xf32> to vector<1x1xf32>
    %601 = vector.broadcast %600 : vector<1x1xf32> to vector<9x1xf32>
    %602 = arith.subf %598, %601 : vector<9x1xf32>
    %603 = math.exp %602 : vector<9x1xf32>
    %cst_247 = arith.constant dense<0.000000e+00> : vector<1xf32>
    %604 = vector.multi_reduction <add>, %603, %cst_247 [0] : vector<9x1xf32> to vector<1xf32>
    %605 = vector.shape_cast %604 : vector<1xf32> to vector<1x1xf32>
    %606 = vector.broadcast %605 : vector<1x1xf32> to vector<9x1xf32>
    %607 = arith.divf %603, %606 : vector<9x1xf32>
    %cst_248 = arith.constant dense<0xFF800000> : vector<1xf32>
    %608 = vector.multi_reduction <maximumf>, %607, %cst_248 [0] : vector<9x1xf32> to vector<1xf32>
    %609 = vector.shape_cast %608 : vector<1xf32> to vector<1x1xf32>
    %610 = vector.broadcast %609 : vector<1x1xf32> to vector<9x1xf32>
    %611 = arith.cmpf oeq, %607, %610 : vector<9x1xf32>
    %cst_249 = arith.constant 9.000000e+00 : f32
    %612 = vector.broadcast %cst_249 : f32 to vector<9x1xf32>
    %613 = arith.select %611, %448, %612 : vector<9x1xi1>, vector<9x1xf32>
    %cst_250 = arith.constant dense<0x7F800000> : vector<1xf32>
    %614 = vector.multi_reduction <minimumf>, %613, %cst_250 [0] : vector<9x1xf32> to vector<1xf32>
    %615 = vector.shape_cast %614 : vector<1xf32> to vector<1x1xf32>
    %616 = arith.fptosi %615 : vector<1x1xf32> to vector<1x1xi32>
    %617 = vector.broadcast %616 : vector<1x1xi32> to vector<9x1xi32>
    %618 = arith.cmpi eq, %447, %617 : vector<9x1xi32>
    %cst_251 = arith.constant 0.000000e+00 : f32
    %619 = vector.broadcast %cst_251 : f32 to vector<9x1xf32>
    %620 = arith.select %618, %607, %619 : vector<9x1xi1>, vector<9x1xf32>
    %cst_252 = arith.constant dense<0.000000e+00> : vector<1xf32>
    %621 = vector.multi_reduction <add>, %620, %cst_252 [0] : vector<9x1xf32> to vector<1xf32>
    %622 = vector.shape_cast %621 : vector<1xf32> to vector<1x1xf32>
    %623 = math.log %622 : vector<1x1xf32>
    %cst_253 = arith.constant dense<true> : vector<1x1xi1>
    %624 = arith.xori %557, %cst_253 : vector<1x1xi1>
    %c-1_i32_254 = arith.constant -1 : i32
    %625 = vector.broadcast %c-1_i32_254 : i32 to vector<1x1xi32>
    %626 = arith.select %624, %616, %625 : vector<1x1xi1>, vector<1x1xi32>
    %c0_255 = arith.constant 0 : index
    %c1_256 = arith.constant 1 : index
    %627 = vector.load %arg16[%c0_255, %c1_256] : memref<1x4xi32, #tpu.memory_space<vmem>>, vector<1x1xi32>
    tpu.vector_store %arg16[%c0_255, %c1_256], %626 {strides = array<i32>} : memref<1x4xi32, #tpu.memory_space<vmem>>, vector<1x1xi32>,
    %cst_257 = arith.constant 0.000000e+00 : f32
    %628 = vector.broadcast %cst_257 : f32 to vector<1x1xf32>
    %629 = arith.select %624, %623, %628 : vector<1x1xi1>, vector<1x1xf32>
    %630 = arith.addf %529, %629 : vector<1x1xf32>
    %631 = vector.broadcast %616 : vector<1x1xi32> to vector<9x1xi32>
    %632 = arith.cmpi eq, %447, %631 : vector<9x1xi32>
    %633 = vector.broadcast %624 : vector<1x1xi1> to vector<9x1xi1>
    %634 = arith.andi %633, %632 : vector<9x1xi1>
    %cst_258 = arith.constant 9.99999996E-13 : f32
    %635 = vector.broadcast %cst_258 : f32 to vector<9x1xf32>
    %636 = arith.select %634, %635, %535 : vector<9x1xi1>, vector<9x1xf32>
    %c1_i32_259 = arith.constant 1 : i32
    %637 = vector.broadcast %c1_i32_259 : i32 to vector<1x1xi32>
    %638 = arith.subi %616, %637 : vector<1x1xi32>
    %639 = vector.broadcast %638 : vector<1x1xi32> to vector<8x1xi32>
    %640 = arith.cmpi eq, %449, %639 : vector<8x1xi32>
    %cst_260 = arith.constant 0.000000e+00 : f32
    %641 = vector.shape_cast %640 : vector<8x1xi1> to vector<8x1xi1>
    %642 = vector.broadcast %641 : vector<8x1xi1> to vector<8x32xi1>
    %643 = vector.broadcast %cst_260 : f32 to vector<8x32xf32>
    %644 = arith.select %642, %187, %643 : vector<8x32xi1>, vector<8x32xf32>
    %cst_261 = arith.constant dense<0.000000e+00> : vector<32xf32>
    %645 = vector.multi_reduction <add>, %644, %cst_261 [0] : vector<8x32xf32> to vector<32xf32>
    %646 = vector.shape_cast %645 : vector<32xf32> to vector<1x32xf32>
    %c0_i32_262 = arith.constant 0 : i32
    %647 = vector.broadcast %c0_i32_262 : i32 to vector<1x1xi32>
    %648 = arith.cmpi sgt, %616, %647 : vector<1x1xi32>
    %649 = arith.andi %624, %648 : vector<1x1xi1>
    %650 = vector.shape_cast %649 : vector<1x1xi1> to vector<1x1xi1>
    %651 = vector.broadcast %650 : vector<1x1xi1> to vector<1x32xi1>
    %652 = arith.select %651, %646, %551 : vector<1x32xi1>, vector<1x32xf32>
    %653 = vector.shape_cast %624 : vector<1x1xi1> to vector<1x1xi1>
    %654 = vector.broadcast %653 : vector<1x1xi1> to vector<1x32xi1>
    %655 = arith.select %654, %587, %554 : vector<1x32xi1>, vector<1x32xf32>
    %c0_i32_263 = arith.constant 0 : i32
    %656 = vector.broadcast %c0_i32_263 : i32 to vector<1x1xi32>
    %657 = arith.cmpi eq, %616, %656 : vector<1x1xi32>
    %658 = arith.ori %557, %657 : vector<1x1xi1>
    %cst_264 = arith.constant dense<0.000000e+00> : vector<1x96xf32>
    %659 = tpu.matmul %652, %441, %cst_264 {dimension_numbers = #tpu.dot_dimension_numbers<[1], [0], [0], [1], [0, 0, 1, 1], [], []>} : vector<1x32xf32>, vector<32x96xf32>, vector<1x96xf32> -> vector<1x96xf32>
    %660 = arith.addf %659, %443 : vector<1x96xf32>
    %cst_265 = arith.constant dense<0.000000e+00> : vector<1x96xf32>
    %661 = tpu.matmul %655, %442, %cst_265 {dimension_numbers = #tpu.dot_dimension_numbers<[1], [0], [0], [1], [0, 0, 1, 1], [], []>} : vector<1x32xf32>, vector<32x96xf32>, vector<1x96xf32> -> vector<1x96xf32>
    %662 = arith.addf %661, %444 : vector<1x96xf32>
    %663 = vector.extract_strided_slice %660 {offsets = [0, 0], sizes = [1, 32], strides = [1, 1]} : vector<1x96xf32> to vector<1x32xf32>
    %664 = vector.extract_strided_slice %662 {offsets = [0, 0], sizes = [1, 32], strides = [1, 1]} : vector<1x96xf32> to vector<1x32xf32>
    %665 = arith.addf %663, %664 : vector<1x32xf32>
    %666 = arith.negf %665 : vector<1x32xf32>
    %667 = math.exp %666 : vector<1x32xf32>
    %cst_266 = arith.constant 1.000000e+00 : f32
    %668 = vector.broadcast %cst_266 : f32 to vector<1x32xf32>
    %669 = arith.addf %668, %667 : vector<1x32xf32>
    %670 = arith.divf %668, %669 : vector<1x32xf32>
    %671 = vector.extract_strided_slice %660 {offsets = [0, 32], sizes = [1, 32], strides = [1, 1]} : vector<1x96xf32> to vector<1x32xf32>
    %672 = vector.extract_strided_slice %662 {offsets = [0, 32], sizes = [1, 32], strides = [1, 1]} : vector<1x96xf32> to vector<1x32xf32>
    %673 = arith.addf %671, %672 : vector<1x32xf32>
    %674 = arith.negf %673 : vector<1x32xf32>
    %675 = math.exp %674 : vector<1x32xf32>
    %cst_267 = arith.constant 1.000000e+00 : f32
    %676 = vector.broadcast %cst_267 : f32 to vector<1x32xf32>
    %677 = arith.addf %676, %675 : vector<1x32xf32>
    %678 = arith.divf %676, %677 : vector<1x32xf32>
    %679 = vector.extract_strided_slice %660 {offsets = [0, 64], sizes = [1, 32], strides = [1, 1]} : vector<1x96xf32> to vector<1x32xf32>
    %680 = vector.extract_strided_slice %662 {offsets = [0, 64], sizes = [1, 32], strides = [1, 1]} : vector<1x96xf32> to vector<1x32xf32>
    %681 = arith.mulf %670, %680 : vector<1x32xf32>
    %682 = arith.addf %679, %681 : vector<1x32xf32>
    %683 = math.tanh %682 : vector<1x32xf32>
    %cst_268 = arith.constant 1.000000e+00 : f32
    %684 = vector.broadcast %cst_268 : f32 to vector<1x32xf32>
    %685 = arith.subf %684, %678 : vector<1x32xf32>
    %686 = arith.mulf %685, %683 : vector<1x32xf32>
    %687 = arith.mulf %678, %655 : vector<1x32xf32>
    %688 = arith.addf %686, %687 : vector<1x32xf32>
    %cst_269 = arith.constant dense<0.000000e+00> : vector<1x16xf32>
    %689 = tpu.matmul %688, %445, %cst_269 {dimension_numbers = #tpu.dot_dimension_numbers<[1], [0], [0], [1], [0, 0, 1, 1], [], []>} : vector<1x32xf32>, vector<32x16xf32>, vector<1x16xf32> -> vector<1x16xf32>
    %690 = vector.broadcast %689 : vector<1x16xf32> to vector<9x16xf32>
    %691 = arith.addf %440, %690 : vector<9x16xf32>
    %692 = math.tanh %691 : vector<9x16xf32>
    %693 = vector.broadcast %446 : vector<1x16xf32> to vector<9x16xf32>
    %694 = arith.mulf %692, %693 : vector<9x16xf32>
    %cst_270 = arith.constant dense<0.000000e+00> : vector<9xf32>
    %695 = vector.multi_reduction <add>, %694, %cst_270 [1] : vector<9x16xf32> to vector<9xf32>
    %696 = vector.shape_cast %695 : vector<9xf32> to vector<9x1xf32>
    %cst_271 = arith.constant 0.000000e+00 : f32
    %697 = vector.broadcast %cst_271 : f32 to vector<9x1xf32>
    %698 = arith.maximumf %696, %697 : vector<9x1xf32>
    %699 = arith.mulf %698, %636 : vector<9x1xf32>
    %cst_272 = arith.constant dense<0xFF800000> : vector<1xf32>
    %700 = vector.multi_reduction <maximumf>, %699, %cst_272 [0] : vector<9x1xf32> to vector<1xf32>
    %701 = vector.shape_cast %700 : vector<1xf32> to vector<1x1xf32>
    %702 = vector.broadcast %701 : vector<1x1xf32> to vector<9x1xf32>
    %703 = arith.subf %699, %702 : vector<9x1xf32>
    %704 = math.exp %703 : vector<9x1xf32>
    %cst_273 = arith.constant dense<0.000000e+00> : vector<1xf32>
    %705 = vector.multi_reduction <add>, %704, %cst_273 [0] : vector<9x1xf32> to vector<1xf32>
    %706 = vector.shape_cast %705 : vector<1xf32> to vector<1x1xf32>
    %707 = vector.broadcast %706 : vector<1x1xf32> to vector<9x1xf32>
    %708 = arith.divf %704, %707 : vector<9x1xf32>
    %cst_274 = arith.constant dense<0xFF800000> : vector<1xf32>
    %709 = vector.multi_reduction <maximumf>, %708, %cst_274 [0] : vector<9x1xf32> to vector<1xf32>
    %710 = vector.shape_cast %709 : vector<1xf32> to vector<1x1xf32>
    %711 = vector.broadcast %710 : vector<1x1xf32> to vector<9x1xf32>
    %712 = arith.cmpf oeq, %708, %711 : vector<9x1xf32>
    %cst_275 = arith.constant 9.000000e+00 : f32
    %713 = vector.broadcast %cst_275 : f32 to vector<9x1xf32>
    %714 = arith.select %712, %448, %713 : vector<9x1xi1>, vector<9x1xf32>
    %cst_276 = arith.constant dense<0x7F800000> : vector<1xf32>
    %715 = vector.multi_reduction <minimumf>, %714, %cst_276 [0] : vector<9x1xf32> to vector<1xf32>
    %716 = vector.shape_cast %715 : vector<1xf32> to vector<1x1xf32>
    %717 = arith.fptosi %716 : vector<1x1xf32> to vector<1x1xi32>
    %718 = vector.broadcast %717 : vector<1x1xi32> to vector<9x1xi32>
    %719 = arith.cmpi eq, %447, %718 : vector<9x1xi32>
    %cst_277 = arith.constant 0.000000e+00 : f32
    %720 = vector.broadcast %cst_277 : f32 to vector<9x1xf32>
    %721 = arith.select %719, %708, %720 : vector<9x1xi1>, vector<9x1xf32>
    %cst_278 = arith.constant dense<0.000000e+00> : vector<1xf32>
    %722 = vector.multi_reduction <add>, %721, %cst_278 [0] : vector<9x1xf32> to vector<1xf32>
    %723 = vector.shape_cast %722 : vector<1xf32> to vector<1x1xf32>
    %724 = math.log %723 : vector<1x1xf32>
    %cst_279 = arith.constant dense<true> : vector<1x1xi1>
    %725 = arith.xori %658, %cst_279 : vector<1x1xi1>
    %c-1_i32_280 = arith.constant -1 : i32
    %726 = vector.broadcast %c-1_i32_280 : i32 to vector<1x1xi32>
    %727 = arith.select %725, %717, %726 : vector<1x1xi1>, vector<1x1xi32>
    %c0_281 = arith.constant 0 : index
    %c2_282 = arith.constant 2 : index
    %728 = vector.load %arg16[%c0_281, %c2_282] : memref<1x4xi32, #tpu.memory_space<vmem>>, vector<1x1xi32>
    tpu.vector_store %arg16[%c0_281, %c2_282], %727 {strides = array<i32>} : memref<1x4xi32, #tpu.memory_space<vmem>>, vector<1x1xi32>,
    %cst_283 = arith.constant 0.000000e+00 : f32
    %729 = vector.broadcast %cst_283 : f32 to vector<1x1xf32>
    %730 = arith.select %725, %724, %729 : vector<1x1xi1>, vector<1x1xf32>
    %731 = arith.addf %630, %730 : vector<1x1xf32>
    %732 = vector.broadcast %717 : vector<1x1xi32> to vector<9x1xi32>
    %733 = arith.cmpi eq, %447, %732 : vector<9x1xi32>
    %734 = vector.broadcast %725 : vector<1x1xi1> to vector<9x1xi1>
    %735 = arith.andi %734, %733 : vector<9x1xi1>
    %cst_284 = arith.constant 9.99999996E-13 : f32
    %736 = vector.broadcast %cst_284 : f32 to vector<9x1xf32>
    %737 = arith.select %735, %736, %636 : vector<9x1xi1>, vector<9x1xf32>
    %c1_i32_285 = arith.constant 1 : i32
    %738 = vector.broadcast %c1_i32_285 : i32 to vector<1x1xi32>
    %739 = arith.subi %717, %738 : vector<1x1xi32>
    %740 = vector.broadcast %739 : vector<1x1xi32> to vector<8x1xi32>
    %741 = arith.cmpi eq, %449, %740 : vector<8x1xi32>
    %cst_286 = arith.constant 0.000000e+00 : f32
    %742 = vector.shape_cast %741 : vector<8x1xi1> to vector<8x1xi1>
    %743 = vector.broadcast %742 : vector<8x1xi1> to vector<8x32xi1>
    %744 = vector.broadcast %cst_286 : f32 to vector<8x32xf32>
    %745 = arith.select %743, %187, %744 : vector<8x32xi1>, vector<8x32xf32>
    %cst_287 = arith.constant dense<0.000000e+00> : vector<32xf32>
    %746 = vector.multi_reduction <add>, %745, %cst_287 [0] : vector<8x32xf32> to vector<32xf32>
    %747 = vector.shape_cast %746 : vector<32xf32> to vector<1x32xf32>
    %c0_i32_288 = arith.constant 0 : i32
    %748 = vector.broadcast %c0_i32_288 : i32 to vector<1x1xi32>
    %749 = arith.cmpi sgt, %717, %748 : vector<1x1xi32>
    %750 = arith.andi %725, %749 : vector<1x1xi1>
    %751 = vector.shape_cast %750 : vector<1x1xi1> to vector<1x1xi1>
    %752 = vector.broadcast %751 : vector<1x1xi1> to vector<1x32xi1>
    %753 = arith.select %752, %747, %652 : vector<1x32xi1>, vector<1x32xf32>
    %754 = vector.shape_cast %725 : vector<1x1xi1> to vector<1x1xi1>
    %755 = vector.broadcast %754 : vector<1x1xi1> to vector<1x32xi1>
    %756 = arith.select %755, %688, %655 : vector<1x32xi1>, vector<1x32xf32>
    %c0_i32_289 = arith.constant 0 : i32
    %757 = vector.broadcast %c0_i32_289 : i32 to vector<1x1xi32>
    %758 = arith.cmpi eq, %717, %757 : vector<1x1xi32>
    %759 = arith.ori %658, %758 : vector<1x1xi1>
    %cst_290 = arith.constant dense<0.000000e+00> : vector<1x96xf32>
    %760 = tpu.matmul %753, %441, %cst_290 {dimension_numbers = #tpu.dot_dimension_numbers<[1], [0], [0], [1], [0, 0, 1, 1], [], []>} : vector<1x32xf32>, vector<32x96xf32>, vector<1x96xf32> -> vector<1x96xf32>
    %761 = arith.addf %760, %443 : vector<1x96xf32>
    %cst_291 = arith.constant dense<0.000000e+00> : vector<1x96xf32>
    %762 = tpu.matmul %756, %442, %cst_291 {dimension_numbers = #tpu.dot_dimension_numbers<[1], [0], [0], [1], [0, 0, 1, 1], [], []>} : vector<1x32xf32>, vector<32x96xf32>, vector<1x96xf32> -> vector<1x96xf32>
    %763 = arith.addf %762, %444 : vector<1x96xf32>
    %764 = vector.extract_strided_slice %761 {offsets = [0, 0], sizes = [1, 32], strides = [1, 1]} : vector<1x96xf32> to vector<1x32xf32>
    %765 = vector.extract_strided_slice %763 {offsets = [0, 0], sizes = [1, 32], strides = [1, 1]} : vector<1x96xf32> to vector<1x32xf32>
    %766 = arith.addf %764, %765 : vector<1x32xf32>
    %767 = arith.negf %766 : vector<1x32xf32>
    %768 = math.exp %767 : vector<1x32xf32>
    %cst_292 = arith.constant 1.000000e+00 : f32
    %769 = vector.broadcast %cst_292 : f32 to vector<1x32xf32>
    %770 = arith.addf %769, %768 : vector<1x32xf32>
    %771 = arith.divf %769, %770 : vector<1x32xf32>
    %772 = vector.extract_strided_slice %761 {offsets = [0, 32], sizes = [1, 32], strides = [1, 1]} : vector<1x96xf32> to vector<1x32xf32>
    %773 = vector.extract_strided_slice %763 {offsets = [0, 32], sizes = [1, 32], strides = [1, 1]} : vector<1x96xf32> to vector<1x32xf32>
    %774 = arith.addf %772, %773 : vector<1x32xf32>
    %775 = arith.negf %774 : vector<1x32xf32>
    %776 = math.exp %775 : vector<1x32xf32>
    %cst_293 = arith.constant 1.000000e+00 : f32
    %777 = vector.broadcast %cst_293 : f32 to vector<1x32xf32>
    %778 = arith.addf %777, %776 : vector<1x32xf32>
    %779 = arith.divf %777, %778 : vector<1x32xf32>
    %780 = vector.extract_strided_slice %761 {offsets = [0, 64], sizes = [1, 32], strides = [1, 1]} : vector<1x96xf32> to vector<1x32xf32>
    %781 = vector.extract_strided_slice %763 {offsets = [0, 64], sizes = [1, 32], strides = [1, 1]} : vector<1x96xf32> to vector<1x32xf32>
    %782 = arith.mulf %771, %781 : vector<1x32xf32>
    %783 = arith.addf %780, %782 : vector<1x32xf32>
    %784 = math.tanh %783 : vector<1x32xf32>
    %cst_294 = arith.constant 1.000000e+00 : f32
    %785 = vector.broadcast %cst_294 : f32 to vector<1x32xf32>
    %786 = arith.subf %785, %779 : vector<1x32xf32>
    %787 = arith.mulf %786, %784 : vector<1x32xf32>
    %788 = arith.mulf %779, %756 : vector<1x32xf32>
    %789 = arith.addf %787, %788 : vector<1x32xf32>
    %cst_295 = arith.constant dense<0.000000e+00> : vector<1x16xf32>
    %790 = tpu.matmul %789, %445, %cst_295 {dimension_numbers = #tpu.dot_dimension_numbers<[1], [0], [0], [1], [0, 0, 1, 1], [], []>} : vector<1x32xf32>, vector<32x16xf32>, vector<1x16xf32> -> vector<1x16xf32>
    %791 = vector.broadcast %790 : vector<1x16xf32> to vector<9x16xf32>
    %792 = arith.addf %440, %791 : vector<9x16xf32>
    %793 = math.tanh %792 : vector<9x16xf32>
    %794 = vector.broadcast %446 : vector<1x16xf32> to vector<9x16xf32>
    %795 = arith.mulf %793, %794 : vector<9x16xf32>
    %cst_296 = arith.constant dense<0.000000e+00> : vector<9xf32>
    %796 = vector.multi_reduction <add>, %795, %cst_296 [1] : vector<9x16xf32> to vector<9xf32>
    %797 = vector.shape_cast %796 : vector<9xf32> to vector<9x1xf32>
    %cst_297 = arith.constant 0.000000e+00 : f32
    %798 = vector.broadcast %cst_297 : f32 to vector<9x1xf32>
    %799 = arith.maximumf %797, %798 : vector<9x1xf32>
    %800 = arith.mulf %799, %737 : vector<9x1xf32>
    %cst_298 = arith.constant dense<0xFF800000> : vector<1xf32>
    %801 = vector.multi_reduction <maximumf>, %800, %cst_298 [0] : vector<9x1xf32> to vector<1xf32>
    %802 = vector.shape_cast %801 : vector<1xf32> to vector<1x1xf32>
    %803 = vector.broadcast %802 : vector<1x1xf32> to vector<9x1xf32>
    %804 = arith.subf %800, %803 : vector<9x1xf32>
    %805 = math.exp %804 : vector<9x1xf32>
    %cst_299 = arith.constant dense<0.000000e+00> : vector<1xf32>
    %806 = vector.multi_reduction <add>, %805, %cst_299 [0] : vector<9x1xf32> to vector<1xf32>
    %807 = vector.shape_cast %806 : vector<1xf32> to vector<1x1xf32>
    %808 = vector.broadcast %807 : vector<1x1xf32> to vector<9x1xf32>
    %809 = arith.divf %805, %808 : vector<9x1xf32>
    %c0_i32_300 = arith.constant 0 : i32
    %810 = vector.broadcast %c0_i32_300 : i32 to vector<1x1xi32>
    %811 = vector.extract_strided_slice %809 {offsets = [0, 0], sizes = [1, 1], strides = [1, 1]} : vector<9x1xf32> to vector<1x1xf32>
    %cst_301 = arith.constant 9.99999996E-13 : f32
    %812 = vector.broadcast %cst_301 : f32 to vector<1x1xf32>
    %813 = arith.addf %812, %811 : vector<1x1xf32>
    %814 = math.log %813 : vector<1x1xf32>
    %cst_302 = arith.constant dense<true> : vector<1x1xi1>
    %815 = arith.xori %759, %cst_302 : vector<1x1xi1>
    %c-1_i32_303 = arith.constant -1 : i32
    %816 = vector.broadcast %c-1_i32_303 : i32 to vector<1x1xi32>
    %817 = arith.select %815, %810, %816 : vector<1x1xi1>, vector<1x1xi32>
    %c0_304 = arith.constant 0 : index
    %c3_305 = arith.constant 3 : index
    %818 = vector.load %arg16[%c0_304, %c3_305] : memref<1x4xi32, #tpu.memory_space<vmem>>, vector<1x1xi32>
    tpu.vector_store %arg16[%c0_304, %c3_305], %817 {strides = array<i32>} : memref<1x4xi32, #tpu.memory_space<vmem>>, vector<1x1xi32>,
    %cst_306 = arith.constant 0.000000e+00 : f32
    %819 = vector.broadcast %cst_306 : f32 to vector<1x1xf32>
    %820 = arith.select %815, %814, %819 : vector<1x1xi1>, vector<1x1xf32>
    %821 = arith.addf %731, %820 : vector<1x1xf32>
    %c0_307 = arith.constant 0 : index
    %c0_308 = arith.constant 0 : index
    %822 = vector.load %arg17[%c0_307, %c0_308] : memref<1x1xf32, #tpu.memory_space<vmem>>, vector<1x1xf32>
    tpu.vector_store %arg17[%c0_307, %c0_308], %821 {strides = array<i32>} : memref<1x1xf32, #tpu.memory_space<vmem>>, vector<1x1xf32>,
    return
  }
}

</mosaic_0001>

<llo_original>
// kernel: _fwd.1
$region0: #{_fwd.1}
  #allocation0 [shape = 'u32[]', space=smem, size = 0x4, offset = 0x4, fixed_abs, tag = 'smem constant byte address 0x4 - core index']
  #allocation1 [shape = 'u32[72,128]{1,0:T(1,128)}', space=vmem, size = 0x9000, scoped, tag = 'internal scratch']
  #allocation2 [shape = 'f32[36,84]{1,0:T(8,128)}', space=vmem, size = 0x5000, scoped, tag = 'scratch operand']
  #allocation3 [shape = 'f32[9,32]{1,0:T(8,128)}', space=vmem, size = 0x2000, scoped, tag = 'scratch operand']
  #allocation4 [shape = 'f32[8,65]{1,0:T(8,128)}', space=vmem, size = 0x1000, scoped, tag = 'scratch operand']
  %s0 = inlined_call_operand.vmem [shape: f32[8,4,16], index: 0, kind: input, shape index: {}]
  %s1 = inlined_call_operand.hbm [shape: f32[8,36], index: 1, kind: input, shape index: {}]
  %s2 = inlined_call_operand.hbm [shape: f32[8,1], index: 2, kind: input, shape index: {}]
  %s3 = inlined_call_operand.vmem [shape: f32[65,32], index: 3, kind: input, shape index: {}]
  %s4 = inlined_call_operand.hbm [shape: f32[1,32], index: 4, kind: input, shape index: {}]
  %s5 = inlined_call_operand.hbm [shape: f32[32,96], index: 5, kind: input, shape index: {}]
  %s6 = inlined_call_operand.hbm [shape: f32[32,96], index: 6, kind: input, shape index: {}]
  %s7 = inlined_call_operand.vmem [shape: f32[1,96], index: 7, kind: input, shape index: {}]
  %s8 = inlined_call_operand.vmem [shape: f32[1,96], index: 8, kind: input, shape index: {}]
  %s9 = inlined_call_operand.hbm [shape: f32[32,96], index: 9, kind: input, shape index: {}]
  %s10 = inlined_call_operand.hbm [shape: f32[32,96], index: 10, kind: input, shape index: {}]
  %s11 = inlined_call_operand.vmem [shape: f32[1,96], index: 11, kind: input, shape index: {}]
  %s12 = inlined_call_operand.vmem [shape: f32[1,96], index: 12, kind: input, shape index: {}]
  %s13 = inlined_call_operand.vmem [shape: f32[32,16], index: 13, kind: input, shape index: {}]
  %s14 = inlined_call_operand.vmem [shape: f32[32,16], index: 14, kind: input, shape index: {}]
  %s15 = inlined_call_operand.vmem [shape: f32[1,16], index: 15, kind: input, shape index: {}]
  %s16 = inlined_call_operand.hbm [shape: s32[1,4], index: 16, kind: output, shape index: {0}]
  %s17 = inlined_call_operand.hbm [shape: f32[1,1], index: 17, kind: output, shape index: {1}]
  %18 = xla_tuple %s16, %s17
  %s19 = sld [smem:[#allocation0]]
  $region110: #{_fwd.1} parent=0
    _
  %s21 = ssub.s32 1, %s19
  %s22 = scalar_select 0, %s21, %s19
  $region1: #{_fwd.1} parent=0
    #allocation5 [shape = 'u8[4096]{0}', space=vmem, size = 0x1000, scoped, tag = 'input window, operand 1, single buffered']
    #allocation6 [shape = 's32[1]{0}', space=sflag, size = 0x4, scoped, tag = 'scoped memory for _fwd.1']
    #allocation7 [shape = 's32[1]{0}', space=sflag, size = 0x4, scoped, tag = 'scoped memory for _fwd.1']
    #allocation8 [shape = 'u8[4096]{0}', space=vmem, size = 0x1000, scoped, tag = 'input window, operand 2, single buffered']
    #allocation9 [shape = 's32[1]{0}', space=sflag, size = 0x4, scoped, tag = 'scoped memory for _fwd.1']
    #allocation10 [shape = 'u8[512]{0}', space=vmem, size = 0x400, scoped, tag = 'input window, operand 4, single buffered']
    #allocation11 [shape = 'u8[16384]{0}', space=vmem, size = 0x4000, scoped, tag = 'input window, operand 5, single buffered']
    #allocation12 [shape = 's32[1]{0}', space=sflag, size = 0x4, scoped, tag = 'scoped memory for _fwd.1']
    #allocation13 [shape = 'u8[16384]{0}', space=vmem, size = 0x4000, scoped, tag = 'input window, operand 6, single buffered']
    #allocation14 [shape = 'u8[16384]{0}', space=vmem, size = 0x4000, scoped, tag = 'input window, operand 9, single buffered']
    #allocation15 [shape = 's32[1]{0}', space=sflag, size = 0x4, scoped, tag = 'scoped memory for _fwd.1']
    #allocation16 [shape = 'u8[16384]{0}', space=vmem, size = 0x4000, scoped, tag = 'input window, operand 10, single buffered']
    #allocation17 [shape = 'u8[512]{0}', space=vmem, size = 0x400, scoped, tag = 'output window, operand 0, single buffered']
    #allocation18 [shape = 'u8[512]{0}', space=vmem, size = 0x400, scoped, tag = 'output window, operand 1, single buffered']
    #allocation19 [shape = 's32[1]{0}', space=sflag, size = 0x4, scoped, tag = 'scoped memory for _fwd.1']
    %23 = vsyncpa [#allocation6], 0
    %24 = vsyncpa [#allocation9], 0
    %25 = vsyncpa [#allocation12], 0
    %26 = vsyncpa [#allocation15], 0
    %27 = vsyncpa [#allocation7], 0
    %28 = vsyncpa [#allocation19], 0
    // Predicated region
    $region2: #{_fwd.1} parent=1 // pred_check
      _
    $region3: #{_fwd.1} parent=1 // pred_check_branch
      %30 = sbr.rel (0) target = $region5
    $region4: #{_fwd.1} parent=1 // pred_region
      _
    $region5: #{_fwd.1} parent=1 // pred_fallthru
      _
    // Predicated region
    $region6: #{_fwd.1} parent=1 // pred_check
      _
    $region7: #{_fwd.1} parent=1 // pred_check_branch
      %32 = sbr.rel (0) target = $region9
    $region8: #{_fwd.1} parent=1 // pred_region
      %34 = vsyncadd [#allocation6], 0
      %s36 = sshll.u32 %s1, 4
      %s37 = int_to_ptr.hbm [resolvable:$true] %s36
      %s38 = sshll.u32 [#allocation5], 4
      %s39 = int_to_ptr.vmem [resolvable:$true] %s38
      %41 = dma.hbm_to_vmem [thread:$0]  %s37, 128, %s39, [#allocation6]
    $region9: #{_fwd.1} parent=1 // pred_fallthru
      _
    // Predicated region
    $region10: #{_fwd.1} parent=1 // pred_check
      _
    $region11: #{_fwd.1} parent=1 // pred_check_branch
      %43 = sbr.rel (0) target = $region13
    $region12: #{_fwd.1} parent=1 // pred_region
      %45 = vsyncadd [#allocation9], 0
      %s47 = sshll.u32 %s2, 4
      %s48 = int_to_ptr.hbm [resolvable:$true] %s47
      %s49 = sshll.u32 [#allocation8], 4
      %s50 = int_to_ptr.vmem [resolvable:$true] %s49
      %52 = dma.hbm_to_vmem [thread:$0]  %s48, 128, %s50, [#allocation9]
    $region13: #{_fwd.1} parent=1 // pred_fallthru
      _
    // Predicated region
    $region14: #{_fwd.1} parent=1 // pred_check
      _
    $region15: #{_fwd.1} parent=1 // pred_check_branch
      %54 = sbr.rel (0) target = $region17
    $region16: #{_fwd.1} parent=1 // pred_region
      _
    $region17: #{_fwd.1} parent=1 // pred_fallthru
      _
    // Predicated region
    $region18: #{_fwd.1} parent=1 // pred_check
      _
    $region19: #{_fwd.1} parent=1 // pred_check_branch
      %56 = sbr.rel (0) target = $region21
    $region20: #{_fwd.1} parent=1 // pred_region
      %58 = vsyncadd [#allocation9], 0
      %s60 = sshll.u32 %s4, 4
      %s61 = int_to_ptr.hbm [resolvable:$true] %s60
      %s62 = sshll.u32 [#allocation10], 4
      %s63 = int_to_ptr.vmem [resolvable:$true] %s62
      %65 = dma.hbm_to_vmem [thread:$0]  %s61, 16, %s63, [#allocation9]
    $region21: #{_fwd.1} parent=1 // pred_fallthru
      _
    // Predicated region
    $region22: #{_fwd.1} parent=1 // pred_check
      _
    $region23: #{_fwd.1} parent=1 // pred_check_branch
      %67 = sbr.rel (0) target = $region25
    $region24: #{_fwd.1} parent=1 // pred_region
      %69 = vsyncadd [#allocation12], 0
      %s70 = sshll.u32 %s5, 4
      %s71 = int_to_ptr.hbm [resolvable:$true] %s70
      %s72 = sshll.u32 [#allocation11], 4
      %s73 = int_to_ptr.vmem [resolvable:$true] %s72
      %78 = dma.hbm_to_vmem [thread:$0]  %s71, 512, %s73, [#allocation12], 128, 128, 8
    $region25: #{_fwd.1} parent=1 // pred_fallthru
      _
    // Predicated region
    $region26: #{_fwd.1} parent=1 // pred_check
      _
    $region27: #{_fwd.1} parent=1 // pred_check_branch
      %80 = sbr.rel (0) target = $region29
    $region28: #{_fwd.1} parent=1 // pred_region
      %82 = vsyncadd [#allocation12], 0
      %s83 = sshll.u32 %s6, 4
      %s84 = int_to_ptr.hbm [resolvable:$true] %s83
      %s85 = sshll.u32 [#allocation13], 4
      %s86 = int_to_ptr.vmem [resolvable:$true] %s85
      %91 = dma.hbm_to_vmem [thread:$0]  %s84, 512, %s86, [#allocation12], 128, 128, 8
    $region29: #{_fwd.1} parent=1 // pred_fallthru
      _
    // Predicated region
    $region30: #{_fwd.1} parent=1 // pred_check
      _
    $region31: #{_fwd.1} parent=1 // pred_check_branch
      %93 = sbr.rel (0) target = $region33
    $region32: #{_fwd.1} parent=1 // pred_region
      _
    $region33: #{_fwd.1} parent=1 // pred_fallthru
      _
    // Predicated region
    $region34: #{_fwd.1} parent=1 // pred_check
      _
    $region35: #{_fwd.1} parent=1 // pred_check_branch
      %95 = sbr.rel (0) target = $region37
    $region36: #{_fwd.1} parent=1 // pred_region
      _
    $region37: #{_fwd.1} parent=1 // pred_fallthru
      _
    // Predicated region
    $region38: #{_fwd.1} parent=1 // pred_check
      _
    $region39: #{_fwd.1} parent=1 // pred_check_branch
      %97 = sbr.rel (0) target = $region41
    $region40: #{_fwd.1} parent=1 // pred_region
      %99 = vsyncadd [#allocation15], 0
      %s100 = sshll.u32 %s9, 4
      %s101 = int_to_ptr.hbm [resolvable:$true] %s100
      %s102 = sshll.u32 [#allocation14], 4
      %s103 = int_to_ptr.vmem [resolvable:$true] %s102
      %108 = dma.hbm_to_vmem [thread:$0]  %s101, 512, %s103, [#allocation15], 128, 128, 8
    $region41: #{_fwd.1} parent=1 // pred_fallthru
      _
    // Predicated region
    $region42: #{_fwd.1} parent=1 // pred_check
      _
    $region43: #{_fwd.1} parent=1 // pred_check_branch
      %110 = sbr.rel (0) target = $region45
    $region44: #{_fwd.1} parent=1 // pred_region
      %112 = vsyncadd [#allocation15], 0
      %s113 = sshll.u32 %s10, 4
      %s114 = int_to_ptr.hbm [resolvable:$true] %s113
      %s115 = sshll.u32 [#allocation16], 4
      %s116 = int_to_ptr.vmem [resolvable:$true] %s115
      %121 = dma.hbm_to_vmem [thread:$0]  %s114, 512, %s116, [#allocation15], 128, 128, 8
    $region45: #{_fwd.1} parent=1 // pred_fallthru
      _
    // Predicated region
    $region46: #{_fwd.1} parent=1 // pred_check
      _
    $region47: #{_fwd.1} parent=1 // pred_check_branch
      %123 = sbr.rel (0) target = $region49
    $region48: #{_fwd.1} parent=1 // pred_region
      _
    $region49: #{_fwd.1} parent=1 // pred_fallthru
      _
    // Predicated region
    $region50: #{_fwd.1} parent=1 // pred_check
      _
    $region51: #{_fwd.1} parent=1 // pred_check_branch
      %125 = sbr.rel (0) target = $region53
    $region52: #{_fwd.1} parent=1 // pred_region
      _
    $region53: #{_fwd.1} parent=1 // pred_fallthru
      _
    // Predicated region
    $region54: #{_fwd.1} parent=1 // pred_check
      _
    $region55: #{_fwd.1} parent=1 // pred_check_branch
      %127 = sbr.rel (0) target = $region57
    $region56: #{_fwd.1} parent=1 // pred_region
      _
    $region57: #{_fwd.1} parent=1 // pred_fallthru
      _
    // Predicated region
    $region58: #{_fwd.1} parent=1 // pred_check
      _
    $region59: #{_fwd.1} parent=1 // pred_check_branch
      %129 = sbr.rel (0) target = $region61
    $region60: #{_fwd.1} parent=1 // pred_region
      _
    $region61: #{_fwd.1} parent=1 // pred_fallthru
      _
    // Predicated region
    $region62: #{_fwd.1} parent=1 // pred_check
      _
    $region63: #{_fwd.1} parent=1 // pred_check_branch
      %131 = sbr.rel (0) target = $region65
    $region64: #{_fwd.1} parent=1 // pred_region
      _
    $region65: #{_fwd.1} parent=1 // pred_fallthru
      _
    // Predicated region
    $region66: #{_fwd.1} parent=1 // pred_check
      _
    $region67: #{_fwd.1} parent=1 // pred_check_branch
      %133 = sbr.rel (0) target = $region69
    $region68: #{_fwd.1} parent=1 // pred_region
      %135 = dma.done [#allocation6], 128
    $region69: #{_fwd.1} parent=1 // pred_fallthru
      _
    // Predicated region
    $region70: #{_fwd.1} parent=1 // pred_check
      _
    $region71: #{_fwd.1} parent=1 // pred_check_branch
      %137 = sbr.rel (0) target = $region73
    $region72: #{_fwd.1} parent=1 // pred_region
      %139 = dma.done [#allocation9], 128
    $region73: #{_fwd.1} parent=1 // pred_fallthru
      _
    // Predicated region
    $region74: #{_fwd.1} parent=1 // pred_check
      _
    $region75: #{_fwd.1} parent=1 // pred_check_branch
      %141 = sbr.rel (0) target = $region77
    $region76: #{_fwd.1} parent=1 // pred_region
      %143 = dma.done [#allocation9], 16
    $region77: #{_fwd.1} parent=1 // pred_fallthru
      _
    // Predicated region
    $region78: #{_fwd.1} parent=1 // pred_check
      _
    $region79: #{_fwd.1} parent=1 // pred_check_branch
      %145 = sbr.rel (0) target = $region81
    $region80: #{_fwd.1} parent=1 // pred_region
      %147 = dma.done [#allocation12], 512
    $region81: #{_fwd.1} parent=1 // pred_fallthru
      _
    // Predicated region
    $region82: #{_fwd.1} parent=1 // pred_check
      _
    $region83: #{_fwd.1} parent=1 // pred_check_branch
      %149 = sbr.rel (0) target = $region85
    $region84: #{_fwd.1} parent=1 // pred_region
      %151 = dma.done [#allocation12], 512
    $region85: #{_fwd.1} parent=1 // pred_fallthru
      _
    // Predicated region
    $region86: #{_fwd.1} parent=1 // pred_check
      _
    $region87: #{_fwd.1} parent=1 // pred_check_branch
      %153 = sbr.rel (0) target = $region89
    $region88: #{_fwd.1} parent=1 // pred_region
      %155 = dma.done [#allocation15], 512
    $region89: #{_fwd.1} parent=1 // pred_fallthru
      _
    // Predicated region
    $region90: #{_fwd.1} parent=1 // pred_check
      _
    $region91: #{_fwd.1} parent=1 // pred_check_branch
      %157 = sbr.rel (0) target = $region93
    $region92: #{_fwd.1} parent=1 // pred_region
      %159 = dma.done [#allocation15], 512
    $region93: #{_fwd.1} parent=1 // pred_fallthru
      _
    %v160 = vld [vmem:[%s0] sm:$0xf]
    %s161 = scalar_lea.vmem %s0, 4
    %v162 = vld [vmem:[%s161] sm:$0xf]
    %s163 = scalar_lea.vmem %s0, 8
    %v164 = vld [vmem:[%s163] sm:$0xf]
    %s165 = scalar_lea.vmem %s0, 12
    %v166 = vld [vmem:[%s165] sm:$0xf]
    %s167 = scalar_lea.vmem %s0, 16
    %v168 = vld [vmem:[%s167] sm:$0xf]
    %s169 = scalar_lea.vmem %s0, 20
    %v170 = vld [vmem:[%s169] sm:$0xf]
    %s171 = scalar_lea.vmem %s0, 24
    %v172 = vld [vmem:[%s171] sm:$0xf]
    %s173 = scalar_lea.vmem %s0, 28
    %v174 = vld [vmem:[%s173] sm:$0xf]
    %vm175 = vcmask 109568
    %176 = vst.msk [vmem:[#allocation2] sm:$0xf] %vm175, %v160
    %178 = vrot.lane.b32.xlu0 %v160, 127
    %v179 = vpop.permute.xlu0 %178
    %181 = vst.msk [vmem:[#allocation2 + $0x4] sm:$0xf] %vm175, %v179
    %182 = vrot.lane.b32.xlu0 %v160, 126
    %v183 = vpop.permute.xlu0 %182
    %185 = vst.msk [vmem:[#allocation2 + $0x8] sm:$0xf] %vm175, %v183
    %186 = vst.msk [vmem:[#allocation2 + $0xc] sm:$0xf] %vm175, %v162
    %188 = vrot.lane.b32.xlu0 %v162, 127
    %v189 = vpop.permute.xlu0 %188
    %191 = vst.msk [vmem:[#allocation2 + $0x10] sm:$0xf] %vm175, %v189
    %192 = vrot.lane.b32.xlu0 %v162, 126
    %v193 = vpop.permute.xlu0 %192
    %195 = vst.msk [vmem:[#allocation2 + $0x14] sm:$0xf] %vm175, %v193
    %196 = vst.msk [vmem:[#allocation2 + $0x18] sm:$0xf] %vm175, %v164
    %198 = vrot.lane.b32.xlu0 %v164, 127
    %v199 = vpop.permute.xlu0 %198
    %201 = vst.msk [vmem:[#allocation2 + $0x1c] sm:$0xf] %vm175, %v199
    %202 = vrot.lane.b32.xlu0 %v164, 126
    %v203 = vpop.permute.xlu0 %202
    %205 = vst.msk [vmem:[#allocation2 + $0x20] sm:$0xf] %vm175, %v203
    %206 = vrot.lane.b32.xlu0 %v162, 14
    %v207 = vpop.permute.xlu0 %206
    %vm209 = vcmask 224368
    %210 = vst.msk [vmem:[#allocation2] sm:$0xf] %vm209, %v207
    %211 = vrot.lane.b32.xlu0 %v162, 13
    %v212 = vpop.permute.xlu0 %211
    %214 = vst.msk [vmem:[#allocation2 + $0x4] sm:$0xf] %vm209, %v212
    %215 = vrot.lane.b32.xlu0 %v162, 12
    %v216 = vpop.permute.xlu0 %215
    %218 = vst.msk [vmem:[#allocation2 + $0x8] sm:$0xf] %vm209, %v216
    %219 = vrot.lane.b32.xlu0 %v164, 14
    %v220 = vpop.permute.xlu0 %219
    %222 = vst.msk [vmem:[#allocation2 + $0xc] sm:$0xf] %vm209, %v220
    %223 = vrot.lane.b32.xlu0 %v164, 13
    %v224 = vpop.permute.xlu0 %223
    %226 = vst.msk [vmem:[#allocation2 + $0x10] sm:$0xf] %vm209, %v224
    %227 = vrot.lane.b32.xlu0 %v164, 12
    %v228 = vpop.permute.xlu0 %227
    %230 = vst.msk [vmem:[#allocation2 + $0x14] sm:$0xf] %vm209, %v228
    %232 = vrot.lane.b32.xlu0 %v166, 14
    %v233 = vpop.permute.xlu0 %232
    %235 = vst.msk [vmem:[#allocation2 + $0x18] sm:$0xf] %vm209, %v233
    %236 = vrot.lane.b32.xlu0 %v166, 13
    %v237 = vpop.permute.xlu0 %236
    %239 = vst.msk [vmem:[#allocation2 + $0x1c] sm:$0xf] %vm209, %v237
    %240 = vrot.lane.b32.xlu0 %v166, 12
    %v241 = vpop.permute.xlu0 %240
    %243 = vst.msk [vmem:[#allocation2 + $0x20] sm:$0xf] %vm209, %v241
    %244 = vrot.lane.b32.xlu0 %v164, 28
    %v245 = vpop.permute.xlu0 %244
    %vm247 = vcmask 339168
    %248 = vst.msk [vmem:[#allocation2] sm:$0xf] %vm247, %v245
    %249 = vrot.lane.b32.xlu0 %v164, 27
    %v250 = vpop.permute.xlu0 %249
    %252 = vst.msk [vmem:[#allocation2 + $0x4] sm:$0xf] %vm247, %v250
    %253 = vrot.lane.b32.xlu0 %v164, 26
    %v254 = vpop.permute.xlu0 %253
    %256 = vst.msk [vmem:[#allocation2 + $0x8] sm:$0xf] %vm247, %v254
    %257 = vrot.lane.b32.xlu0 %v166, 28
    %v258 = vpop.permute.xlu0 %257
    %260 = vst.msk [vmem:[#allocation2 + $0xc] sm:$0xf] %vm247, %v258
    %261 = vrot.lane.b32.xlu0 %v166, 27
    %v262 = vpop.permute.xlu0 %261
    %264 = vst.msk [vmem:[#allocation2 + $0x10] sm:$0xf] %vm247, %v262
    %265 = vrot.lane.b32.xlu0 %v166, 26
    %v266 = vpop.permute.xlu0 %265
    %268 = vst.msk [vmem:[#allocation2 + $0x14] sm:$0xf] %vm247, %v266
    %270 = vrot.lane.b32.xlu0 %v168, 28
    %v271 = vpop.permute.xlu0 %270
    %273 = vst.msk [vmem:[#allocation2 + $0x18] sm:$0xf] %vm247, %v271
    %274 = vrot.lane.b32.xlu0 %v168, 27
    %v275 = vpop.permute.xlu0 %274
    %277 = vst.msk [vmem:[#allocation2 + $0x1c] sm:$0xf] %vm247, %v275
    %278 = vrot.lane.b32.xlu0 %v168, 26
    %v279 = vpop.permute.xlu0 %278
    %281 = vst.msk [vmem:[#allocation2 + $0x20] sm:$0xf] %vm247, %v279
    %282 = vrot.lane.b32.xlu0 %v166, 42
    %v283 = vpop.permute.xlu0 %282
    %vm285 = vcmask 453968
    %286 = vst.msk [vmem:[#allocation2] sm:$0xf] %vm285, %v283
    %287 = vrot.lane.b32.xlu0 %v166, 41
    %v288 = vpop.permute.xlu0 %287
    %290 = vst.msk [vmem:[#allocation2 + $0x4] sm:$0xf] %vm285, %v288
    %291 = vrot.lane.b32.xlu0 %v166, 40
    %v292 = vpop.permute.xlu0 %291
    %294 = vst.msk [vmem:[#allocation2 + $0x8] sm:$0xf] %vm285, %v292
    %295 = vrot.lane.b32.xlu0 %v168, 42
    %v296 = vpop.permute.xlu0 %295
    %298 = vst.msk [vmem:[#allocation2 + $0xc] sm:$0xf] %vm285, %v296
    %299 = vrot.lane.b32.xlu0 %v168, 41
    %v300 = vpop.permute.xlu0 %299
    %302 = vst.msk [vmem:[#allocation2 + $0x10] sm:$0xf] %vm285, %v300
    %303 = vrot.lane.b32.xlu0 %v168, 40
    %v304 = vpop.permute.xlu0 %303
    %306 = vst.msk [vmem:[#allocation2 + $0x14] sm:$0xf] %vm285, %v304
    %308 = vrot.lane.b32.xlu0 %v170, 42
    %v309 = vpop.permute.xlu0 %308
    %311 = vst.msk [vmem:[#allocation2 + $0x18] sm:$0xf] %vm285, %v309
    %312 = vrot.lane.b32.xlu0 %v170, 41
    %v313 = vpop.permute.xlu0 %312
    %315 = vst.msk [vmem:[#allocation2 + $0x1c] sm:$0xf] %vm285, %v313
    %316 = vrot.lane.b32.xlu0 %v170, 40
    %v317 = vpop.permute.xlu0 %316
    %319 = vst.msk [vmem:[#allocation2 + $0x20] sm:$0xf] %vm285, %v317
    %320 = vrot.lane.b32.xlu0 %v168, 56
    %v321 = vpop.permute.xlu0 %320
    %vm323 = vcmask 568768
    %324 = vst.msk [vmem:[#allocation2] sm:$0xf] %vm323, %v321
    %325 = vrot.lane.b32.xlu0 %v168, 55
    %v326 = vpop.permute.xlu0 %325
    %328 = vst.msk [vmem:[#allocation2 + $0x4] sm:$0xf] %vm323, %v326
    %329 = vrot.lane.b32.xlu0 %v168, 54
    %v330 = vpop.permute.xlu0 %329
    %332 = vst.msk [vmem:[#allocation2 + $0x8] sm:$0xf] %vm323, %v330
    %333 = vrot.lane.b32.xlu0 %v170, 56
    %v334 = vpop.permute.xlu0 %333
    %336 = vst.msk [vmem:[#allocation2 + $0xc] sm:$0xf] %vm323, %v334
    %337 = vrot.lane.b32.xlu0 %v170, 55
    %v338 = vpop.permute.xlu0 %337
    %340 = vst.msk [vmem:[#allocation2 + $0x10] sm:$0xf] %vm323, %v338
    %341 = vrot.lane.b32.xlu0 %v170, 54
    %v342 = vpop.permute.xlu0 %341
    %344 = vst.msk [vmem:[#allocation2 + $0x14] sm:$0xf] %vm323, %v342
    %346 = vrot.lane.b32.xlu0 %v172, 56
    %v347 = vpop.permute.xlu0 %346
    %349 = vst.msk [vmem:[#allocation2 + $0x18] sm:$0xf] %vm323, %v347
    %350 = vrot.lane.b32.xlu0 %v172, 55
    %v351 = vpop.permute.xlu0 %350
    %353 = vst.msk [vmem:[#allocation2 + $0x1c] sm:$0xf] %vm323, %v351
    %354 = vrot.lane.b32.xlu0 %v172, 54
    %v355 = vpop.permute.xlu0 %354
    %357 = vst.msk [vmem:[#allocation2 + $0x20] sm:$0xf] %vm323, %v355
    %358 = vrot.lane.b32.xlu0 %v170, 70
    %v359 = vpop.permute.xlu0 %358
    %vm361 = vcmask 683568
    %362 = vst.msk [vmem:[#allocation2] sm:$0xf] %vm361, %v359
    %363 = vrot.lane.b32.xlu0 %v170, 69
    %v364 = vpop.permute.xlu0 %363
    %366 = vst.msk [vmem:[#allocation2 + $0x4] sm:$0xf] %vm361, %v364
    %367 = vrot.lane.b32.xlu0 %v170, 68
    %v368 = vpop.permute.xlu0 %367
    %370 = vst.msk [vmem:[#allocation2 + $0x8] sm:$0xf] %vm361, %v368
    %371 = vrot.lane.b32.xlu0 %v172, 70
    %v372 = vpop.permute.xlu0 %371
    %374 = vst.msk [vmem:[#allocation2 + $0xc] sm:$0xf] %vm361, %v372
    %375 = vrot.lane.b32.xlu0 %v172, 69
    %v376 = vpop.permute.xlu0 %375
    %378 = vst.msk [vmem:[#allocation2 + $0x10] sm:$0xf] %vm361, %v376
    %379 = vrot.lane.b32.xlu0 %v172, 68
    %v380 = vpop.permute.xlu0 %379
    %382 = vst.msk [vmem:[#allocation2 + $0x14] sm:$0xf] %vm361, %v380
    %384 = vrot.lane.b32.xlu0 %v174, 70
    %v385 = vpop.permute.xlu0 %384
    %387 = vst.msk [vmem:[#allocation2 + $0x18] sm:$0xf] %vm361, %v385
    %388 = vrot.lane.b32.xlu0 %v174, 69
    %v389 = vpop.permute.xlu0 %388
    %391 = vst.msk [vmem:[#allocation2 + $0x1c] sm:$0xf] %vm361, %v389
    %392 = vrot.lane.b32.xlu0 %v174, 68
    %v393 = vpop.permute.xlu0 %392
    %395 = vst.msk [vmem:[#allocation2 + $0x20] sm:$0xf] %vm361, %v393
    %v396 = vld [vmem:[#allocation5] sm:$0xff]
    %v397 = vld [vmem:[#allocation2] sm:$0xff]
    %v398 = vld [vmem:[#allocation2 + $0x8] sm:$0xff]
    %v399 = vld [vmem:[#allocation2 + $0x10] sm:$0xff]
    %v400 = vld [vmem:[#allocation2 + $0x18] sm:$0xff]
    %v401 = vld [vmem:[#allocation2 + $0x20] sm:$0xf]
    %v402 = vld [vmem:[#allocation8] sm:$0xff]
    %404 = vset.pattern.permute.xlu0 0
    %405 = vperm.xlu0 %404, %v402
    %v406 = vpop.permute.xlu0 %405
    %vm408 = vcmask 293888
    %v410 = vsel %vm408, %v396, 0
    %vm412 = vcmask 1043456
    %v414 = vsel %vm412, %v401, 0
    %416 = vmatpush.msra.mxu0 0.0
    %417 = vmatpush.msra.mxu0 0.0
    %418 = vmatpush.msra.mxu0 0.0
    %419 = vmatpush.msra.mxu0 0.0
    %420 = vmatpush.msra.mxu0 0.0
    %421 = vmatpush.msra.mxu0 0.0
    %422 = vmatpush.msra.mxu0 0.0
    %423 = vmatpush.msra.mxu0 0.0
    %424 = vmatpush.msra.mxu0 0.0
    %425 = vmatpush.msra.mxu0 0.0
    %426 = vmatpush.msra.mxu0 0.0
    %427 = vmatpush.msra.mxu0 %v414
    %428 = vmatpush.msra.mxu0 %v400
    %429 = vmatpush.msra.mxu0 %v399
    %430 = vmatpush.msra.mxu0 %v398
    %431 = vmatpush.msra.mxu0 %v397
    %432 = vmatmul.f32.gmra.mxu0 %v410
    %v433 = vpop.f32.mrf.mxu0
    %v434 = vadd.f32 %v406, %v433
    %435 = vdwg.mxu0
    %437 = vrot.lane.b32.xlu0 %v434, 127
    %v438 = vpop.permute.xlu0 %437
    %v440 = vmax.f32 %v434, %v438
    %441 = vrot.lane.b32.xlu0 %v434, 114
    %v442 = vpop.permute.xlu0 %441
    %v444 = vmax.f32 %v440, %v442
    %445 = vrot.lane.b32.xlu0 %v434, 113
    %v446 = vpop.permute.xlu0 %445
    %v448 = vmax.f32 %v444, %v446
    %vm449 = vcmask 105472
    %450 = vst.msk [vmem:[#allocation4] sm:$0xff] %vm449, %v448
    %452 = vrot.lane.b32.xlu0 %v448, 127
    %v453 = vpop.permute.xlu0 %452
    %vm455 = vcmask 212072
    %456 = vst.msk [vmem:[#allocation4] sm:$0xff] %vm455, %v453
    %457 = vrot.lane.b32.xlu0 %v448, 126
    %v458 = vpop.permute.xlu0 %457
    %vm460 = vcmask 318672
    %461 = vst.msk [vmem:[#allocation4] sm:$0xff] %vm460, %v458
    %462 = vrot.lane.b32.xlu0 %v448, 125
    %v463 = vpop.permute.xlu0 %462
    %vm465 = vcmask 425272
    %466 = vst.msk [vmem:[#allocation4] sm:$0xff] %vm465, %v463
    %467 = vrot.lane.b32.xlu0 %v448, 124
    %v468 = vpop.permute.xlu0 %467
    %vm470 = vcmask 531872
    %471 = vst.msk [vmem:[#allocation4] sm:$0xff] %vm470, %v468
    %v472 = vld [vmem:[#allocation4] sm:$0xff]
    %v473 = vld [vmem:[%s3] sm:$0xff]
    %v474 = vld [vmem:[%s3 + $0x8] sm:$0xff]
    %v475 = vld [vmem:[%s3 + $0x10] sm:$0xff]
    %v476 = vld [vmem:[%s3 + $0x18] sm:$0xff]
    %v477 = vld [vmem:[%s3 + $0x20] sm:$0xff]
    %v478 = vld [vmem:[%s3 + $0x28] sm:$0xff]
    %v479 = vld [vmem:[%s3 + $0x30] sm:$0xff]
    %v480 = vld [vmem:[%s3 + $0x38] sm:$0xff]
    %v481 = vld [vmem:[%s3 + $0x40] sm:$0x1]
    %v482 = vld [vmem:[#allocation10] sm:$0x1]
    %v484 = vperm.slane %v482, 0
    %vm486 = vcmask 531456
    %v488 = vsel %vm486, %v472, 0
    %vm490 = vcmask 1040384
    %v492 = vsel %vm490, %v481, 0
    %494 = vmatpush.msra.mxu0 0.0
    %495 = vmatpush.msra.mxu0 0.0
    %496 = vmatpush.msra.mxu0 0.0
    %497 = vmatpush.msra.mxu0 0.0
    %498 = vmatpush.msra.mxu0 0.0
    %499 = vmatpush.msra.mxu0 0.0
    %500 = vmatpush.msra.mxu0 0.0
    %501 = vmatpush.msra.mxu0 %v492
    %502 = vmatpush.msra.mxu0 %v480
    %503 = vmatpush.msra.mxu0 %v479
    %504 = vmatpush.msra.mxu0 %v478
    %505 = vmatpush.msra.mxu0 %v477
    %506 = vmatpush.msra.mxu0 %v476
    %507 = vmatpush.msra.mxu0 %v475
    %508 = vmatpush.msra.mxu0 %v474
    %509 = vmatpush.msra.mxu0 %v473
    %510 = vmatmul.f32.gmra.mxu0 %v488
    %v511 = vpop.f32.mrf.mxu0
    %v512 = vadd.f32 %v484, %v511
    %513 = vdwg.mxu0
    %v514 = vmax.f32 %v512, 0.0
    %v515 = vld [vmem:[#allocation11] sm:$0xff]
    %v516 = vld [vmem:[#allocation11 + $0x8] sm:$0xff]
    %v517 = vld [vmem:[#allocation11 + $0x10] sm:$0xff]
    %v518 = vld [vmem:[#allocation11 + $0x18] sm:$0xff]
    %v519 = vld [vmem:[%s7] sm:$0x1]
    %v521 = vperm.slane %v519, 0
    %vm523 = vcmask 261120
    %v525 = vsel %vm523, %v514, 0
    %527 = vmatpush.msra.mxu0 0.0
    %528 = vmatpush.msra.mxu0 0.0
    %529 = vmatpush.msra.mxu0 0.0
    %530 = vmatpush.msra.mxu0 0.0
    %531 = vmatpush.msra.mxu0 0.0
    %532 = vmatpush.msra.mxu0 0.0
    %533 = vmatpush.msra.mxu0 0.0
    %534 = vmatpush.msra.mxu0 0.0
    %535 = vmatpush.msra.mxu0 0.0
    %536 = vmatpush.msra.mxu0 0.0
    %537 = vmatpush.msra.mxu0 0.0
    %538 = vmatpush.msra.mxu0 0.0
    %539 = vmatpush.msra.mxu0 %v518
    %540 = vmatpush.msra.mxu0 %v517
    %541 = vmatpush.msra.mxu0 %v516
    %542 = vmatpush.msra.mxu0 %v515
    %543 = vmatmul.f32.gmra.mxu0 %v525
    %v544 = vpop.f32.mrf.mxu0
    %v545 = vadd.f32 %v521, %v544
    %546 = vdwg.mxu0
    %v547 = vld [vmem:[#allocation13] sm:$0xff]
    %v548 = vld [vmem:[#allocation13 + $0x8] sm:$0xff]
    %v549 = vld [vmem:[#allocation13 + $0x10] sm:$0xff]
    %v550 = vld [vmem:[#allocation13 + $0x18] sm:$0xff]
    %v551 = vld [vmem:[%s8] sm:$0x1]
    %vm552 = vcmask 253952
    %553 = vst.msk [vmem:[#allocation3] sm:$0x1] %vm552, 0.0
    %v555 = vsel %vm523, 0.0, 0
    %557 = vmatpush.msra.mxu0 0.0
    %558 = vmatpush.msra.mxu0 0.0
    %559 = vmatpush.msra.mxu0 0.0
    %560 = vmatpush.msra.mxu0 0.0
    %561 = vmatpush.msra.mxu0 0.0
    %562 = vmatpush.msra.mxu0 0.0
    %563 = vmatpush.msra.mxu0 0.0
    %564 = vmatpush.msra.mxu0 0.0
    %565 = vmatpush.msra.mxu0 0.0
    %566 = vmatpush.msra.mxu0 0.0
    %567 = vmatpush.msra.mxu0 0.0
    %568 = vmatpush.msra.mxu0 0.0
    %569 = vmatpush.msra.mxu0 %v550
    %570 = vmatpush.msra.mxu0 %v549
    %571 = vmatpush.msra.mxu0 %v548
    %572 = vmatpush.msra.mxu0 %v547
    %573 = vmatmul.f32.gmra.mxu0 %v555
    %v574 = vpop.f32.mrf.mxu0
    %v575 = vadd.f32 %v551, %v574
    %576 = vdwg.mxu0
    %v577 = vadd.f32 %v545, %v575
    %v578 = vxor.u32 %v577, 2147483648
    %v579 = vmul.f32 %v578, 1.442695
    %v580 = vpow.pop %v579
    %v581 = vadd.f32 %v580, 1.0
    %v582 = vrcp.pop %v581
    %v583 = vmul.f32 %v581, %v582
    %v584 = vsub.f32 1.0, %v583
    %v585 = vmul.f32 %v582, %v584
    %v586 = vadd.f32 %v582, %v585
    %vm587 = vweird.f32 %v581
    %vm588 = vweird.f32 %v582
    %vm589 = vmor %vm587, %vm588
    %v590 = vsel %vm589, %v582, %v586
    %v591 = vand.u32 2147483647, %v581
    %vm592 = vcmp.eq.f32.partialorder %v591, 8.507059e+37
    %v593 = vand.u32 %v581, 2147483648
    %v594 = vor.u32 1.1754944e-38, %v593
    %v595 = vsel %vm592, %v594, %v590
    %v596 = vmul.f32 1.0, %v595
    %598 = vrot.lane.b32.xlu0 %v575, 64
    %v599 = vpop.permute.xlu0 %598
    %v601 = vmul.f32 %v596, %v599
    %603 = vrot.lane.b32.xlu0 %v601, 64
    %v604 = vpop.permute.xlu0 %603
    %v606 = vadd.f32 %v545, %v604
    %v607 = vtanh.pop %v606
    %v608 = vsub.f32 1.0, %v596
    %610 = vrot.lane.b32.xlu0 %v607, 96
    %v611 = vpop.permute.xlu0 %610
    %v613 = vmul.f32 %v608, %v611
    %v614 = vmul.f32 %v596, 0.0
    %v615 = vadd.f32 %v613, %v614
    %617 = vrot.lane.b32.xlu0 %v615, 96
    %v618 = vpop.permute.xlu0 %617
    %620 = vst.msk [vmem:[#allocation3 + $0x1] sm:$0x1] %vm552, %v618
    %v621 = vsel %vm523, %v618, 0
    %623 = vmatpush.msra.mxu0 0.0
    %624 = vmatpush.msra.mxu0 0.0
    %625 = vmatpush.msra.mxu0 0.0
    %626 = vmatpush.msra.mxu0 0.0
    %627 = vmatpush.msra.mxu0 0.0
    %628 = vmatpush.msra.mxu0 0.0
    %629 = vmatpush.msra.mxu0 0.0
    %630 = vmatpush.msra.mxu0 0.0
    %631 = vmatpush.msra.mxu0 0.0
    %632 = vmatpush.msra.mxu0 0.0
    %633 = vmatpush.msra.mxu0 0.0
    %634 = vmatpush.msra.mxu0 0.0
    %635 = vmatpush.msra.mxu0 %v550
    %636 = vmatpush.msra.mxu0 %v549
    %637 = vmatpush.msra.mxu0 %v548
    %638 = vmatpush.msra.mxu0 %v547
    %639 = vmatmul.f32.gmra.mxu0 %v621
    %v640 = vpop.f32.mrf.mxu0
    %v641 = vadd.f32 %v551, %v640
    %642 = vdwg.mxu0
    %v644 = vrot.slane %v641, 7
    %v646 = vadd.f32 %v545, %v644
    %v647 = vxor.u32 %v646, 2147483648
    %v648 = vmul.f32 %v647, 1.442695
    %v649 = vpow.pop %v648
    %v650 = vadd.f32 %v649, 1.0
    %v651 = vrcp.pop %v650
    %v652 = vmul.f32 %v650, %v651
    %v653 = vsub.f32 1.0, %v652
    %v654 = vmul.f32 %v651, %v653
    %v655 = vadd.f32 %v651, %v654
    %vm656 = vweird.f32 %v650
    %vm657 = vweird.f32 %v651
    %vm658 = vmor %vm656, %vm657
    %v659 = vsel %vm658, %v651, %v655
    %v660 = vand.u32 2147483647, %v650
    %vm661 = vcmp.eq.f32.partialorder %v660, 8.507059e+37
    %v662 = vand.u32 %v650, 2147483648
    %v663 = vor.u32 1.1754944e-38, %v662
    %v664 = vsel %vm661, %v663, %v659
    %v665 = vmul.f32 1.0, %v664
    %666 = vrot.lane.b32.xlu0 %v644, 64
    %v667 = vpop.permute.xlu0 %666
    %v669 = vmul.f32 %v665, %v667
    %671 = vrot.lane.b32.xlu0 %v669, 64
    %v672 = vpop.permute.xlu0 %671
    %v674 = vadd.f32 %v545, %v672
    %v675 = vtanh.pop %v674
    %v676 = vsub.f32 1.0, %v665
    %678 = vrot.lane.b32.xlu0 %v675, 96
    %v679 = vpop.permute.xlu0 %678
    %v681 = vmul.f32 %v676, %v679
    %v682 = vrot.slane %v615, 7
    %v684 = vmul.f32 %v665, %v682
    %v685 = vadd.f32 %v681, %v684
    %687 = vrot.lane.b32.xlu0 %v685, 96
    %v688 = vpop.permute.xlu0 %687
    %vm690 = vcmask 254977
    %691 = vst.msk [vmem:[#allocation3 + $0x1] sm:$0x2] %vm690, %v688
    %v692 = vrot.slane %v685, 1
    %693 = vrot.lane.b32.xlu0 %v692, 96
    %v694 = vpop.permute.xlu0 %693
    %v695 = vsel %vm523, %v694, 0
    %697 = vmatpush.msra.mxu0 0.0
    %698 = vmatpush.msra.mxu0 0.0
    %699 = vmatpush.msra.mxu0 0.0
    %700 = vmatpush.msra.mxu0 0.0
    %701 = vmatpush.msra.mxu0 0.0
    %702 = vmatpush.msra.mxu0 0.0
    %703 = vmatpush.msra.mxu0 0.0
    %704 = vmatpush.msra.mxu0 0.0
    %705 = vmatpush.msra.mxu0 0.0
    %706 = vmatpush.msra.mxu0 0.0
    %707 = vmatpush.msra.mxu0 0.0
    %708 = vmatpush.msra.mxu0 0.0
    %709 = vmatpush.msra.mxu0 %v550
    %710 = vmatpush.msra.mxu0 %v549
    %711 = vmatpush.msra.mxu0 %v548
    %712 = vmatpush.msra.mxu0 %v547
    %713 = vmatmul.f32.gmra.mxu0 %v695
    %v714 = vpop.f32.mrf.mxu0
    %v715 = vadd.f32 %v551, %v714
    %716 = vdwg.mxu0
    %v718 = vrot.slane %v715, 6
    %v720 = vadd.f32 %v545, %v718
    %v721 = vxor.u32 %v720, 2147483648
    %v722 = vmul.f32 %v721, 1.442695
    %v723 = vpow.pop %v722
    %v724 = vadd.f32 %v723, 1.0
    %v725 = vrcp.pop %v724
    %v726 = vmul.f32 %v724, %v725
    %v727 = vsub.f32 1.0, %v726
    %v728 = vmul.f32 %v725, %v727
    %v729 = vadd.f32 %v725, %v728
    %vm730 = vweird.f32 %v724
    %vm731 = vweird.f32 %v725
    %vm732 = vmor %vm730, %vm731
    %v733 = vsel %vm732, %v725, %v729
    %v734 = vand.u32 2147483647, %v724
    %vm735 = vcmp.eq.f32.partialorder %v734, 8.507059e+37
    %v736 = vand.u32 %v724, 2147483648
    %v737 = vor.u32 1.1754944e-38, %v736
    %v738 = vsel %vm735, %v737, %v733
    %v739 = vmul.f32 1.0, %v738
    %740 = vrot.lane.b32.xlu0 %v718, 64
    %v741 = vpop.permute.xlu0 %740
    %v743 = vmul.f32 %v739, %v741
    %745 = vrot.lane.b32.xlu0 %v743, 64
    %v746 = vpop.permute.xlu0 %745
    %v748 = vadd.f32 %v545, %v746
    %v749 = vtanh.pop %v748
    %v750 = vsub.f32 1.0, %v739
    %752 = vrot.lane.b32.xlu0 %v749, 96
    %v753 = vpop.permute.xlu0 %752
    %v755 = vmul.f32 %v750, %v753
    %v756 = vrot.slane %v685, 7
    %v758 = vmul.f32 %v739, %v756
    %v759 = vadd.f32 %v755, %v758
    %761 = vrot.lane.b32.xlu0 %v759, 96
    %v762 = vpop.permute.xlu0 %761
    %vm764 = vcmask 256002
    %765 = vst.msk [vmem:[#allocation3 + $0x1] sm:$0x4] %vm764, %v762
    %v766 = vrot.slane %v759, 2
    %767 = vrot.lane.b32.xlu0 %v766, 96
    %v768 = vpop.permute.xlu0 %767
    %v769 = vsel %vm523, %v768, 0
    %771 = vmatpush.msra.mxu0 0.0
    %772 = vmatpush.msra.mxu0 0.0
    %773 = vmatpush.msra.mxu0 0.0
    %774 = vmatpush.msra.mxu0 0.0
    %775 = vmatpush.msra.mxu0 0.0
    %776 = vmatpush.msra.mxu0 0.0
    %777 = vmatpush.msra.mxu0 0.0
    %778 = vmatpush.msra.mxu0 0.0
    %779 = vmatpush.msra.mxu0 0.0
    %780 = vmatpush.msra.mxu0 0.0
    %781 = vmatpush.msra.mxu0 0.0
    %782 = vmatpush.msra.mxu0 0.0
    %783 = vmatpush.msra.mxu0 %v550
    %784 = vmatpush.msra.mxu0 %v549
    %785 = vmatpush.msra.mxu0 %v548
    %786 = vmatpush.msra.mxu0 %v547
    %787 = vmatmul.f32.gmra.mxu0 %v769
    %v788 = vpop.f32.mrf.mxu0
    %v789 = vadd.f32 %v551, %v788
    %790 = vdwg.mxu0
    %v792 = vrot.slane %v789, 5
    %v794 = vadd.f32 %v545, %v792
    %v795 = vxor.u32 %v794, 2147483648
    %v796 = vmul.f32 %v795, 1.442695
    %v797 = vpow.pop %v796
    %v798 = vadd.f32 %v797, 1.0
    %v799 = vrcp.pop %v798
    %v800 = vmul.f32 %v798, %v799
    %v801 = vsub.f32 1.0, %v800
    %v802 = vmul.f32 %v799, %v801
    %v803 = vadd.f32 %v799, %v802
    %vm804 = vweird.f32 %v798
    %vm805 = vweird.f32 %v799
    %vm806 = vmor %vm804, %vm805
    %v807 = vsel %vm806, %v799, %v803
    %v808 = vand.u32 2147483647, %v798
    %vm809 = vcmp.eq.f32.partialorder %v808, 8.507059e+37
    %v810 = vand.u32 %v798, 2147483648
    %v811 = vor.u32 1.1754944e-38, %v810
    %v812 = vsel %vm809, %v811, %v807
    %v813 = vmul.f32 1.0, %v812
    %814 = vrot.lane.b32.xlu0 %v792, 64
    %v815 = vpop.permute.xlu0 %814
    %v817 = vmul.f32 %v813, %v815
    %819 = vrot.lane.b32.xlu0 %v817, 64
    %v820 = vpop.permute.xlu0 %819
    %v822 = vadd.f32 %v545, %v820
    %v823 = vtanh.pop %v822
    %v824 = vsub.f32 1.0, %v813
    %826 = vrot.lane.b32.xlu0 %v823, 96
    %v827 = vpop.permute.xlu0 %826
    %v829 = vmul.f32 %v824, %v827
    %v830 = vrot.slane %v759, 7
    %v832 = vmul.f32 %v813, %v830
    %v833 = vadd.f32 %v829, %v832
    %835 = vrot.lane.b32.xlu0 %v833, 96
    %v836 = vpop.permute.xlu0 %835
    %vm838 = vcmask 257027
    %839 = vst.msk [vmem:[#allocation3 + $0x1] sm:$0x8] %vm838, %v836
    %v840 = vrot.slane %v833, 3
    %841 = vrot.lane.b32.xlu0 %v840, 96
    %v842 = vpop.permute.xlu0 %841
    %v843 = vsel %vm523, %v842, 0
    %845 = vmatpush.msra.mxu0 0.0
    %846 = vmatpush.msra.mxu0 0.0
    %847 = vmatpush.msra.mxu0 0.0
    %848 = vmatpush.msra.mxu0 0.0
    %849 = vmatpush.msra.mxu0 0.0
    %850 = vmatpush.msra.mxu0 0.0
    %851 = vmatpush.msra.mxu0 0.0
    %852 = vmatpush.msra.mxu0 0.0
    %853 = vmatpush.msra.mxu0 0.0
    %854 = vmatpush.msra.mxu0 0.0
    %855 = vmatpush.msra.mxu0 0.0
    %856 = vmatpush.msra.mxu0 0.0
    %857 = vmatpush.msra.mxu0 %v550
    %858 = vmatpush.msra.mxu0 %v549
    %859 = vmatpush.msra.mxu0 %v548
    %860 = vmatpush.msra.mxu0 %v547
    %861 = vmatmul.f32.gmra.mxu0 %v843
    %v862 = vpop.f32.mrf.mxu0
    %v863 = vadd.f32 %v551, %v862
    %864 = vdwg.mxu0
    %v866 = vrot.slane %v863, 4
    %v868 = vadd.f32 %v545, %v866
    %v869 = vxor.u32 %v868, 2147483648
    %v870 = vmul.f32 %v869, 1.442695
    %v871 = vpow.pop %v870
    %v872 = vadd.f32 %v871, 1.0
    %v873 = vrcp.pop %v872
    %v874 = vmul.f32 %v872, %v873
    %v875 = vsub.f32 1.0, %v874
    %v876 = vmul.f32 %v873, %v875
    %v877 = vadd.f32 %v873, %v876
    %vm878 = vweird.f32 %v872
    %vm879 = vweird.f32 %v873
    %vm880 = vmor %vm878, %vm879
    %v881 = vsel %vm880, %v873, %v877
    %v882 = vand.u32 2147483647, %v872
    %vm883 = vcmp.eq.f32.partialorder %v882, 8.507059e+37
    %v884 = vand.u32 %v872, 2147483648
    %v885 = vor.u32 1.1754944e-38, %v884
    %v886 = vsel %vm883, %v885, %v881
    %v887 = vmul.f32 1.0, %v886
    %888 = vrot.lane.b32.xlu0 %v866, 64
    %v889 = vpop.permute.xlu0 %888
    %v891 = vmul.f32 %v887, %v889
    %893 = vrot.lane.b32.xlu0 %v891, 64
    %v894 = vpop.permute.xlu0 %893
    %v896 = vadd.f32 %v545, %v894
    %v897 = vtanh.pop %v896
    %v898 = vsub.f32 1.0, %v887
    %900 = vrot.lane.b32.xlu0 %v897, 96
    %v901 = vpop.permute.xlu0 %900
    %v903 = vmul.f32 %v898, %v901
    %v904 = vrot.slane %v833, 7
    %v906 = vmul.f32 %v887, %v904
    %v907 = vadd.f32 %v903, %v906
    %909 = vrot.lane.b32.xlu0 %v907, 96
    %v910 = vpop.permute.xlu0 %909
    %vm912 = vcmask 258052
    %913 = vst.msk [vmem:[#allocation3 + $0x1] sm:$0x10] %vm912, %v910
    %v914 = vrot.slane %v907, 4
    %915 = vrot.lane.b32.xlu0 %v914, 96
    %v916 = vpop.permute.xlu0 %915
    %v917 = vsel %vm523, %v916, 0
    %919 = vmatpush.msra.mxu0 0.0
    %920 = vmatpush.msra.mxu0 0.0
    %921 = vmatpush.msra.mxu0 0.0
    %922 = vmatpush.msra.mxu0 0.0
    %923 = vmatpush.msra.mxu0 0.0
    %924 = vmatpush.msra.mxu0 0.0
    %925 = vmatpush.msra.mxu0 0.0
    %926 = vmatpush.msra.mxu0 0.0
    %927 = vmatpush.msra.mxu0 0.0
    %928 = vmatpush.msra.mxu0 0.0
    %929 = vmatpush.msra.mxu0 0.0
    %930 = vmatpush.msra.mxu0 0.0
    %931 = vmatpush.msra.mxu0 %v550
    %932 = vmatpush.msra.mxu0 %v549
    %933 = vmatpush.msra.mxu0 %v548
    %934 = vmatpush.msra.mxu0 %v547
    %935 = vmatmul.f32.gmra.mxu0 %v917
    %v936 = vpop.f32.mrf.mxu0
    %v937 = vadd.f32 %v551, %v936
    %938 = vdwg.mxu0
    %v940 = vrot.slane %v937, 3
    %v942 = vadd.f32 %v545, %v940
    %v943 = vxor.u32 %v942, 2147483648
    %v944 = vmul.f32 %v943, 1.442695
    %v945 = vpow.pop %v944
    %v946 = vadd.f32 %v945, 1.0
    %v947 = vrcp.pop %v946
    %v948 = vmul.f32 %v946, %v947
    %v949 = vsub.f32 1.0, %v948
    %v950 = vmul.f32 %v947, %v949
    %v951 = vadd.f32 %v947, %v950
    %vm952 = vweird.f32 %v946
    %vm953 = vweird.f32 %v947
    %vm954 = vmor %vm952, %vm953
    %v955 = vsel %vm954, %v947, %v951
    %v956 = vand.u32 2147483647, %v946
    %vm957 = vcmp.eq.f32.partialorder %v956, 8.507059e+37
    %v958 = vand.u32 %v946, 2147483648
    %v959 = vor.u32 1.1754944e-38, %v958
    %v960 = vsel %vm957, %v959, %v955
    %v961 = vmul.f32 1.0, %v960
    %962 = vrot.lane.b32.xlu0 %v940, 64
    %v963 = vpop.permute.xlu0 %962
    %v965 = vmul.f32 %v961, %v963
    %967 = vrot.lane.b32.xlu0 %v965, 64
    %v968 = vpop.permute.xlu0 %967
    %v970 = vadd.f32 %v545, %v968
    %v971 = vtanh.pop %v970
    %v972 = vsub.f32 1.0, %v961
    %974 = vrot.lane.b32.xlu0 %v971, 96
    %v975 = vpop.permute.xlu0 %974
    %v977 = vmul.f32 %v972, %v975
    %v978 = vrot.slane %v907, 7
    %v980 = vmul.f32 %v961, %v978
    %v981 = vadd.f32 %v977, %v980
    %983 = vrot.lane.b32.xlu0 %v981, 96
    %v984 = vpop.permute.xlu0 %983
    %vm986 = vcmask 259077
    %987 = vst.msk [vmem:[#allocation3 + $0x1] sm:$0x20] %vm986, %v984
    %v988 = vrot.slane %v981, 5
    %989 = vrot.lane.b32.xlu0 %v988, 96
    %v990 = vpop.permute.xlu0 %989
    %v991 = vsel %vm523, %v990, 0
    %993 = vmatpush.msra.mxu0 0.0
    %994 = vmatpush.msra.mxu0 0.0
    %995 = vmatpush.msra.mxu0 0.0
    %996 = vmatpush.msra.mxu0 0.0
    %997 = vmatpush.msra.mxu0 0.0
    %998 = vmatpush.msra.mxu0 0.0
    %999 = vmatpush.msra.mxu0 0.0
    %1000 = vmatpush.msra.mxu0 0.0
    %1001 = vmatpush.msra.mxu0 0.0
    %1002 = vmatpush.msra.mxu0 0.0
    %1003 = vmatpush.msra.mxu0 0.0
    %1004 = vmatpush.msra.mxu0 0.0
    %1005 = vmatpush.msra.mxu0 %v550
    %1006 = vmatpush.msra.mxu0 %v549
    %1007 = vmatpush.msra.mxu0 %v548
    %1008 = vmatpush.msra.mxu0 %v547
    %1009 = vmatmul.f32.gmra.mxu0 %v991
    %v1010 = vpop.f32.mrf.mxu0
    %v1011 = vadd.f32 %v551, %v1010
    %1012 = vdwg.mxu0
    %v1014 = vrot.slane %v1011, 2
    %v1016 = vadd.f32 %v545, %v1014
    %v1017 = vxor.u32 %v1016, 2147483648
    %v1018 = vmul.f32 %v1017, 1.442695
    %v1019 = vpow.pop %v1018
    %v1020 = vadd.f32 %v1019, 1.0
    %v1021 = vrcp.pop %v1020
    %v1022 = vmul.f32 %v1020, %v1021
    %v1023 = vsub.f32 1.0, %v1022
    %v1024 = vmul.f32 %v1021, %v1023
    %v1025 = vadd.f32 %v1021, %v1024
    %vm1026 = vweird.f32 %v1020
    %vm1027 = vweird.f32 %v1021
    %vm1028 = vmor %vm1026, %vm1027
    %v1029 = vsel %vm1028, %v1021, %v1025
    %v1030 = vand.u32 2147483647, %v1020
    %vm1031 = vcmp.eq.f32.partialorder %v1030, 8.507059e+37
    %v1032 = vand.u32 %v1020, 2147483648
    %v1033 = vor.u32 1.1754944e-38, %v1032
    %v1034 = vsel %vm1031, %v1033, %v1029
    %v1035 = vmul.f32 1.0, %v1034
    %1036 = vrot.lane.b32.xlu0 %v1014, 64
    %v1037 = vpop.permute.xlu0 %1036
    %v1039 = vmul.f32 %v1035, %v1037
    %1041 = vrot.lane.b32.xlu0 %v1039, 64
    %v1042 = vpop.permute.xlu0 %1041
    %v1044 = vadd.f32 %v545, %v1042
    %v1045 = vtanh.pop %v1044
    %v1046 = vsub.f32 1.0, %v1035
    %1048 = vrot.lane.b32.xlu0 %v1045, 96
    %v1049 = vpop.permute.xlu0 %1048
    %v1051 = vmul.f32 %v1046, %v1049
    %v1052 = vrot.slane %v981, 7
    %v1054 = vmul.f32 %v1035, %v1052
    %v1055 = vadd.f32 %v1051, %v1054
    %1057 = vrot.lane.b32.xlu0 %v1055, 96
    %v1058 = vpop.permute.xlu0 %1057
    %vm1060 = vcmask 260102
    %1061 = vst.msk [vmem:[#allocation3 + $0x1] sm:$0x40] %vm1060, %v1058
    %v1062 = vrot.slane %v1055, 6
    %1063 = vrot.lane.b32.xlu0 %v1062, 96
    %v1064 = vpop.permute.xlu0 %1063
    %v1065 = vsel %vm523, %v1064, 0
    %1067 = vmatpush.msra.mxu0 0.0
    %1068 = vmatpush.msra.mxu0 0.0
    %1069 = vmatpush.msra.mxu0 0.0
    %1070 = vmatpush.msra.mxu0 0.0
    %1071 = vmatpush.msra.mxu0 0.0
    %1072 = vmatpush.msra.mxu0 0.0
    %1073 = vmatpush.msra.mxu0 0.0
    %1074 = vmatpush.msra.mxu0 0.0
    %1075 = vmatpush.msra.mxu0 0.0
    %1076 = vmatpush.msra.mxu0 0.0
    %1077 = vmatpush.msra.mxu0 0.0
    %1078 = vmatpush.msra.mxu0 0.0
    %1079 = vmatpush.msra.mxu0 %v550
    %1080 = vmatpush.msra.mxu0 %v549
    %1081 = vmatpush.msra.mxu0 %v548
    %1082 = vmatpush.msra.mxu0 %v547
    %1083 = vmatmul.f32.gmra.mxu0 %v1065
    %v1084 = vpop.f32.mrf.mxu0
    %v1085 = vadd.f32 %v551, %v1084
    %1086 = vdwg.mxu0
    %v1088 = vrot.slane %v1085, 1
    %v1090 = vadd.f32 %v545, %v1088
    %v1091 = vxor.u32 %v1090, 2147483648
    %v1092 = vmul.f32 %v1091, 1.442695
    %v1093 = vpow.pop %v1092
    %v1094 = vadd.f32 %v1093, 1.0
    %v1095 = vrcp.pop %v1094
    %v1096 = vmul.f32 %v1094, %v1095
    %v1097 = vsub.f32 1.0, %v1096
    %v1098 = vmul.f32 %v1095, %v1097
    %v1099 = vadd.f32 %v1095, %v1098
    %vm1100 = vweird.f32 %v1094
    %vm1101 = vweird.f32 %v1095
    %vm1102 = vmor %vm1100, %vm1101
    %v1103 = vsel %vm1102, %v1095, %v1099
    %v1104 = vand.u32 2147483647, %v1094
    %vm1105 = vcmp.eq.f32.partialorder %v1104, 8.507059e+37
    %v1106 = vand.u32 %v1094, 2147483648
    %v1107 = vor.u32 1.1754944e-38, %v1106
    %v1108 = vsel %vm1105, %v1107, %v1103
    %v1109 = vmul.f32 1.0, %v1108
    %1110 = vrot.lane.b32.xlu0 %v1088, 64
    %v1111 = vpop.permute.xlu0 %1110
    %v1113 = vmul.f32 %v1109, %v1111
    %1115 = vrot.lane.b32.xlu0 %v1113, 64
    %v1116 = vpop.permute.xlu0 %1115
    %v1118 = vadd.f32 %v545, %v1116
    %v1119 = vtanh.pop %v1118
    %v1120 = vsub.f32 1.0, %v1109
    %1122 = vrot.lane.b32.xlu0 %v1119, 96
    %v1123 = vpop.permute.xlu0 %1122
    %v1125 = vmul.f32 %v1120, %v1123
    %v1126 = vrot.slane %v1055, 7
    %v1128 = vmul.f32 %v1109, %v1126
    %v1129 = vadd.f32 %v1125, %v1128
    %1131 = vrot.lane.b32.xlu0 %v1129, 96
    %v1132 = vpop.permute.xlu0 %1131
    %vm1134 = vcmask 261127
    %1135 = vst.msk [vmem:[#allocation3 + $0x1] sm:$0x80] %vm1134, %v1132
    %v1136 = vld [vmem:[#allocation3] sm:$0xff]
    %v1137 = vld [vmem:[#allocation3 + $0x8] sm:$0x1]
    %v1138 = vld [vmem:[%s13] sm:$0xff]
    %v1139 = vld [vmem:[%s13 + $0x8] sm:$0xff]
    %v1140 = vld [vmem:[%s13 + $0x10] sm:$0xff]
    %v1141 = vld [vmem:[%s13 + $0x18] sm:$0xff]
    %v1143 = vsel %vm523, %v1136, 0
    %v1146 = vsel %vm523, %v1137, 0
    %1148 = vmatpush.msra.mxu0 0.0
    %1149 = vmatpush.msra.mxu0 0.0
    %1150 = vmatpush.msra.mxu0 0.0
    %1151 = vmatpush.msra.mxu0 0.0
    %1152 = vmatpush.msra.mxu0 0.0
    %1153 = vmatpush.msra.mxu0 0.0
    %1154 = vmatpush.msra.mxu0 0.0
    %1155 = vmatpush.msra.mxu0 0.0
    %1156 = vmatpush.msra.mxu0 0.0
    %1157 = vmatpush.msra.mxu0 0.0
    %1158 = vmatpush.msra.mxu0 0.0
    %1159 = vmatpush.msra.mxu0 0.0
    %1160 = vmatpush.msra.mxu0 %v1141
    %1161 = vmatpush.msra.mxu0 %v1140
    %1162 = vmatpush.msra.mxu0 %v1139
    %1163 = vmatpush.msra.mxu0 %v1138
    %1164 = vmatmul.f32.gmra.mxu0 %v1143
    %v1165 = vpop.f32.mrf.mxu0
    %v1166 = vadd.f32 0.0, %v1165
    %1167 = vmatmul.f32.gmra.mxu0 %v1146
    %v1168 = vpop.f32.mrf.mxu0
    %v1169 = vadd.f32 0.0, %v1168
    %1170 = vdwg.mxu0
    %v1171 = vld [vmem:[#allocation14] sm:$0xff]
    %v1172 = vld [vmem:[#allocation14 + $0x8] sm:$0xff]
    %v1173 = vld [vmem:[#allocation14 + $0x10] sm:$0xff]
    %v1174 = vld [vmem:[#allocation14 + $0x18] sm:$0xff]
    %v1175 = vld [vmem:[#allocation16] sm:$0xff]
    %v1176 = vld [vmem:[#allocation16 + $0x8] sm:$0xff]
    %v1177 = vld [vmem:[#allocation16 + $0x10] sm:$0xff]
    %v1178 = vld [vmem:[#allocation16 + $0x18] sm:$0xff]
    %v1179 = vld [vmem:[%s11] sm:$0x1]
    %v1180 = vld [vmem:[%s12] sm:$0x1]
    %v1181 = vld [vmem:[%s14] sm:$0xff]
    %v1182 = vld [vmem:[%s14 + $0x8] sm:$0xff]
    %v1183 = vld [vmem:[%s14 + $0x10] sm:$0xff]
    %v1184 = vld [vmem:[%s14 + $0x18] sm:$0xff]
    %v1185 = vld [vmem:[%s15] sm:$0x1]
    %v1186 = vlaneseq
    %v1187 = vshrl.u32 %v1186, 7
    %v1188 = vadd.s32 %v1187, 8
    %v1189 = vcvt.s32.f32 %v1187
    %v1190 = vcvt.s32.f32 %v1188
    %v1191 = vsel %vm523, %v514, 0.0
    %v1192 = vrot.slane %v1191, 4
    %v1193 = vadd.f32 %v1191, %v1192
    %v1194 = vrot.slane %v1193, 2
    %v1195 = vadd.f32 %v1193, %v1194
    %v1196 = vrot.slane %v1195, 1
    %v1197 = vadd.f32 %v1195, %v1196
    %v1198 = vrcp.pop 8.0
    %v1199 = vmul.f32 8.0, %v1198
    %v1200 = vsub.f32 1.0, %v1199
    %v1201 = vmul.f32 %v1198, %v1200
    %v1202 = vadd.f32 %v1198, %v1201
    %vm1203 = vweird.f32 %v1198
    %v1204 = vsel %vm1203, %v1198, %v1202
    %v1205 = vmul.f32 %v1197, %v1204
    %v1207 = vsel %vm523, %v1205, 0
    %1209 = vmatpush.msra.mxu0 0.0
    %1210 = vmatpush.msra.mxu0 0.0
    %1211 = vmatpush.msra.mxu0 0.0
    %1212 = vmatpush.msra.mxu0 0.0
    %1213 = vmatpush.msra.mxu0 0.0
    %1214 = vmatpush.msra.mxu0 0.0
    %1215 = vmatpush.msra.mxu0 0.0
    %1216 = vmatpush.msra.mxu0 0.0
    %1217 = vmatpush.msra.mxu0 0.0
    %1218 = vmatpush.msra.mxu0 0.0
    %1219 = vmatpush.msra.mxu0 0.0
    %1220 = vmatpush.msra.mxu0 0.0
    %1221 = vmatpush.msra.mxu0 %v1174
    %1222 = vmatpush.msra.mxu0 %v1173
    %1223 = vmatpush.msra.mxu0 %v1172
    %1224 = vmatpush.msra.mxu0 %v1171
    %1225 = vmatmul.f32.gmra.mxu0 %v1207
    %v1226 = vpop.f32.mrf.mxu0
    %v1227 = vadd.f32 %v1179, %v1226
    %1228 = vdwg.mxu0
    %v1229 = vrot.slane %v1129, 7
    %1230 = vrot.lane.b32.xlu0 %v1229, 96
    %v1231 = vpop.permute.xlu0 %1230
    %v1232 = vsel %vm523, %v1231, 0
    %1234 = vmatpush.msra.mxu0 0.0
    %1235 = vmatpush.msra.mxu0 0.0
    %1236 = vmatpush.msra.mxu0 0.0
    %1237 = vmatpush.msra.mxu0 0.0
    %1238 = vmatpush.msra.mxu0 0.0
    %1239 = vmatpush.msra.mxu0 0.0
    %1240 = vmatpush.msra.mxu0 0.0
    %1241 = vmatpush.msra.mxu0 0.0
    %1242 = vmatpush.msra.mxu0 0.0
    %1243 = vmatpush.msra.mxu0 0.0
    %1244 = vmatpush.msra.mxu0 0.0
    %1245 = vmatpush.msra.mxu0 0.0
    %1246 = vmatpush.msra.mxu0 %v1178
    %1247 = vmatpush.msra.mxu0 %v1177
    %1248 = vmatpush.msra.mxu0 %v1176
    %1249 = vmatpush.msra.mxu0 %v1175
    %1250 = vmatmul.f32.gmra.mxu0 %v1232
    %v1251 = vpop.f32.mrf.mxu0
    %v1252 = vadd.f32 %v1180, %v1251
    %1253 = vdwg.mxu0
    %v1254 = vadd.f32 %v1227, %v1252
    %v1255 = vxor.u32 %v1254, 2147483648
    %v1256 = vmul.f32 %v1255, 1.442695
    %v1257 = vpow.pop %v1256
    %v1258 = vadd.f32 %v1257, 1.0
    %v1259 = vrcp.pop %v1258
    %v1260 = vmul.f32 %v1258, %v1259
    %v1261 = vsub.f32 1.0, %v1260
    %v1262 = vmul.f32 %v1259, %v1261
    %v1263 = vadd.f32 %v1259, %v1262
    %vm1264 = vweird.f32 %v1258
    %vm1265 = vweird.f32 %v1259
    %vm1266 = vmor %vm1264, %vm1265
    %v1267 = vsel %vm1266, %v1259, %v1263
    %v1268 = vand.u32 2147483647, %v1258
    %vm1269 = vcmp.eq.f32.partialorder %v1268, 8.507059e+37
    %v1270 = vand.u32 %v1258, 2147483648
    %v1271 = vor.u32 1.1754944e-38, %v1270
    %v1272 = vsel %vm1269, %v1271, %v1267
    %v1273 = vmul.f32 1.0, %v1272
    %1275 = vrot.lane.b32.xlu0 %v1252, 64
    %v1276 = vpop.permute.xlu0 %1275
    %v1278 = vmul.f32 %v1273, %v1276
    %1280 = vrot.lane.b32.xlu0 %v1278, 64
    %v1281 = vpop.permute.xlu0 %1280
    %v1283 = vadd.f32 %v1227, %v1281
    %v1284 = vtanh.pop %v1283
    %v1285 = vsub.f32 1.0, %v1273
    %1287 = vrot.lane.b32.xlu0 %v1284, 96
    %v1288 = vpop.permute.xlu0 %1287
    %v1290 = vmul.f32 %v1285, %v1288
    %v1292 = vmul.f32 %v1273, %v1229
    %v1293 = vadd.f32 %v1290, %v1292
    %1295 = vrot.lane.b32.xlu0 %v1293, 96
    %v1296 = vpop.permute.xlu0 %1295
    %v1297 = vsel %vm523, %v1296, 0
    %1299 = vmatpush.msra.mxu0 0.0
    %1300 = vmatpush.msra.mxu0 0.0
    %1301 = vmatpush.msra.mxu0 0.0
    %1302 = vmatpush.msra.mxu0 0.0
    %1303 = vmatpush.msra.mxu0 0.0
    %1304 = vmatpush.msra.mxu0 0.0
    %1305 = vmatpush.msra.mxu0 0.0
    %1306 = vmatpush.msra.mxu0 0.0
    %1307 = vmatpush.msra.mxu0 0.0
    %1308 = vmatpush.msra.mxu0 0.0
    %1309 = vmatpush.msra.mxu0 0.0
    %1310 = vmatpush.msra.mxu0 0.0
    %1311 = vmatpush.msra.mxu0 %v1184
    %1312 = vmatpush.msra.mxu0 %v1183
    %1313 = vmatpush.msra.mxu0 %v1182
    %1314 = vmatpush.msra.mxu0 %v1181
    %1315 = vmatmul.f32.gmra.mxu0 %v1297
    %v1316 = vpop.f32.mrf.mxu0
    %v1317 = vadd.f32 0.0, %v1316
    %1318 = vdwg.mxu0
    %v1319 = vperm.slane %v1317, 0
    %v1320 = vadd.f32 %v1166, %v1319
    %v1321 = vadd.f32 %v1169, %v1319
    %v1322 = vtanh.pop %v1320
    %v1323 = vtanh.pop %v1321
    %v1325 = vperm.slane %v1185, 0
    %v1327 = vmul.f32 %v1322, %v1325
    %v1328 = vmul.f32 %v1323, %v1325
    %vm1329 = vcmask 130048
    %v1330 = vsel %vm1329, %v1327, 0.0
    %1331 = vadd.xlane.f32.xlu0 %v1330
    %v1332 = vpop.xlane.xlu0 %1331
    %vm1333 = vcmask 122880
    %v1334 = vsel %vm1333, %v1328, 0.0
    %1335 = vadd.xlane.f32.xlu0 %v1334
    %v1336 = vpop.xlane.xlu0 %1335
    %v1337 = vmax.f32 %v1332, 0.0
    %v1338 = vmax.f32 %v1336, 0.0
    %v1339 = vsel %vm490, %v1338, -inf
    %v1340 = vmax.f32 %v1337, %v1339
    %v1341 = vrot.slane %v1340, 4
    %v1342 = vmax.f32 %v1340, %v1341
    %v1343 = vrot.slane %v1342, 2
    %v1344 = vmax.f32 %v1342, %v1343
    %v1345 = vrot.slane %v1344, 1
    %v1346 = vmax.f32 %v1344, %v1345
    %v1347 = vsub.f32 %v1337, %v1346
    %v1348 = vsub.f32 %v1338, %v1346
    %v1349 = vmul.f32 %v1347, 1.442695
    %v1350 = vpow.pop %v1349
    %v1351 = vmul.f32 %v1348, 1.442695
    %v1352 = vpow.pop %v1351
    %v1353 = vsel %vm490, %v1352, 0.0
    %v1354 = vadd.f32 %v1350, %v1353
    %v1355 = vrot.slane %v1354, 4
    %v1356 = vadd.f32 %v1354, %v1355
    %v1357 = vrot.slane %v1356, 2
    %v1358 = vadd.f32 %v1356, %v1357
    %v1359 = vrot.slane %v1358, 1
    %v1360 = vadd.f32 %v1358, %v1359
    %v1361 = vrcp.pop %v1360
    %v1362 = vmul.f32 %v1360, %v1361
    %v1363 = vsub.f32 1.0, %v1362
    %v1364 = vmul.f32 %v1361, %v1363
    %v1365 = vadd.f32 %v1361, %v1364
    %vm1366 = vweird.f32 %v1360
    %vm1367 = vweird.f32 %v1361
    %vm1368 = vmor %vm1366, %vm1367
    %v1369 = vsel %vm1368, %v1361, %v1365
    %v1370 = vand.u32 2147483647, %v1360
    %vm1371 = vcmp.eq.f32.partialorder %v1370, 8.507059e+37
    %v1372 = vand.u32 %v1360, 2147483648
    %v1373 = vor.u32 1.1754944e-38, %v1372
    %v1374 = vsel %vm1371, %v1373, %v1369
    %v1375 = vmul.f32 %v1350, %v1374
    %v1376 = vmul.f32 %v1352, %v1374
    %v1377 = vsel %vm490, %v1376, -inf
    %v1378 = vmax.f32 %v1375, %v1377
    %v1379 = vrot.slane %v1378, 4
    %v1380 = vmax.f32 %v1378, %v1379
    %v1381 = vrot.slane %v1380, 2
    %v1382 = vmax.f32 %v1380, %v1381
    %v1383 = vrot.slane %v1382, 1
    %v1384 = vmax.f32 %v1382, %v1383
    %vm1385 = vcmp.eq.f32.partialorder %v1375, %v1384
    %vm1386 = vcmp.eq.f32.partialorder %v1376, %v1384
    %v1387 = vsel %vm1385, %v1189, 9.0
    %v1388 = vsel %vm1386, %v1190, 9.0
    %v1389 = vsel %vm490, %v1388, inf
    %v1390 = vmin.f32 %v1387, %v1389
    %v1391 = vrot.slane %v1390, 4
    %v1392 = vmin.f32 %v1390, %v1391
    %v1393 = vrot.slane %v1392, 2
    %v1394 = vmin.f32 %v1392, %v1393
    %v1395 = vrot.slane %v1394, 1
    %v1396 = vmin.f32 %v1394, %v1395
    %v1397 = vcvt.f32.s32.to.zero.pseudo %v1396
    %vm1398 = vcmp.eq.s32.totalorder %v1187, %v1397
    %vm1399 = vcmp.eq.s32.totalorder %v1188, %v1397
    %v1400 = vsel %vm1398, %v1375, 0.0
    %v1401 = vsel %vm1399, %v1376, 0.0
    %v1402 = vsel %vm490, %v1401, 0.0
    %v1403 = vadd.f32 %v1400, %v1402
    %v1404 = vrot.slane %v1403, 4
    %v1405 = vadd.f32 %v1403, %v1404
    %v1406 = vrot.slane %v1405, 2
    %v1407 = vadd.f32 %v1405, %v1406
    %v1408 = vrot.slane %v1407, 1
    %v1409 = vadd.f32 %v1407, %v1408
    %v1410 = vlog2.pop %v1409
    %v1411 = vmul.f32 %v1410, 0.6931472
    %vm1412 = vcmask 0
    %1413 = vst.msk [vmem:[#allocation17] sm:$0x1] %vm1412, %v1397
    %v1414 = vadd.f32 %v1411, 0.0
    %v1415 = vsel %vm1398, 1e-12, 1.0
    %v1416 = vsel %vm1399, 1e-12, 1.0
    %v1417 = vsub.s32 %v1397, 1
    %vm1418 = vcmp.eq.s32.totalorder %v1187, %v1417
    %v1419 = vsel %vm1418, 1, 0
    %vm1420 = vcmp.eq.s32.totalorder %v1419, 1
    %v1421 = vsel %vm1420, %v514, 0.0
    %v1422 = vsel %vm523, %v1421, 0.0
    %v1423 = vrot.slane %v1422, 4
    %v1424 = vadd.f32 %v1422, %v1423
    %v1425 = vrot.slane %v1424, 2
    %v1426 = vadd.f32 %v1424, %v1425
    %v1427 = vrot.slane %v1426, 1
    %v1428 = vadd.f32 %v1426, %v1427
    %vm1429 = vcmp.gt.s32.totalorder %v1397, 0
    %v1430 = vsel %vm1429, 1, 0
    %vm1431 = vcmp.eq.s32.totalorder %v1430, 1
    %v1432 = vsel %vm1431, %v1428, %v1205
    %vm1433 = vcmp.eq.s32.totalorder %v1397, 0
    %v1435 = vsel %vm523, %v1432, 0
    %1437 = vmatpush.msra.mxu0 0.0
    %1438 = vmatpush.msra.mxu0 0.0
    %1439 = vmatpush.msra.mxu0 0.0
    %1440 = vmatpush.msra.mxu0 0.0
    %1441 = vmatpush.msra.mxu0 0.0
    %1442 = vmatpush.msra.mxu0 0.0
    %1443 = vmatpush.msra.mxu0 0.0
    %1444 = vmatpush.msra.mxu0 0.0
    %1445 = vmatpush.msra.mxu0 0.0
    %1446 = vmatpush.msra.mxu0 0.0
    %1447 = vmatpush.msra.mxu0 0.0
    %1448 = vmatpush.msra.mxu0 0.0
    %1449 = vmatpush.msra.mxu0 %v1174
    %1450 = vmatpush.msra.mxu0 %v1173
    %1451 = vmatpush.msra.mxu0 %v1172
    %1452 = vmatpush.msra.mxu0 %v1171
    %1453 = vmatmul.f32.gmra.mxu0 %v1435
    %v1454 = vpop.f32.mrf.mxu0
    %v1455 = vadd.f32 %v1179, %v1454
    %1456 = vdwg.mxu0
    %1457 = vmatpush.msra.mxu0 0.0
    %1458 = vmatpush.msra.mxu0 0.0
    %1459 = vmatpush.msra.mxu0 0.0
    %1460 = vmatpush.msra.mxu0 0.0
    %1461 = vmatpush.msra.mxu0 0.0
    %1462 = vmatpush.msra.mxu0 0.0
    %1463 = vmatpush.msra.mxu0 0.0
    %1464 = vmatpush.msra.mxu0 0.0
    %1465 = vmatpush.msra.mxu0 0.0
    %1466 = vmatpush.msra.mxu0 0.0
    %1467 = vmatpush.msra.mxu0 0.0
    %1468 = vmatpush.msra.mxu0 0.0
    %1469 = vmatpush.msra.mxu0 %v1178
    %1470 = vmatpush.msra.mxu0 %v1177
    %1471 = vmatpush.msra.mxu0 %v1176
    %1472 = vmatpush.msra.mxu0 %v1175
    %1473 = vmatmul.f32.gmra.mxu0 %v1297
    %v1474 = vpop.f32.mrf.mxu0
    %v1475 = vadd.f32 %v1180, %v1474
    %1476 = vdwg.mxu0
    %v1477 = vadd.f32 %v1455, %v1475
    %v1478 = vxor.u32 %v1477, 2147483648
    %v1479 = vmul.f32 %v1478, 1.442695
    %v1480 = vpow.pop %v1479
    %v1481 = vadd.f32 %v1480, 1.0
    %v1482 = vrcp.pop %v1481
    %v1483 = vmul.f32 %v1481, %v1482
    %v1484 = vsub.f32 1.0, %v1483
    %v1485 = vmul.f32 %v1482, %v1484
    %v1486 = vadd.f32 %v1482, %v1485
    %vm1487 = vweird.f32 %v1481
    %vm1488 = vweird.f32 %v1482
    %vm1489 = vmor %vm1487, %vm1488
    %v1490 = vsel %vm1489, %v1482, %v1486
    %v1491 = vand.u32 2147483647, %v1481
    %vm1492 = vcmp.eq.f32.partialorder %v1491, 8.507059e+37
    %v1493 = vand.u32 %v1481, 2147483648
    %v1494 = vor.u32 1.1754944e-38, %v1493
    %v1495 = vsel %vm1492, %v1494, %v1490
    %v1496 = vmul.f32 1.0, %v1495
    %1498 = vrot.lane.b32.xlu0 %v1475, 64
    %v1499 = vpop.permute.xlu0 %1498
    %v1501 = vmul.f32 %v1496, %v1499
    %1503 = vrot.lane.b32.xlu0 %v1501, 64
    %v1504 = vpop.permute.xlu0 %1503
    %v1506 = vadd.f32 %v1455, %v1504
    %v1507 = vtanh.pop %v1506
    %v1508 = vsub.f32 1.0, %v1496
    %1510 = vrot.lane.b32.xlu0 %v1507, 96
    %v1511 = vpop.permute.xlu0 %1510
    %v1513 = vmul.f32 %v1508, %v1511
    %v1514 = vmul.f32 %v1496, %v1293
    %v1515 = vadd.f32 %v1513, %v1514
    %1517 = vrot.lane.b32.xlu0 %v1515, 96
    %v1518 = vpop.permute.xlu0 %1517
    %v1519 = vsel %vm523, %v1518, 0
    %1521 = vmatpush.msra.mxu0 0.0
    %1522 = vmatpush.msra.mxu0 0.0
    %1523 = vmatpush.msra.mxu0 0.0
    %1524 = vmatpush.msra.mxu0 0.0
    %1525 = vmatpush.msra.mxu0 0.0
    %1526 = vmatpush.msra.mxu0 0.0
    %1527 = vmatpush.msra.mxu0 0.0
    %1528 = vmatpush.msra.mxu0 0.0
    %1529 = vmatpush.msra.mxu0 0.0
    %1530 = vmatpush.msra.mxu0 0.0
    %1531 = vmatpush.msra.mxu0 0.0
    %1532 = vmatpush.msra.mxu0 0.0
    %1533 = vmatpush.msra.mxu0 %v1184
    %1534 = vmatpush.msra.mxu0 %v1183
    %1535 = vmatpush.msra.mxu0 %v1182
    %1536 = vmatpush.msra.mxu0 %v1181
    %1537 = vmatmul.f32.gmra.mxu0 %v1519
    %v1538 = vpop.f32.mrf.mxu0
    %v1539 = vadd.f32 0.0, %v1538
    %1540 = vdwg.mxu0
    %v1541 = vperm.slane %v1539, 0
    %v1542 = vadd.f32 %v1166, %v1541
    %v1543 = vadd.f32 %v1169, %v1541
    %v1544 = vtanh.pop %v1542
    %v1545 = vtanh.pop %v1543
    %v1546 = vmul.f32 %v1544, %v1325
    %v1547 = vmul.f32 %v1545, %v1325
    %v1548 = vsel %vm1329, %v1546, 0.0
    %1549 = vadd.xlane.f32.xlu0 %v1548
    %v1550 = vpop.xlane.xlu0 %1549
    %v1551 = vsel %vm1333, %v1547, 0.0
    %1552 = vadd.xlane.f32.xlu0 %v1551
    %v1553 = vpop.xlane.xlu0 %1552
    %v1554 = vmax.f32 %v1550, 0.0
    %v1555 = vmax.f32 %v1553, 0.0
    %v1556 = vmul.f32 %v1554, %v1415
    %v1557 = vmul.f32 %v1555, %v1416
    %v1558 = vsel %vm490, %v1557, -inf
    %v1559 = vmax.f32 %v1556, %v1558
    %v1560 = vrot.slane %v1559, 4
    %v1561 = vmax.f32 %v1559, %v1560
    %v1562 = vrot.slane %v1561, 2
    %v1563 = vmax.f32 %v1561, %v1562
    %v1564 = vrot.slane %v1563, 1
    %v1565 = vmax.f32 %v1563, %v1564
    %v1566 = vsub.f32 %v1556, %v1565
    %v1567 = vsub.f32 %v1557, %v1565
    %v1568 = vmul.f32 %v1566, 1.442695
    %v1569 = vpow.pop %v1568
    %v1570 = vmul.f32 %v1567, 1.442695
    %v1571 = vpow.pop %v1570
    %v1572 = vsel %vm490, %v1571, 0.0
    %v1573 = vadd.f32 %v1569, %v1572
    %v1574 = vrot.slane %v1573, 4
    %v1575 = vadd.f32 %v1573, %v1574
    %v1576 = vrot.slane %v1575, 2
    %v1577 = vadd.f32 %v1575, %v1576
    %v1578 = vrot.slane %v1577, 1
    %v1579 = vadd.f32 %v1577, %v1578
    %v1580 = vrcp.pop %v1579
    %v1581 = vmul.f32 %v1579, %v1580
    %v1582 = vsub.f32 1.0, %v1581
    %v1583 = vmul.f32 %v1580, %v1582
    %v1584 = vadd.f32 %v1580, %v1583
    %vm1585 = vweird.f32 %v1579
    %vm1586 = vweird.f32 %v1580
    %vm1587 = vmor %vm1585, %vm1586
    %v1588 = vsel %vm1587, %v1580, %v1584
    %v1589 = vand.u32 2147483647, %v1579
    %vm1590 = vcmp.eq.f32.partialorder %v1589, 8.507059e+37
    %v1591 = vand.u32 %v1579, 2147483648
    %v1592 = vor.u32 1.1754944e-38, %v1591
    %v1593 = vsel %vm1590, %v1592, %v1588
    %v1594 = vmul.f32 %v1569, %v1593
    %v1595 = vmul.f32 %v1571, %v1593
    %v1596 = vsel %vm490, %v1595, -inf
    %v1597 = vmax.f32 %v1594, %v1596
    %v1598 = vrot.slane %v1597, 4
    %v1599 = vmax.f32 %v1597, %v1598
    %v1600 = vrot.slane %v1599, 2
    %v1601 = vmax.f32 %v1599, %v1600
    %v1602 = vrot.slane %v1601, 1
    %v1603 = vmax.f32 %v1601, %v1602
    %vm1604 = vcmp.eq.f32.partialorder %v1594, %v1603
    %vm1605 = vcmp.eq.f32.partialorder %v1595, %v1603
    %v1606 = vsel %vm1604, %v1189, 9.0
    %v1607 = vsel %vm1605, %v1190, 9.0
    %v1608 = vsel %vm490, %v1607, inf
    %v1609 = vmin.f32 %v1606, %v1608
    %v1610 = vrot.slane %v1609, 4
    %v1611 = vmin.f32 %v1609, %v1610
    %v1612 = vrot.slane %v1611, 2
    %v1613 = vmin.f32 %v1611, %v1612
    %v1614 = vrot.slane %v1613, 1
    %v1615 = vmin.f32 %v1613, %v1614
    %v1616 = vcvt.f32.s32.to.zero.pseudo %v1615
    %vm1617 = vcmp.eq.s32.totalorder %v1187, %v1616
    %vm1618 = vcmp.eq.s32.totalorder %v1188, %v1616
    %v1619 = vsel %vm1617, %v1594, 0.0
    %v1620 = vsel %vm1618, %v1595, 0.0
    %v1621 = vsel %vm490, %v1620, 0.0
    %v1622 = vadd.f32 %v1619, %v1621
    %v1623 = vrot.slane %v1622, 4
    %v1624 = vadd.f32 %v1622, %v1623
    %v1625 = vrot.slane %v1624, 2
    %v1626 = vadd.f32 %v1624, %v1625
    %v1627 = vrot.slane %v1626, 1
    %v1628 = vadd.f32 %v1626, %v1627
    %v1629 = vlog2.pop %v1628
    %v1630 = vmul.f32 %v1629, 0.6931472
    %vm1631 = vmxor %vm1433, 1
    %v1632 = vsel %vm1631, %v1616, 4294967295
    %vm1633 = vcmask 8200
    %1634 = vst.msk [vmem:[#allocation17] sm:$0x1] %vm1633, %v1632
    %v1635 = vsel %vm1631, %v1630, 0.0
    %v1636 = vadd.f32 %v1414, %v1635
    %v1637 = vsel %vm1631, 1, 0
    %vm1638 = vcmp.eq.s32.totalorder %v1637, 1
    %vm1639 = vmand %vm1638, %vm1617
    %vm1640 = vmand %vm1638, %vm1618
    %v1641 = vsel %vm1639, 1e-12, %v1415
    %v1642 = vsel %vm1640, 1e-12, %v1416
    %v1643 = vsub.s32 %v1616, 1
    %vm1644 = vcmp.eq.s32.totalorder %v1187, %v1643
    %v1645 = vsel %vm1644, 1, 0
    %vm1646 = vcmp.eq.s32.totalorder %v1645, 1
    %v1647 = vsel %vm1646, %v514, 0.0
    %v1648 = vsel %vm523, %v1647, 0.0
    %v1649 = vrot.slane %v1648, 4
    %v1650 = vadd.f32 %v1648, %v1649
    %v1651 = vrot.slane %v1650, 2
    %v1652 = vadd.f32 %v1650, %v1651
    %v1653 = vrot.slane %v1652, 1
    %v1654 = vadd.f32 %v1652, %v1653
    %vm1655 = vcmp.gt.s32.totalorder %v1616, 0
    %vm1656 = vmand %vm1631, %vm1655
    %v1657 = vsel %vm1656, 1, 0
    %vm1658 = vcmp.eq.s32.totalorder %v1657, 1
    %v1659 = vsel %vm1658, %v1654, %v1432
    %v1660 = vsel %vm1638, %v1515, %v1293
    %vm1661 = vcmp.eq.s32.totalorder %v1616, 0
    %vm1662 = vmor %vm1433, %vm1661
    %v1664 = vsel %vm523, %v1659, 0
    %1666 = vmatpush.msra.mxu0 0.0
    %1667 = vmatpush.msra.mxu0 0.0
    %1668 = vmatpush.msra.mxu0 0.0
    %1669 = vmatpush.msra.mxu0 0.0
    %1670 = vmatpush.msra.mxu0 0.0
    %1671 = vmatpush.msra.mxu0 0.0
    %1672 = vmatpush.msra.mxu0 0.0
    %1673 = vmatpush.msra.mxu0 0.0
    %1674 = vmatpush.msra.mxu0 0.0
    %1675 = vmatpush.msra.mxu0 0.0
    %1676 = vmatpush.msra.mxu0 0.0
    %1677 = vmatpush.msra.mxu0 0.0
    %1678 = vmatpush.msra.mxu0 %v1174
    %1679 = vmatpush.msra.mxu0 %v1173
    %1680 = vmatpush.msra.mxu0 %v1172
    %1681 = vmatpush.msra.mxu0 %v1171
    %1682 = vmatmul.f32.gmra.mxu0 %v1664
    %v1683 = vpop.f32.mrf.mxu0
    %v1684 = vadd.f32 %v1179, %v1683
    %1685 = vdwg.mxu0
    %1687 = vrot.lane.b32.xlu0 %v1660, 96
    %v1688 = vpop.permute.xlu0 %1687
    %v1689 = vsel %vm523, %v1688, 0
    %1691 = vmatpush.msra.mxu0 0.0
    %1692 = vmatpush.msra.mxu0 0.0
    %1693 = vmatpush.msra.mxu0 0.0
    %1694 = vmatpush.msra.mxu0 0.0
    %1695 = vmatpush.msra.mxu0 0.0
    %1696 = vmatpush.msra.mxu0 0.0
    %1697 = vmatpush.msra.mxu0 0.0
    %1698 = vmatpush.msra.mxu0 0.0
    %1699 = vmatpush.msra.mxu0 0.0
    %1700 = vmatpush.msra.mxu0 0.0
    %1701 = vmatpush.msra.mxu0 0.0
    %1702 = vmatpush.msra.mxu0 0.0
    %1703 = vmatpush.msra.mxu0 %v1178
    %1704 = vmatpush.msra.mxu0 %v1177
    %1705 = vmatpush.msra.mxu0 %v1176
    %1706 = vmatpush.msra.mxu0 %v1175
    %1707 = vmatmul.f32.gmra.mxu0 %v1689
    %v1708 = vpop.f32.mrf.mxu0
    %v1709 = vadd.f32 %v1180, %v1708
    %1710 = vdwg.mxu0
    %v1711 = vadd.f32 %v1684, %v1709
    %v1712 = vxor.u32 %v1711, 2147483648
    %v1713 = vmul.f32 %v1712, 1.442695
    %v1714 = vpow.pop %v1713
    %v1715 = vadd.f32 %v1714, 1.0
    %v1716 = vrcp.pop %v1715
    %v1717 = vmul.f32 %v1715, %v1716
    %v1718 = vsub.f32 1.0, %v1717
    %v1719 = vmul.f32 %v1716, %v1718
    %v1720 = vadd.f32 %v1716, %v1719
    %vm1721 = vweird.f32 %v1715
    %vm1722 = vweird.f32 %v1716
    %vm1723 = vmor %vm1721, %vm1722
    %v1724 = vsel %vm1723, %v1716, %v1720
    %v1725 = vand.u32 2147483647, %v1715
    %vm1726 = vcmp.eq.f32.partialorder %v1725, 8.507059e+37
    %v1727 = vand.u32 %v1715, 2147483648
    %v1728 = vor.u32 1.1754944e-38, %v1727
    %v1729 = vsel %vm1726, %v1728, %v1724
    %v1730 = vmul.f32 1.0, %v1729
    %1732 = vrot.lane.b32.xlu0 %v1709, 64
    %v1733 = vpop.permute.xlu0 %1732
    %v1735 = vmul.f32 %v1730, %v1733
    %1737 = vrot.lane.b32.xlu0 %v1735, 64
    %v1738 = vpop.permute.xlu0 %1737
    %v1740 = vadd.f32 %v1684, %v1738
    %v1741 = vtanh.pop %v1740
    %v1742 = vsub.f32 1.0, %v1730
    %1744 = vrot.lane.b32.xlu0 %v1741, 96
    %v1745 = vpop.permute.xlu0 %1744
    %v1747 = vmul.f32 %v1742, %v1745
    %v1748 = vmul.f32 %v1730, %v1660
    %v1749 = vadd.f32 %v1747, %v1748
    %1751 = vrot.lane.b32.xlu0 %v1749, 96
    %v1752 = vpop.permute.xlu0 %1751
    %v1753 = vsel %vm523, %v1752, 0
    %1755 = vmatpush.msra.mxu0 0.0
    %1756 = vmatpush.msra.mxu0 0.0
    %1757 = vmatpush.msra.mxu0 0.0
    %1758 = vmatpush.msra.mxu0 0.0
    %1759 = vmatpush.msra.mxu0 0.0
    %1760 = vmatpush.msra.mxu0 0.0
    %1761 = vmatpush.msra.mxu0 0.0
    %1762 = vmatpush.msra.mxu0 0.0
    %1763 = vmatpush.msra.mxu0 0.0
    %1764 = vmatpush.msra.mxu0 0.0
    %1765 = vmatpush.msra.mxu0 0.0
    %1766 = vmatpush.msra.mxu0 0.0
    %1767 = vmatpush.msra.mxu0 %v1184
    %1768 = vmatpush.msra.mxu0 %v1183
    %1769 = vmatpush.msra.mxu0 %v1182
    %1770 = vmatpush.msra.mxu0 %v1181
    %1771 = vmatmul.f32.gmra.mxu0 %v1753
    %v1772 = vpop.f32.mrf.mxu0
    %v1773 = vadd.f32 0.0, %v1772
    %1774 = vdwg.mxu0
    %v1775 = vperm.slane %v1773, 0
    %v1776 = vadd.f32 %v1166, %v1775
    %v1777 = vadd.f32 %v1169, %v1775
    %v1778 = vtanh.pop %v1776
    %v1779 = vtanh.pop %v1777
    %v1780 = vmul.f32 %v1778, %v1325
    %v1781 = vmul.f32 %v1779, %v1325
    %v1782 = vsel %vm1329, %v1780, 0.0
    %1783 = vadd.xlane.f32.xlu0 %v1782
    %v1784 = vpop.xlane.xlu0 %1783
    %v1785 = vsel %vm1333, %v1781, 0.0
    %1786 = vadd.xlane.f32.xlu0 %v1785
    %v1787 = vpop.xlane.xlu0 %1786
    %v1788 = vmax.f32 %v1784, 0.0
    %v1789 = vmax.f32 %v1787, 0.0
    %v1790 = vmul.f32 %v1788, %v1641
    %v1791 = vmul.f32 %v1789, %v1642
    %v1792 = vsel %vm490, %v1791, -inf
    %v1793 = vmax.f32 %v1790, %v1792
    %v1794 = vrot.slane %v1793, 4
    %v1795 = vmax.f32 %v1793, %v1794
    %v1796 = vrot.slane %v1795, 2
    %v1797 = vmax.f32 %v1795, %v1796
    %v1798 = vrot.slane %v1797, 1
    %v1799 = vmax.f32 %v1797, %v1798
    %v1800 = vsub.f32 %v1790, %v1799
    %v1801 = vsub.f32 %v1791, %v1799
    %v1802 = vmul.f32 %v1800, 1.442695
    %v1803 = vpow.pop %v1802
    %v1804 = vmul.f32 %v1801, 1.442695
    %v1805 = vpow.pop %v1804
    %v1806 = vsel %vm490, %v1805, 0.0
    %v1807 = vadd.f32 %v1803, %v1806
    %v1808 = vrot.slane %v1807, 4
    %v1809 = vadd.f32 %v1807, %v1808
    %v1810 = vrot.slane %v1809, 2
    %v1811 = vadd.f32 %v1809, %v1810
    %v1812 = vrot.slane %v1811, 1
    %v1813 = vadd.f32 %v1811, %v1812
    %v1814 = vrcp.pop %v1813
    %v1815 = vmul.f32 %v1813, %v1814
    %v1816 = vsub.f32 1.0, %v1815
    %v1817 = vmul.f32 %v1814, %v1816
    %v1818 = vadd.f32 %v1814, %v1817
    %vm1819 = vweird.f32 %v1813
    %vm1820 = vweird.f32 %v1814
    %vm1821 = vmor %vm1819, %vm1820
    %v1822 = vsel %vm1821, %v1814, %v1818
    %v1823 = vand.u32 2147483647, %v1813
    %vm1824 = vcmp.eq.f32.partialorder %v1823, 8.507059e+37
    %v1825 = vand.u32 %v1813, 2147483648
    %v1826 = vor.u32 1.1754944e-38, %v1825
    %v1827 = vsel %vm1824, %v1826, %v1822
    %v1828 = vmul.f32 %v1803, %v1827
    %v1829 = vmul.f32 %v1805, %v1827
    %v1830 = vsel %vm490, %v1829, -inf
    %v1831 = vmax.f32 %v1828, %v1830
    %v1832 = vrot.slane %v1831, 4
    %v1833 = vmax.f32 %v1831, %v1832
    %v1834 = vrot.slane %v1833, 2
    %v1835 = vmax.f32 %v1833, %v1834
    %v1836 = vrot.slane %v1835, 1
    %v1837 = vmax.f32 %v1835, %v1836
    %vm1838 = vcmp.eq.f32.partialorder %v1828, %v1837
    %vm1839 = vcmp.eq.f32.partialorder %v1829, %v1837
    %v1840 = vsel %vm1838, %v1189, 9.0
    %v1841 = vsel %vm1839, %v1190, 9.0
    %v1842 = vsel %vm490, %v1841, inf
    %v1843 = vmin.f32 %v1840, %v1842
    %v1844 = vrot.slane %v1843, 4
    %v1845 = vmin.f32 %v1843, %v1844
    %v1846 = vrot.slane %v1845, 2
    %v1847 = vmin.f32 %v1845, %v1846
    %v1848 = vrot.slane %v1847, 1
    %v1849 = vmin.f32 %v1847, %v1848
    %v1850 = vcvt.f32.s32.to.zero.pseudo %v1849
    %vm1851 = vcmp.eq.s32.totalorder %v1187, %v1850
    %vm1852 = vcmp.eq.s32.totalorder %v1188, %v1850
    %v1853 = vsel %vm1851, %v1828, 0.0
    %v1854 = vsel %vm1852, %v1829, 0.0
    %v1855 = vsel %vm490, %v1854, 0.0
    %v1856 = vadd.f32 %v1853, %v1855
    %v1857 = vrot.slane %v1856, 4
    %v1858 = vadd.f32 %v1856, %v1857
    %v1859 = vrot.slane %v1858, 2
    %v1860 = vadd.f32 %v1858, %v1859
    %v1861 = vrot.slane %v1860, 1
    %v1862 = vadd.f32 %v1860, %v1861
    %v1863 = vlog2.pop %v1862
    %v1864 = vmul.f32 %v1863, 0.6931472
    %vm1865 = vmxor %vm1662, 1
    %v1866 = vsel %vm1865, %v1850, 4294967295
    %vm1867 = vcmask 16400
    %1868 = vst.msk [vmem:[#allocation17] sm:$0x1] %vm1867, %v1866
    %v1869 = vsel %vm1865, %v1864, 0.0
    %v1870 = vadd.f32 %v1636, %v1869
    %v1871 = vsel %vm1865, 1, 0
    %vm1872 = vcmp.eq.s32.totalorder %v1871, 1
    %vm1873 = vmand %vm1872, %vm1851
    %vm1874 = vmand %vm1872, %vm1852
    %v1875 = vsel %vm1873, 1e-12, %v1641
    %v1876 = vsel %vm1874, 1e-12, %v1642
    %v1877 = vsub.s32 %v1850, 1
    %vm1878 = vcmp.eq.s32.totalorder %v1187, %v1877
    %v1879 = vsel %vm1878, 1, 0
    %vm1880 = vcmp.eq.s32.totalorder %v1879, 1
    %v1881 = vsel %vm1880, %v514, 0.0
    %v1882 = vsel %vm523, %v1881, 0.0
    %v1883 = vrot.slane %v1882, 4
    %v1884 = vadd.f32 %v1882, %v1883
    %v1885 = vrot.slane %v1884, 2
    %v1886 = vadd.f32 %v1884, %v1885
    %v1887 = vrot.slane %v1886, 1
    %v1888 = vadd.f32 %v1886, %v1887
    %vm1889 = vcmp.gt.s32.totalorder %v1850, 0
    %vm1890 = vmand %vm1865, %vm1889
    %v1891 = vsel %vm1890, 1, 0
    %vm1892 = vcmp.eq.s32.totalorder %v1891, 1
    %v1893 = vsel %vm1892, %v1888, %v1659
    %v1894 = vsel %vm1872, %v1749, %v1660
    %vm1895 = vcmp.eq.s32.totalorder %v1850, 0
    %vm1896 = vmor %vm1662, %vm1895
    %v1898 = vsel %vm523, %v1893, 0
    %1900 = vmatpush.msra.mxu0 0.0
    %1901 = vmatpush.msra.mxu0 0.0
    %1902 = vmatpush.msra.mxu0 0.0
    %1903 = vmatpush.msra.mxu0 0.0
    %1904 = vmatpush.msra.mxu0 0.0
    %1905 = vmatpush.msra.mxu0 0.0
    %1906 = vmatpush.msra.mxu0 0.0
    %1907 = vmatpush.msra.mxu0 0.0
    %1908 = vmatpush.msra.mxu0 0.0
    %1909 = vmatpush.msra.mxu0 0.0
    %1910 = vmatpush.msra.mxu0 0.0
    %1911 = vmatpush.msra.mxu0 0.0
    %1912 = vmatpush.msra.mxu0 %v1174
    %1913 = vmatpush.msra.mxu0 %v1173
    %1914 = vmatpush.msra.mxu0 %v1172
    %1915 = vmatpush.msra.mxu0 %v1171
    %1916 = vmatmul.f32.gmra.mxu0 %v1898
    %v1917 = vpop.f32.mrf.mxu0
    %v1918 = vadd.f32 %v1179, %v1917
    %1919 = vdwg.mxu0
    %1921 = vrot.lane.b32.xlu0 %v1894, 96
    %v1922 = vpop.permute.xlu0 %1921
    %v1923 = vsel %vm523, %v1922, 0
    %1925 = vmatpush.msra.mxu0 0.0
    %1926 = vmatpush.msra.mxu0 0.0
    %1927 = vmatpush.msra.mxu0 0.0
    %1928 = vmatpush.msra.mxu0 0.0
    %1929 = vmatpush.msra.mxu0 0.0
    %1930 = vmatpush.msra.mxu0 0.0
    %1931 = vmatpush.msra.mxu0 0.0
    %1932 = vmatpush.msra.mxu0 0.0
    %1933 = vmatpush.msra.mxu0 0.0
    %1934 = vmatpush.msra.mxu0 0.0
    %1935 = vmatpush.msra.mxu0 0.0
    %1936 = vmatpush.msra.mxu0 0.0
    %1937 = vmatpush.msra.mxu0 %v1178
    %1938 = vmatpush.msra.mxu0 %v1177
    %1939 = vmatpush.msra.mxu0 %v1176
    %1940 = vmatpush.msra.mxu0 %v1175
    %1941 = vmatmul.f32.gmra.mxu0 %v1923
    %v1942 = vpop.f32.mrf.mxu0
    %v1943 = vadd.f32 %v1180, %v1942
    %1944 = vdwg.mxu0
    %v1945 = vadd.f32 %v1918, %v1943
    %v1946 = vxor.u32 %v1945, 2147483648
    %v1947 = vmul.f32 %v1946, 1.442695
    %v1948 = vpow.pop %v1947
    %v1949 = vadd.f32 %v1948, 1.0
    %v1950 = vrcp.pop %v1949
    %v1951 = vmul.f32 %v1949, %v1950
    %v1952 = vsub.f32 1.0, %v1951
    %v1953 = vmul.f32 %v1950, %v1952
    %v1954 = vadd.f32 %v1950, %v1953
    %vm1955 = vweird.f32 %v1949
    %vm1956 = vweird.f32 %v1950
    %vm1957 = vmor %vm1955, %vm1956
    %v1958 = vsel %vm1957, %v1950, %v1954
    %v1959 = vand.u32 2147483647, %v1949
    %vm1960 = vcmp.eq.f32.partialorder %v1959, 8.507059e+37
    %v1961 = vand.u32 %v1949, 2147483648
    %v1962 = vor.u32 1.1754944e-38, %v1961
    %v1963 = vsel %vm1960, %v1962, %v1958
    %v1964 = vmul.f32 1.0, %v1963
    %1966 = vrot.lane.b32.xlu0 %v1943, 64
    %v1967 = vpop.permute.xlu0 %1966
    %v1969 = vmul.f32 %v1964, %v1967
    %1971 = vrot.lane.b32.xlu0 %v1969, 64
    %v1972 = vpop.permute.xlu0 %1971
    %v1974 = vadd.f32 %v1918, %v1972
    %v1975 = vtanh.pop %v1974
    %v1976 = vsub.f32 1.0, %v1964
    %1978 = vrot.lane.b32.xlu0 %v1975, 96
    %v1979 = vpop.permute.xlu0 %1978
    %v1981 = vmul.f32 %v1976, %v1979
    %v1982 = vmul.f32 %v1964, %v1894
    %v1983 = vadd.f32 %v1981, %v1982
    %1985 = vrot.lane.b32.xlu0 %v1983, 96
    %v1986 = vpop.permute.xlu0 %1985
    %v1987 = vsel %vm523, %v1986, 0
    %1989 = vmatpush.msra.mxu0 0.0
    %1990 = vmatpush.msra.mxu0 0.0
    %1991 = vmatpush.msra.mxu0 0.0
    %1992 = vmatpush.msra.mxu0 0.0
    %1993 = vmatpush.msra.mxu0 0.0
    %1994 = vmatpush.msra.mxu0 0.0
    %1995 = vmatpush.msra.mxu0 0.0
    %1996 = vmatpush.msra.mxu0 0.0
    %1997 = vmatpush.msra.mxu0 0.0
    %1998 = vmatpush.msra.mxu0 0.0
    %1999 = vmatpush.msra.mxu0 0.0
    %2000 = vmatpush.msra.mxu0 0.0
    %2001 = vmatpush.msra.mxu0 %v1184
    %2002 = vmatpush.msra.mxu0 %v1183
    %2003 = vmatpush.msra.mxu0 %v1182
    %2004 = vmatpush.msra.mxu0 %v1181
    %2005 = vmatmul.f32.gmra.mxu0 %v1987
    %v2006 = vpop.f32.mrf.mxu0
    %v2007 = vadd.f32 0.0, %v2006
    %2008 = vdwg.mxu0
    %v2009 = vperm.slane %v2007, 0
    %v2010 = vadd.f32 %v1166, %v2009
    %v2011 = vadd.f32 %v1169, %v2009
    %v2012 = vtanh.pop %v2010
    %v2013 = vtanh.pop %v2011
    %v2014 = vmul.f32 %v2012, %v1325
    %v2015 = vmul.f32 %v2013, %v1325
    %v2016 = vsel %vm1329, %v2014, 0.0
    %2017 = vadd.xlane.f32.xlu0 %v2016
    %v2018 = vpop.xlane.xlu0 %2017
    %v2019 = vsel %vm1333, %v2015, 0.0
    %2020 = vadd.xlane.f32.xlu0 %v2019
    %v2021 = vpop.xlane.xlu0 %2020
    %v2022 = vmax.f32 %v2018, 0.0
    %v2023 = vmax.f32 %v2021, 0.0
    %v2024 = vmul.f32 %v2022, %v1875
    %v2025 = vmul.f32 %v2023, %v1876
    %v2026 = vsel %vm490, %v2025, -inf
    %v2027 = vmax.f32 %v2024, %v2026
    %v2028 = vrot.slane %v2027, 4
    %v2029 = vmax.f32 %v2027, %v2028
    %v2030 = vrot.slane %v2029, 2
    %v2031 = vmax.f32 %v2029, %v2030
    %v2032 = vrot.slane %v2031, 1
    %v2033 = vmax.f32 %v2031, %v2032
    %v2034 = vsub.f32 %v2024, %v2033
    %v2035 = vsub.f32 %v2025, %v2033
    %v2036 = vmul.f32 %v2034, 1.442695
    %v2037 = vpow.pop %v2036
    %v2038 = vmul.f32 %v2035, 1.442695
    %v2039 = vpow.pop %v2038
    %v2040 = vsel %vm490, %v2039, 0.0
    %v2041 = vadd.f32 %v2037, %v2040
    %v2042 = vrot.slane %v2041, 4
    %v2043 = vadd.f32 %v2041, %v2042
    %v2044 = vrot.slane %v2043, 2
    %v2045 = vadd.f32 %v2043, %v2044
    %v2046 = vrot.slane %v2045, 1
    %v2047 = vadd.f32 %v2045, %v2046
    %v2048 = vrcp.pop %v2047
    %v2049 = vmul.f32 %v2047, %v2048
    %v2050 = vsub.f32 1.0, %v2049
    %v2051 = vmul.f32 %v2048, %v2050
    %v2052 = vadd.f32 %v2048, %v2051
    %vm2053 = vweird.f32 %v2047
    %vm2054 = vweird.f32 %v2048
    %vm2055 = vmor %vm2053, %vm2054
    %v2056 = vsel %vm2055, %v2048, %v2052
    %v2057 = vand.u32 2147483647, %v2047
    %vm2058 = vcmp.eq.f32.partialorder %v2057, 8.507059e+37
    %v2059 = vand.u32 %v2047, 2147483648
    %v2060 = vor.u32 1.1754944e-38, %v2059
    %v2061 = vsel %vm2058, %v2060, %v2056
    %v2062 = vmul.f32 %v2037, %v2061
    %v2063 = vadd.f32 %v2062, 1e-12
    %v2064 = vlog2.pop %v2063
    %v2065 = vmul.f32 %v2064, 0.6931472
    %vm2066 = vmxor %vm1896, 1
    %v2067 = vsel %vm2066, 0, 4294967295
    %vm2068 = vcmask 24600
    %2069 = vst.msk [vmem:[#allocation17] sm:$0x1] %vm2068, %v2067
    %v2070 = vsel %vm2066, %v2065, 0.0
    %v2071 = vadd.f32 %v1870, %v2070
    %2072 = vst.msk [vmem:[#allocation18] sm:$0x1] %vm1412, %v2071
    // Predicated region
    $region94: #{_fwd.1} parent=1 // pred_check
      _
    $region95: #{_fwd.1} parent=1 // pred_check_branch
      %2074 = sbr.rel (0) target = $region97
    $region96: #{_fwd.1} parent=1 // pred_region
      %2076 = vsyncadd [#allocation7], 0
      %s2078 = sshll.u32 [#allocation17], 4
      %s2079 = int_to_ptr.vmem [resolvable:$true] %s2078
      %s2080 = sshll.u32 %s16, 4
      %s2081 = int_to_ptr.hbm [resolvable:$true] %s2080
      %2083 = dma.vmem_to_hbm [thread:$0]  %s2079, 16, %s2081, [#allocation7]
    $region97: #{_fwd.1} parent=1 // pred_fallthru
      _
    // Predicated region
    $region98: #{_fwd.1} parent=1 // pred_check
      _
    $region99: #{_fwd.1} parent=1 // pred_check_branch
      %2085 = sbr.rel (0) target = $region101
    $region100: #{_fwd.1} parent=1 // pred_region
      %2087 = vsyncadd [#allocation19], 0
      %s2089 = sshll.u32 [#allocation18], 4
      %s2090 = int_to_ptr.vmem [resolvable:$true] %s2089
      %s2091 = sshll.u32 %s17, 4
      %s2092 = int_to_ptr.hbm [resolvable:$true] %s2091
      %2094 = dma.vmem_to_hbm [thread:$0]  %s2090, 16, %s2092, [#allocation19]
    $region101: #{_fwd.1} parent=1 // pred_fallthru
      _
    // Predicated region
    $region102: #{_fwd.1} parent=1 // pred_check
      _
    $region103: #{_fwd.1} parent=1 // pred_check_branch
      %2096 = sbr.rel (0) target = $region105
    $region104: #{_fwd.1} parent=1 // pred_region
      %2098 = dma.done [#allocation7], 16
    $region105: #{_fwd.1} parent=1 // pred_fallthru
      _
    // Predicated region
    $region106: #{_fwd.1} parent=1 // pred_check
      _
    $region107: #{_fwd.1} parent=1 // pred_check_branch
      %2100 = sbr.rel (0) target = $region109
    $region108: #{_fwd.1} parent=1 // pred_region
      %2102 = dma.done [#allocation19], 16
    $region109: #{_fwd.1} parent=1 // pred_fallthru
      _
    %2103 = vsyncpa [#allocation6], 1
    %2104 = vsyncpa [#allocation9], 1
    %2105 = vsyncpa [#allocation12], 1
    %2106 = vsyncpa [#allocation15], 1
    %2107 = vsyncpa [#allocation7], 1
    %2108 = vsyncpa [#allocation19], 1

</llo_original>
